<compile_context>
chip_gen: v6e
topology: v6e:2x2x1
jax: 0.10.0
libtpu: 0.0.40
codegen_flags: <defaults>
</compile_context>

<pallas_src>
import functools
import math

import jax
import jax.numpy as jnp
from jax.experimental import pallas as pl
from jax.experimental.pallas import tpu as pltpu

INPUT_SIZE = 5
HIDDEN = 64
NUM_LAYERS = 3
OUTPUT_SIZE = 1


def lstm_kernel(x_ref, wih_ref, whh_ref, b_ref, fcw_ref, fcb_ref,
                out_ref, seq_ref, gates_ref):
    """Layer-major LSTM forward + FC head for one batch tile.

    x_ref    : (1, T*BT, H) bf16  time-major, feature-padded layer-0 input
    wih_ref  : (L, H, 4H)  bf16   input->gate weights, gate cols [i, f, o, g],
                                  i/f/o columns pre-scaled by 0.5
    whh_ref  : (L, H, 4H)  bf16   hidden->gate weights, same order / scaling
    b_ref    : (L, 1, 4H)  f32    combined bias (b_ih + b_hh), same order / scaling
    fcw_ref  : (1, H)      f32    FC weight row
    fcb_ref  : (1, 1)      f32    FC bias (SMEM scalar)
    out_ref  : (1, BT, 1)  f32
    seq_ref  : (T*BT, H)   bf16   scratch: a layer's hidden outputs, consumed as
                                  the next layer's input sequence
    gates_ref: (T*BT, 4H)  f32    scratch: batched per-layer input projections
    """
    H = seq_ref.shape[1]
    L = wih_ref.shape[0]
    BT = out_ref.shape[1]
    T = seq_ref.shape[0] // BT

    h = jnp.zeros((BT, H), jnp.float32)
    for l in range(L):
        # One big MXU op per layer: every timestep's input projection at once.
        # Layer 0 reads the x tile directly (no prologue copy); later layers
        # read the previous layer's hidden sequence from seq_ref.
        src = x_ref[0] if l == 0 else seq_ref[...]
        gates_ref[...] = (
            jnp.dot(src, wih_ref[l], preferred_element_type=jnp.float32)
            + b_ref[l])

        # Sequential recurrence; h / c stay loop-carried (register-resident).
        h = jnp.zeros((BT, H), jnp.float32)
        c = jnp.zeros((BT, H), jnp.float32)
        for t in range(T):                               # static unroll, T small
            g = gates_ref[t * BT:(t + 1) * BT, :] + jnp.dot(
                h.astype(jnp.bfloat16), whh_ref[l],
                preferred_element_type=jnp.float32)
            # Gate cols [i, f, o, g]; i/f/o pre-scaled by 0.5 at init so
            # sigmoid(z) = 0.5*(1 + tanh(z/2)) needs only tanh: two full
            # 128-lane EUP passes per cell instead of three.
            t_all = jnp.tanh(g)
            if_act = 0.5 * (t_all[:, :2 * H] + 1.0)
            i_g = if_act[:, :H]
            f_g = if_act[:, H:]
            o_g = 0.5 * (t_all[:, 2 * H:3 * H] + 1.0)
            g_g = t_all[:, 3 * H:]
            c = f_g * c + i_g * g_g
            h = o_g * jnp.tanh(c)
            if l < L - 1:
                # This timestep's hidden state becomes next layer's input.
                seq_ref[t * BT:(t + 1) * BT, :] = h.astype(jnp.bfloat16)

    # FC head on the top layer's last hidden state: VPU multiply + lane
    # reduction (cheaper than an N=1 MXU matmul); bias is an SMEM scalar.
    out_ref[0] = (jnp.sum(h * fcw_ref[...], axis=-1, keepdims=True)
                  + fcb_ref[0, 0])


def _round_up(n, m):
    return ((n + m - 1) // m) * m


@functools.partial(jax.jit, static_argnames=("batch_tile",))
def lstm_forward(x, wih, whh, b, fcw, fcb, *, batch_tile=64):
    """x: (B, T, input_size) float32.  Returns (B, 1) float32."""
    B, T, F = x.shape
    H = HIDDEN
    L = NUM_LAYERS

    # Batch tile: multiple of 16 sublanes (aligned packed-bf16 stores into
    # seq_ref), capped at batch_tile so large batches tile over a "parallel"
    # grid axis (>=2 grid points shard across v7x's two TensorCores).
    BT = min(_round_up(B, 16), batch_tile)
    nb = -(-B // BT)
    Bp = nb * BT

    # Pad features -> H and batch -> Bp in bf16 (x is only an MXU bf16 operand);
    # lay out time-major within each batch tile and pre-flatten to (T*BT, H)
    # (layout plumbing in the wrapper, aligned sublane access in the kernel).
    x_pad = jnp.zeros((Bp, T, H), jnp.bfloat16).at[:B, :, :F].set(
        x.astype(jnp.bfloat16))
    x_tm = (x_pad.reshape(nb, BT, T, H)
            .transpose(0, 2, 1, 3)            # (nb, T, BT, H)
            .reshape(nb, T * BT, H))

    out = pl.pallas_call(
        lstm_kernel,
        out_shape=jax.ShapeDtypeStruct((nb, BT, OUTPUT_SIZE), jnp.float32),
        grid=(nb,),
        in_specs=[
            pl.BlockSpec((1, T * BT, H), lambda i: (i, 0, 0)),        # x tile
            pl.BlockSpec((L, H, 4 * H), lambda i: (0, 0, 0)),         # W_ih
            pl.BlockSpec((L, H, 4 * H), lambda i: (0, 0, 0)),         # W_hh
            pl.BlockSpec((L, 1, 4 * H), lambda i: (0, 0, 0)),         # bias
            pl.BlockSpec((1, H), lambda i: (0, 0)),                   # fc weight
            pl.BlockSpec(memory_space=pltpu.MemorySpace.SMEM),        # fc bias
        ],
        out_specs=pl.BlockSpec((1, BT, OUTPUT_SIZE), lambda i: (i, 0, 0)),
        scratch_shapes=[
            pltpu.VMEM((T * BT, H), jnp.bfloat16),       # layer hidden sequence
            pltpu.VMEM((T * BT, 4 * H), jnp.float32),    # batched gate projections
        ],
        compiler_params=pltpu.CompilerParams(
            dimension_semantics=("parallel",)),
    )(x_tm, wih, whh, b, fcw, fcb)

    return out.reshape(Bp, OUTPUT_SIZE)[:B]


def _reorder_and_scale_gates(w):
    """PyTorch gate rows [i; f; g; o] -> [i; f; o; g] along axis 0, with the
    i/f/o rows pre-scaled by 0.5 (tanh-based sigmoid folding)."""
    i_, f_, g_, o_ = jnp.split(w, 4, axis=0)
    return jnp.concatenate([0.5 * i_, 0.5 * f_, 0.5 * o_, g_], axis=0)


def init_params(key):
    """Raw torch.nn.LSTM / Linear-shaped f32 params, U(-k, k), k = 1/sqrt(H)."""
    k = 1.0 / math.sqrt(HIDDEN)
    keys = jax.random.split(key, 4 * NUM_LAYERS + 2)
    w_ih, w_hh, b_ih, b_hh = [], [], [], []
    for l in range(NUM_LAYERS):
        in_dim = INPUT_SIZE if l == 0 else HIDDEN
        w_ih.append(jax.random.uniform(keys[4 * l + 0], (4 * HIDDEN, in_dim),
                                       jnp.float32, -k, k))
        w_hh.append(jax.random.uniform(keys[4 * l + 1], (4 * HIDDEN, HIDDEN),
                                       jnp.float32, -k, k))
        b_ih.append(jax.random.uniform(keys[4 * l + 2], (4 * HIDDEN,),
                                       jnp.float32, -k, k))
        b_hh.append(jax.random.uniform(keys[4 * l + 3], (4 * HIDDEN,),
                                       jnp.float32, -k, k))
    fc_w = jax.random.uniform(keys[-2], (OUTPUT_SIZE, HIDDEN), jnp.float32, -k, k)
    fc_b = jax.random.uniform(keys[-1], (OUTPUT_SIZE,), jnp.float32, -k, k)
    return w_ih, w_hh, b_ih, b_hh, fc_w, fc_b


def prep_kernel_params(raw):
    """Raw params -> kernel layout: gate order [i, f, o, g], combined bias,
    0.5 folded into i/f/o columns, layer-0 features zero-padded to HIDDEN,
    transposed to (H, 4H), weights cast to bf16."""
    w_ih_l, w_hh_l, b_ih_l, b_hh_l, fc_w, fc_b = raw
    H = HIDDEN
    wih, whh, bias = [], [], []
    for l in range(NUM_LAYERS):
        w_ih = _reorder_and_scale_gates(w_ih_l[l])          # (4H, in)
        w_hh = _reorder_and_scale_gates(w_hh_l[l])          # (4H, H)
        b = _reorder_and_scale_gates(b_ih_l[l] + b_hh_l[l])  # (4H,)
        in_dim = w_ih.shape[1]
        w_ih_pad = jnp.zeros((4 * H, H), jnp.float32).at[:, :in_dim].set(w_ih)
        wih.append(w_ih_pad.T)
        whh.append(w_hh.T)
        bias.append(b)
    wih = jnp.stack(wih).astype(jnp.bfloat16)               # (L, H, 4H)
    whh = jnp.stack(whh).astype(jnp.bfloat16)               # (L, H, 4H)
    bias = jnp.stack(bias)[:, None, :]                      # (L, 1, 4H) f32
    fcw = fc_w.reshape(1, H).astype(jnp.float32)
    fcb = fc_b.reshape(1, 1).astype(jnp.float32)
    return wih, whh, bias, fcw, fcb


def lstm_reference_matched(x, wih, whh, b, fcw, fcb):
    """Pure-JAX reference with numerics identical to the kernel (bf16 matmul
    operands, f32 accumulation, [i, f, o, g] order, tanh-based sigmoid)."""
    B, T, F = x.shape
    H = HIDDEN
    x_pad = (jnp.zeros((B, T, H), jnp.float32).at[:, :, :F].set(x)
             .astype(jnp.bfloat16))
    h = [jnp.zeros((B, H), jnp.float32) for _ in range(NUM_LAYERS)]
    c = [jnp.zeros((B, H), jnp.float32) for _ in range(NUM_LAYERS)]
    for t in range(T):
        layer_in = x_pad[:, t, :]
        for l in range(NUM_LAYERS):
            g = (jnp.dot(layer_in, wih[l], preferred_element_type=jnp.float32)
                 + b[l]
                 + jnp.dot(h[l].astype(jnp.bfloat16), whh[l],
                           preferred_element_type=jnp.float32))
            t_all = jnp.tanh(g)
            i_g = 0.5 * (t_all[:, 0 * H:1 * H] + 1.0)
            f_g = 0.5 * (t_all[:, 1 * H:2 * H] + 1.0)
            o_g = 0.5 * (t_all[:, 2 * H:3 * H] + 1.0)
            g_g = t_all[:, 3 * H:4 * H]
            c[l] = f_g * c[l] + i_g * g_g
            h[l] = o_g * jnp.tanh(c[l])
            layer_in = h[l].astype(jnp.bfloat16)
    return jnp.sum(h[-1] * fcw, axis=-1, keepdims=True) + fcb[0, 0]


def lstm_reference_f32(x, raw):
    """PyTorch-faithful f32 reference (torch gate order [i, f, g, o],
    ordinary sigmoid/tanh, full f32 matmuls)."""
    w_ih_l, w_hh_l, b_ih_l, b_hh_l, fc_w, fc_b = raw
    B, T, _ = x.shape
    H = HIDDEN
    h = [jnp.zeros((B, H), jnp.float32) for _ in range(NUM_LAYERS)]
    c = [jnp.zeros((B, H), jnp.float32) for _ in range(NUM_LAYERS)]
    for t in range(T):
        layer_in = x[:, t, :]
        for l in range(NUM_LAYERS):
            g = (layer_in @ w_ih_l[l].T + h[l] @ w_hh_l[l].T
                 + b_ih_l[l] + b_hh_l[l])
            i_g = jax.nn.sigmoid(g[:, 0 * H:1 * H])
            f_g = jax.nn.sigmoid(g[:, 1 * H:2 * H])
            g_g = jnp.tanh(g[:, 2 * H:3 * H])
            o_g = jax.nn.sigmoid(g[:, 3 * H:4 * H])
            c[l] = f_g * c[l] + i_g * g_g
            h[l] = o_g * jnp.tanh(c[l])
            layer_in = h[l]
    return h[-1] @ fc_w.T + fc_b


if __name__ == "__main__":
    key = jax.random.PRNGKey(0)
    pkey, xkey = jax.random.split(key)

    raw = init_params(pkey)
    wih, whh, b, fcw, fcb = prep_kernel_params(raw)

    batch, seq = 2, 8
    x = jax.random.normal(xkey, (batch, seq, INPUT_SIZE), jnp.float32)

    out = jax.block_until_ready(lstm_forward(x, wih, whh, b, fcw, fcb))
    assert out.shape == (batch, OUTPUT_SIZE)

    # Tight check against a reference with identical (bf16-operand) numerics.
    ref_m = lstm_reference_matched(x, wih, whh, b, fcw, fcb)
    assert jnp.allclose(out, ref_m, atol=1e-3, rtol=1e-3), (out, ref_m)

    # Loose check against a PyTorch-faithful f32 LSTM (documents bf16 gap).
    ref_f = lstm_reference_f32(x, raw)
    assert jnp.allclose(out, ref_f, atol=5e-2, rtol=5e-2), (out, ref_f)

    print("KERNEL_OK")
</pallas_src>

<mosaic_0001>
module attributes {stable_mosaic.version = 11 : i64} {
  func.func @lstm_kernel(%arg0: i32, %arg1: memref<1x128x64xbf16, #tpu.memory_space<vmem>>, %arg2: memref<3x64x256xbf16, #tpu.memory_space<vmem>>, %arg3: memref<3x64x256xbf16, #tpu.memory_space<vmem>>, %arg4: memref<3x1x256xf32, #tpu.memory_space<vmem>>, %arg5: memref<1x64xf32, #tpu.memory_space<vmem>>, %arg6: memref<1x1xf32, #tpu.memory_space<smem>>, %arg7: memref<1x16x1xf32, #tpu.memory_space<vmem>>, %arg8: memref<128x64xbf16, #tpu.memory_space<vmem>>, %arg9: memref<128x256xf32, #tpu.memory_space<vmem>>) attributes {dimension_semantics = [#tpu.dimension_semantics<parallel>], iteration_bounds = array<i64: 1>, scalar_prefetch = 0 : i64, scratch_operands = 2 : i64, tpu.core_type = #tpu.core_type<tc>, window_params = [{transform_indices = @transform_0, window_bounds = array<i64: 1, 128, 64>}, {pipeline_mode = #tpu.pipeline_mode<synchronous>, transform_indices = @transform_1, window_bounds = array<i64: 3, 64, 256>}, {pipeline_mode = #tpu.pipeline_mode<synchronous>, transform_indices = @transform_2, window_bounds = array<i64: 3, 64, 256>}, {pipeline_mode = #tpu.pipeline_mode<synchronous>, transform_indices = @transform_3, window_bounds = array<i64: 3, 1, 256>}, {pipeline_mode = #tpu.pipeline_mode<synchronous>, transform_indices = @transform_4, window_bounds = array<i64: 1, 64>}, {transform_indices = @transform_5, window_bounds = array<i64: 1, 1>}, {transform_indices = @transform_6, window_bounds = array<i64: 1, 16, 1>}]} {
    %c0 = arith.constant 0 : index
    %c0_0 = arith.constant 0 : index
    %c0_1 = arith.constant 0 : index
    %0 = vector.load %arg1[%c0, %c0_0, %c0_1] : memref<1x128x64xbf16, #tpu.memory_space<vmem>>, vector<1x128x64xbf16>
    %1 = vector.shape_cast %0 : vector<1x128x64xbf16> to vector<128x64xbf16>
    %c0_2 = arith.constant 0 : index
    %c0_3 = arith.constant 0 : index
    %c0_4 = arith.constant 0 : index
    %2 = vector.load %arg2[%c0_2, %c0_3, %c0_4] : memref<3x64x256xbf16, #tpu.memory_space<vmem>>, vector<1x64x256xbf16>
    %3 = vector.shape_cast %2 : vector<1x64x256xbf16> to vector<64x256xbf16>
    %cst = arith.constant dense<0.000000e+00> : vector<128x256xf32>
    %4 = tpu.matmul %1, %3, %cst {dimension_numbers = #tpu.dot_dimension_numbers<[1], [0], [0], [1], [0, 0, 1, 1], [], []>} : vector<128x64xbf16>, vector<64x256xbf16>, vector<128x256xf32> -> vector<128x256xf32>
    %c0_5 = arith.constant 0 : index
    %c0_6 = arith.constant 0 : index
    %c0_7 = arith.constant 0 : index
    %5 = vector.load %arg4[%c0_5, %c0_6, %c0_7] : memref<3x1x256xf32, #tpu.memory_space<vmem>>, vector<1x1x256xf32>
    %6 = vector.shape_cast %5 : vector<1x1x256xf32> to vector<1x256xf32>
    %7 = vector.broadcast %6 : vector<1x256xf32> to vector<128x256xf32>
    %8 = arith.addf %4, %7 : vector<128x256xf32>
    %c0_8 = arith.constant 0 : index
    %c0_9 = arith.constant 0 : index
    %9 = vector.load %arg9[%c0_8, %c0_9] : memref<128x256xf32, #tpu.memory_space<vmem>>, vector<128x256xf32>
    tpu.vector_store %arg9[%c0_8, %c0_9], %8 {strides = array<i32>} : memref<128x256xf32, #tpu.memory_space<vmem>>, vector<128x256xf32>,
    %cst_10 = arith.constant 0.000000e+00 : f32
    %10 = vector.broadcast %cst_10 : f32 to vector<16x64xf32>
    %cst_11 = arith.constant 0.000000e+00 : f32
    %11 = vector.broadcast %cst_11 : f32 to vector<16x64xf32>
    %c0_12 = arith.constant 0 : index
    %c0_13 = arith.constant 0 : index
    %12 = vector.load %arg9[%c0_12, %c0_13] : memref<128x256xf32, #tpu.memory_space<vmem>>, vector<16x256xf32>
    %13 = arith.truncf %10 : vector<16x64xf32> to vector<16x64xbf16>
    %c0_14 = arith.constant 0 : index
    %c0_15 = arith.constant 0 : index
    %c0_16 = arith.constant 0 : index
    %14 = vector.load %arg3[%c0_14, %c0_15, %c0_16] : memref<3x64x256xbf16, #tpu.memory_space<vmem>>, vector<1x64x256xbf16>
    %15 = vector.shape_cast %14 : vector<1x64x256xbf16> to vector<64x256xbf16>
    %cst_17 = arith.constant dense<0.000000e+00> : vector<16x256xf32>
    %16 = tpu.matmul %13, %15, %cst_17 {dimension_numbers = #tpu.dot_dimension_numbers<[1], [0], [0], [1], [0, 0, 1, 1], [], []>} : vector<16x64xbf16>, vector<64x256xbf16>, vector<16x256xf32> -> vector<16x256xf32>
    %17 = arith.addf %12, %16 : vector<16x256xf32>
    %18 = math.tanh %17 : vector<16x256xf32>
    %19 = vector.extract_strided_slice %18 {offsets = [0, 0], sizes = [16, 128], strides = [1, 1]} : vector<16x256xf32> to vector<16x128xf32>
    %cst_18 = arith.constant 1.000000e+00 : f32
    %20 = vector.broadcast %cst_18 : f32 to vector<16x128xf32>
    %21 = arith.addf %19, %20 : vector<16x128xf32>
    %cst_19 = arith.constant 5.000000e-01 : f32
    %22 = vector.broadcast %cst_19 : f32 to vector<16x128xf32>
    %23 = arith.mulf %22, %21 : vector<16x128xf32>
    %24 = vector.extract_strided_slice %23 {offsets = [0, 0], sizes = [16, 64], strides = [1, 1]} : vector<16x128xf32> to vector<16x64xf32>
    %25 = vector.extract_strided_slice %23 {offsets = [0, 64], sizes = [16, 64], strides = [1, 1]} : vector<16x128xf32> to vector<16x64xf32>
    %26 = vector.extract_strided_slice %18 {offsets = [0, 128], sizes = [16, 64], strides = [1, 1]} : vector<16x256xf32> to vector<16x64xf32>
    %cst_20 = arith.constant 1.000000e+00 : f32
    %27 = vector.broadcast %cst_20 : f32 to vector<16x64xf32>
    %28 = arith.addf %26, %27 : vector<16x64xf32>
    %cst_21 = arith.constant 5.000000e-01 : f32
    %29 = vector.broadcast %cst_21 : f32 to vector<16x64xf32>
    %30 = arith.mulf %29, %28 : vector<16x64xf32>
    %31 = vector.extract_strided_slice %18 {offsets = [0, 192], sizes = [16, 64], strides = [1, 1]} : vector<16x256xf32> to vector<16x64xf32>
    %32 = arith.mulf %25, %11 : vector<16x64xf32>
    %33 = arith.mulf %24, %31 : vector<16x64xf32>
    %34 = arith.addf %32, %33 : vector<16x64xf32>
    %35 = math.tanh %34 : vector<16x64xf32>
    %36 = arith.mulf %30, %35 : vector<16x64xf32>
    %37 = arith.truncf %36 : vector<16x64xf32> to vector<16x64xbf16>
    %c0_22 = arith.constant 0 : index
    %c0_23 = arith.constant 0 : index
    %38 = vector.load %arg8[%c0_22, %c0_23] : memref<128x64xbf16, #tpu.memory_space<vmem>>, vector<16x64xbf16>
    tpu.vector_store %arg8[%c0_22, %c0_23], %37 {strides = array<i32>} : memref<128x64xbf16, #tpu.memory_space<vmem>>, vector<16x64xbf16>,
    %c16 = arith.constant 16 : index
    %c0_24 = arith.constant 0 : index
    %39 = vector.load %arg9[%c16, %c0_24] : memref<128x256xf32, #tpu.memory_space<vmem>>, vector<16x256xf32>
    %40 = arith.truncf %36 : vector<16x64xf32> to vector<16x64xbf16>
    %c0_25 = arith.constant 0 : index
    %c0_26 = arith.constant 0 : index
    %c0_27 = arith.constant 0 : index
    %41 = vector.load %arg3[%c0_25, %c0_26, %c0_27] : memref<3x64x256xbf16, #tpu.memory_space<vmem>>, vector<1x64x256xbf16>
    %42 = vector.shape_cast %41 : vector<1x64x256xbf16> to vector<64x256xbf16>
    %cst_28 = arith.constant dense<0.000000e+00> : vector<16x256xf32>
    %43 = tpu.matmul %40, %42, %cst_28 {dimension_numbers = #tpu.dot_dimension_numbers<[1], [0], [0], [1], [0, 0, 1, 1], [], []>} : vector<16x64xbf16>, vector<64x256xbf16>, vector<16x256xf32> -> vector<16x256xf32>
    %44 = arith.addf %39, %43 : vector<16x256xf32>
    %45 = math.tanh %44 : vector<16x256xf32>
    %46 = vector.extract_strided_slice %45 {offsets = [0, 0], sizes = [16, 128], strides = [1, 1]} : vector<16x256xf32> to vector<16x128xf32>
    %cst_29 = arith.constant 1.000000e+00 : f32
    %47 = vector.broadcast %cst_29 : f32 to vector<16x128xf32>
    %48 = arith.addf %46, %47 : vector<16x128xf32>
    %cst_30 = arith.constant 5.000000e-01 : f32
    %49 = vector.broadcast %cst_30 : f32 to vector<16x128xf32>
    %50 = arith.mulf %49, %48 : vector<16x128xf32>
    %51 = vector.extract_strided_slice %50 {offsets = [0, 0], sizes = [16, 64], strides = [1, 1]} : vector<16x128xf32> to vector<16x64xf32>
    %52 = vector.extract_strided_slice %50 {offsets = [0, 64], sizes = [16, 64], strides = [1, 1]} : vector<16x128xf32> to vector<16x64xf32>
    %53 = vector.extract_strided_slice %45 {offsets = [0, 128], sizes = [16, 64], strides = [1, 1]} : vector<16x256xf32> to vector<16x64xf32>
    %cst_31 = arith.constant 1.000000e+00 : f32
    %54 = vector.broadcast %cst_31 : f32 to vector<16x64xf32>
    %55 = arith.addf %53, %54 : vector<16x64xf32>
    %cst_32 = arith.constant 5.000000e-01 : f32
    %56 = vector.broadcast %cst_32 : f32 to vector<16x64xf32>
    %57 = arith.mulf %56, %55 : vector<16x64xf32>
    %58 = vector.extract_strided_slice %45 {offsets = [0, 192], sizes = [16, 64], strides = [1, 1]} : vector<16x256xf32> to vector<16x64xf32>
    %59 = arith.mulf %52, %34 : vector<16x64xf32>
    %60 = arith.mulf %51, %58 : vector<16x64xf32>
    %61 = arith.addf %59, %60 : vector<16x64xf32>
    %62 = math.tanh %61 : vector<16x64xf32>
    %63 = arith.mulf %57, %62 : vector<16x64xf32>
    %64 = arith.truncf %63 : vector<16x64xf32> to vector<16x64xbf16>
    %c16_33 = arith.constant 16 : index
    %c0_34 = arith.constant 0 : index
    %65 = vector.load %arg8[%c16_33, %c0_34] : memref<128x64xbf16, #tpu.memory_space<vmem>>, vector<16x64xbf16>
    tpu.vector_store %arg8[%c16_33, %c0_34], %64 {strides = array<i32>} : memref<128x64xbf16, #tpu.memory_space<vmem>>, vector<16x64xbf16>,
    %c32 = arith.constant 32 : index
    %c0_35 = arith.constant 0 : index
    %66 = vector.load %arg9[%c32, %c0_35] : memref<128x256xf32, #tpu.memory_space<vmem>>, vector<16x256xf32>
    %67 = arith.truncf %63 : vector<16x64xf32> to vector<16x64xbf16>
    %c0_36 = arith.constant 0 : index
    %c0_37 = arith.constant 0 : index
    %c0_38 = arith.constant 0 : index
    %68 = vector.load %arg3[%c0_36, %c0_37, %c0_38] : memref<3x64x256xbf16, #tpu.memory_space<vmem>>, vector<1x64x256xbf16>
    %69 = vector.shape_cast %68 : vector<1x64x256xbf16> to vector<64x256xbf16>
    %cst_39 = arith.constant dense<0.000000e+00> : vector<16x256xf32>
    %70 = tpu.matmul %67, %69, %cst_39 {dimension_numbers = #tpu.dot_dimension_numbers<[1], [0], [0], [1], [0, 0, 1, 1], [], []>} : vector<16x64xbf16>, vector<64x256xbf16>, vector<16x256xf32> -> vector<16x256xf32>
    %71 = arith.addf %66, %70 : vector<16x256xf32>
    %72 = math.tanh %71 : vector<16x256xf32>
    %73 = vector.extract_strided_slice %72 {offsets = [0, 0], sizes = [16, 128], strides = [1, 1]} : vector<16x256xf32> to vector<16x128xf32>
    %cst_40 = arith.constant 1.000000e+00 : f32
    %74 = vector.broadcast %cst_40 : f32 to vector<16x128xf32>
    %75 = arith.addf %73, %74 : vector<16x128xf32>
    %cst_41 = arith.constant 5.000000e-01 : f32
    %76 = vector.broadcast %cst_41 : f32 to vector<16x128xf32>
    %77 = arith.mulf %76, %75 : vector<16x128xf32>
    %78 = vector.extract_strided_slice %77 {offsets = [0, 0], sizes = [16, 64], strides = [1, 1]} : vector<16x128xf32> to vector<16x64xf32>
    %79 = vector.extract_strided_slice %77 {offsets = [0, 64], sizes = [16, 64], strides = [1, 1]} : vector<16x128xf32> to vector<16x64xf32>
    %80 = vector.extract_strided_slice %72 {offsets = [0, 128], sizes = [16, 64], strides = [1, 1]} : vector<16x256xf32> to vector<16x64xf32>
    %cst_42 = arith.constant 1.000000e+00 : f32
    %81 = vector.broadcast %cst_42 : f32 to vector<16x64xf32>
    %82 = arith.addf %80, %81 : vector<16x64xf32>
    %cst_43 = arith.constant 5.000000e-01 : f32
    %83 = vector.broadcast %cst_43 : f32 to vector<16x64xf32>
    %84 = arith.mulf %83, %82 : vector<16x64xf32>
    %85 = vector.extract_strided_slice %72 {offsets = [0, 192], sizes = [16, 64], strides = [1, 1]} : vector<16x256xf32> to vector<16x64xf32>
    %86 = arith.mulf %79, %61 : vector<16x64xf32>
    %87 = arith.mulf %78, %85 : vector<16x64xf32>
    %88 = arith.addf %86, %87 : vector<16x64xf32>
    %89 = math.tanh %88 : vector<16x64xf32>
    %90 = arith.mulf %84, %89 : vector<16x64xf32>
    %91 = arith.truncf %90 : vector<16x64xf32> to vector<16x64xbf16>
    %c32_44 = arith.constant 32 : index
    %c0_45 = arith.constant 0 : index
    %92 = vector.load %arg8[%c32_44, %c0_45] : memref<128x64xbf16, #tpu.memory_space<vmem>>, vector<16x64xbf16>
    tpu.vector_store %arg8[%c32_44, %c0_45], %91 {strides = array<i32>} : memref<128x64xbf16, #tpu.memory_space<vmem>>, vector<16x64xbf16>,
    %c48 = arith.constant 48 : index
    %c0_46 = arith.constant 0 : index
    %93 = vector.load %arg9[%c48, %c0_46] : memref<128x256xf32, #tpu.memory_space<vmem>>, vector<16x256xf32>
    %94 = arith.truncf %90 : vector<16x64xf32> to vector<16x64xbf16>
    %c0_47 = arith.constant 0 : index
    %c0_48 = arith.constant 0 : index
    %c0_49 = arith.constant 0 : index
    %95 = vector.load %arg3[%c0_47, %c0_48, %c0_49] : memref<3x64x256xbf16, #tpu.memory_space<vmem>>, vector<1x64x256xbf16>
    %96 = vector.shape_cast %95 : vector<1x64x256xbf16> to vector<64x256xbf16>
    %cst_50 = arith.constant dense<0.000000e+00> : vector<16x256xf32>
    %97 = tpu.matmul %94, %96, %cst_50 {dimension_numbers = #tpu.dot_dimension_numbers<[1], [0], [0], [1], [0, 0, 1, 1], [], []>} : vector<16x64xbf16>, vector<64x256xbf16>, vector<16x256xf32> -> vector<16x256xf32>
    %98 = arith.addf %93, %97 : vector<16x256xf32>
    %99 = math.tanh %98 : vector<16x256xf32>
    %100 = vector.extract_strided_slice %99 {offsets = [0, 0], sizes = [16, 128], strides = [1, 1]} : vector<16x256xf32> to vector<16x128xf32>
    %cst_51 = arith.constant 1.000000e+00 : f32
    %101 = vector.broadcast %cst_51 : f32 to vector<16x128xf32>
    %102 = arith.addf %100, %101 : vector<16x128xf32>
    %cst_52 = arith.constant 5.000000e-01 : f32
    %103 = vector.broadcast %cst_52 : f32 to vector<16x128xf32>
    %104 = arith.mulf %103, %102 : vector<16x128xf32>
    %105 = vector.extract_strided_slice %104 {offsets = [0, 0], sizes = [16, 64], strides = [1, 1]} : vector<16x128xf32> to vector<16x64xf32>
    %106 = vector.extract_strided_slice %104 {offsets = [0, 64], sizes = [16, 64], strides = [1, 1]} : vector<16x128xf32> to vector<16x64xf32>
    %107 = vector.extract_strided_slice %99 {offsets = [0, 128], sizes = [16, 64], strides = [1, 1]} : vector<16x256xf32> to vector<16x64xf32>
    %cst_53 = arith.constant 1.000000e+00 : f32
    %108 = vector.broadcast %cst_53 : f32 to vector<16x64xf32>
    %109 = arith.addf %107, %108 : vector<16x64xf32>
    %cst_54 = arith.constant 5.000000e-01 : f32
    %110 = vector.broadcast %cst_54 : f32 to vector<16x64xf32>
    %111 = arith.mulf %110, %109 : vector<16x64xf32>
    %112 = vector.extract_strided_slice %99 {offsets = [0, 192], sizes = [16, 64], strides = [1, 1]} : vector<16x256xf32> to vector<16x64xf32>
    %113 = arith.mulf %106, %88 : vector<16x64xf32>
    %114 = arith.mulf %105, %112 : vector<16x64xf32>
    %115 = arith.addf %113, %114 : vector<16x64xf32>
    %116 = math.tanh %115 : vector<16x64xf32>
    %117 = arith.mulf %111, %116 : vector<16x64xf32>
    %118 = arith.truncf %117 : vector<16x64xf32> to vector<16x64xbf16>
    %c48_55 = arith.constant 48 : index
    %c0_56 = arith.constant 0 : index
    %119 = vector.load %arg8[%c48_55, %c0_56] : memref<128x64xbf16, #tpu.memory_space<vmem>>, vector<16x64xbf16>
    tpu.vector_store %arg8[%c48_55, %c0_56], %118 {strides = array<i32>} : memref<128x64xbf16, #tpu.memory_space<vmem>>, vector<16x64xbf16>,
    %c64 = arith.constant 64 : index
    %c0_57 = arith.constant 0 : index
    %120 = vector.load %arg9[%c64, %c0_57] : memref<128x256xf32, #tpu.memory_space<vmem>>, vector<16x256xf32>
    %121 = arith.truncf %117 : vector<16x64xf32> to vector<16x64xbf16>
    %c0_58 = arith.constant 0 : index
    %c0_59 = arith.constant 0 : index
    %c0_60 = arith.constant 0 : index
    %122 = vector.load %arg3[%c0_58, %c0_59, %c0_60] : memref<3x64x256xbf16, #tpu.memory_space<vmem>>, vector<1x64x256xbf16>
    %123 = vector.shape_cast %122 : vector<1x64x256xbf16> to vector<64x256xbf16>
    %cst_61 = arith.constant dense<0.000000e+00> : vector<16x256xf32>
    %124 = tpu.matmul %121, %123, %cst_61 {dimension_numbers = #tpu.dot_dimension_numbers<[1], [0], [0], [1], [0, 0, 1, 1], [], []>} : vector<16x64xbf16>, vector<64x256xbf16>, vector<16x256xf32> -> vector<16x256xf32>
    %125 = arith.addf %120, %124 : vector<16x256xf32>
    %126 = math.tanh %125 : vector<16x256xf32>
    %127 = vector.extract_strided_slice %126 {offsets = [0, 0], sizes = [16, 128], strides = [1, 1]} : vector<16x256xf32> to vector<16x128xf32>
    %cst_62 = arith.constant 1.000000e+00 : f32
    %128 = vector.broadcast %cst_62 : f32 to vector<16x128xf32>
    %129 = arith.addf %127, %128 : vector<16x128xf32>
    %cst_63 = arith.constant 5.000000e-01 : f32
    %130 = vector.broadcast %cst_63 : f32 to vector<16x128xf32>
    %131 = arith.mulf %130, %129 : vector<16x128xf32>
    %132 = vector.extract_strided_slice %131 {offsets = [0, 0], sizes = [16, 64], strides = [1, 1]} : vector<16x128xf32> to vector<16x64xf32>
    %133 = vector.extract_strided_slice %131 {offsets = [0, 64], sizes = [16, 64], strides = [1, 1]} : vector<16x128xf32> to vector<16x64xf32>
    %134 = vector.extract_strided_slice %126 {offsets = [0, 128], sizes = [16, 64], strides = [1, 1]} : vector<16x256xf32> to vector<16x64xf32>
    %cst_64 = arith.constant 1.000000e+00 : f32
    %135 = vector.broadcast %cst_64 : f32 to vector<16x64xf32>
    %136 = arith.addf %134, %135 : vector<16x64xf32>
    %cst_65 = arith.constant 5.000000e-01 : f32
    %137 = vector.broadcast %cst_65 : f32 to vector<16x64xf32>
    %138 = arith.mulf %137, %136 : vector<16x64xf32>
    %139 = vector.extract_strided_slice %126 {offsets = [0, 192], sizes = [16, 64], strides = [1, 1]} : vector<16x256xf32> to vector<16x64xf32>
    %140 = arith.mulf %133, %115 : vector<16x64xf32>
    %141 = arith.mulf %132, %139 : vector<16x64xf32>
    %142 = arith.addf %140, %141 : vector<16x64xf32>
    %143 = math.tanh %142 : vector<16x64xf32>
    %144 = arith.mulf %138, %143 : vector<16x64xf32>
    %145 = arith.truncf %144 : vector<16x64xf32> to vector<16x64xbf16>
    %c64_66 = arith.constant 64 : index
    %c0_67 = arith.constant 0 : index
    %146 = vector.load %arg8[%c64_66, %c0_67] : memref<128x64xbf16, #tpu.memory_space<vmem>>, vector<16x64xbf16>
    tpu.vector_store %arg8[%c64_66, %c0_67], %145 {strides = array<i32>} : memref<128x64xbf16, #tpu.memory_space<vmem>>, vector<16x64xbf16>,
    %c80 = arith.constant 80 : index
    %c0_68 = arith.constant 0 : index
    %147 = vector.load %arg9[%c80, %c0_68] : memref<128x256xf32, #tpu.memory_space<vmem>>, vector<16x256xf32>
    %148 = arith.truncf %144 : vector<16x64xf32> to vector<16x64xbf16>
    %c0_69 = arith.constant 0 : index
    %c0_70 = arith.constant 0 : index
    %c0_71 = arith.constant 0 : index
    %149 = vector.load %arg3[%c0_69, %c0_70, %c0_71] : memref<3x64x256xbf16, #tpu.memory_space<vmem>>, vector<1x64x256xbf16>
    %150 = vector.shape_cast %149 : vector<1x64x256xbf16> to vector<64x256xbf16>
    %cst_72 = arith.constant dense<0.000000e+00> : vector<16x256xf32>
    %151 = tpu.matmul %148, %150, %cst_72 {dimension_numbers = #tpu.dot_dimension_numbers<[1], [0], [0], [1], [0, 0, 1, 1], [], []>} : vector<16x64xbf16>, vector<64x256xbf16>, vector<16x256xf32> -> vector<16x256xf32>
    %152 = arith.addf %147, %151 : vector<16x256xf32>
    %153 = math.tanh %152 : vector<16x256xf32>
    %154 = vector.extract_strided_slice %153 {offsets = [0, 0], sizes = [16, 128], strides = [1, 1]} : vector<16x256xf32> to vector<16x128xf32>
    %cst_73 = arith.constant 1.000000e+00 : f32
    %155 = vector.broadcast %cst_73 : f32 to vector<16x128xf32>
    %156 = arith.addf %154, %155 : vector<16x128xf32>
    %cst_74 = arith.constant 5.000000e-01 : f32
    %157 = vector.broadcast %cst_74 : f32 to vector<16x128xf32>
    %158 = arith.mulf %157, %156 : vector<16x128xf32>
    %159 = vector.extract_strided_slice %158 {offsets = [0, 0], sizes = [16, 64], strides = [1, 1]} : vector<16x128xf32> to vector<16x64xf32>
    %160 = vector.extract_strided_slice %158 {offsets = [0, 64], sizes = [16, 64], strides = [1, 1]} : vector<16x128xf32> to vector<16x64xf32>
    %161 = vector.extract_strided_slice %153 {offsets = [0, 128], sizes = [16, 64], strides = [1, 1]} : vector<16x256xf32> to vector<16x64xf32>
    %cst_75 = arith.constant 1.000000e+00 : f32
    %162 = vector.broadcast %cst_75 : f32 to vector<16x64xf32>
    %163 = arith.addf %161, %162 : vector<16x64xf32>
    %cst_76 = arith.constant 5.000000e-01 : f32
    %164 = vector.broadcast %cst_76 : f32 to vector<16x64xf32>
    %165 = arith.mulf %164, %163 : vector<16x64xf32>
    %166 = vector.extract_strided_slice %153 {offsets = [0, 192], sizes = [16, 64], strides = [1, 1]} : vector<16x256xf32> to vector<16x64xf32>
    %167 = arith.mulf %160, %142 : vector<16x64xf32>
    %168 = arith.mulf %159, %166 : vector<16x64xf32>
    %169 = arith.addf %167, %168 : vector<16x64xf32>
    %170 = math.tanh %169 : vector<16x64xf32>
    %171 = arith.mulf %165, %170 : vector<16x64xf32>
    %172 = arith.truncf %171 : vector<16x64xf32> to vector<16x64xbf16>
    %c80_77 = arith.constant 80 : index
    %c0_78 = arith.constant 0 : index
    %173 = vector.load %arg8[%c80_77, %c0_78] : memref<128x64xbf16, #tpu.memory_space<vmem>>, vector<16x64xbf16>
    tpu.vector_store %arg8[%c80_77, %c0_78], %172 {strides = array<i32>} : memref<128x64xbf16, #tpu.memory_space<vmem>>, vector<16x64xbf16>,
    %c96 = arith.constant 96 : index
    %c0_79 = arith.constant 0 : index
    %174 = vector.load %arg9[%c96, %c0_79] : memref<128x256xf32, #tpu.memory_space<vmem>>, vector<16x256xf32>
    %175 = arith.truncf %171 : vector<16x64xf32> to vector<16x64xbf16>
    %c0_80 = arith.constant 0 : index
    %c0_81 = arith.constant 0 : index
    %c0_82 = arith.constant 0 : index
    %176 = vector.load %arg3[%c0_80, %c0_81, %c0_82] : memref<3x64x256xbf16, #tpu.memory_space<vmem>>, vector<1x64x256xbf16>
    %177 = vector.shape_cast %176 : vector<1x64x256xbf16> to vector<64x256xbf16>
    %cst_83 = arith.constant dense<0.000000e+00> : vector<16x256xf32>
    %178 = tpu.matmul %175, %177, %cst_83 {dimension_numbers = #tpu.dot_dimension_numbers<[1], [0], [0], [1], [0, 0, 1, 1], [], []>} : vector<16x64xbf16>, vector<64x256xbf16>, vector<16x256xf32> -> vector<16x256xf32>
    %179 = arith.addf %174, %178 : vector<16x256xf32>
    %180 = math.tanh %179 : vector<16x256xf32>
    %181 = vector.extract_strided_slice %180 {offsets = [0, 0], sizes = [16, 128], strides = [1, 1]} : vector<16x256xf32> to vector<16x128xf32>
    %cst_84 = arith.constant 1.000000e+00 : f32
    %182 = vector.broadcast %cst_84 : f32 to vector<16x128xf32>
    %183 = arith.addf %181, %182 : vector<16x128xf32>
    %cst_85 = arith.constant 5.000000e-01 : f32
    %184 = vector.broadcast %cst_85 : f32 to vector<16x128xf32>
    %185 = arith.mulf %184, %183 : vector<16x128xf32>
    %186 = vector.extract_strided_slice %185 {offsets = [0, 0], sizes = [16, 64], strides = [1, 1]} : vector<16x128xf32> to vector<16x64xf32>
    %187 = vector.extract_strided_slice %185 {offsets = [0, 64], sizes = [16, 64], strides = [1, 1]} : vector<16x128xf32> to vector<16x64xf32>
    %188 = vector.extract_strided_slice %180 {offsets = [0, 128], sizes = [16, 64], strides = [1, 1]} : vector<16x256xf32> to vector<16x64xf32>
    %cst_86 = arith.constant 1.000000e+00 : f32
    %189 = vector.broadcast %cst_86 : f32 to vector<16x64xf32>
    %190 = arith.addf %188, %189 : vector<16x64xf32>
    %cst_87 = arith.constant 5.000000e-01 : f32
    %191 = vector.broadcast %cst_87 : f32 to vector<16x64xf32>
    %192 = arith.mulf %191, %190 : vector<16x64xf32>
    %193 = vector.extract_strided_slice %180 {offsets = [0, 192], sizes = [16, 64], strides = [1, 1]} : vector<16x256xf32> to vector<16x64xf32>
    %194 = arith.mulf %187, %169 : vector<16x64xf32>
    %195 = arith.mulf %186, %193 : vector<16x64xf32>
    %196 = arith.addf %194, %195 : vector<16x64xf32>
    %197 = math.tanh %196 : vector<16x64xf32>
    %198 = arith.mulf %192, %197 : vector<16x64xf32>
    %199 = arith.truncf %198 : vector<16x64xf32> to vector<16x64xbf16>
    %c96_88 = arith.constant 96 : index
    %c0_89 = arith.constant 0 : index
    %200 = vector.load %arg8[%c96_88, %c0_89] : memref<128x64xbf16, #tpu.memory_space<vmem>>, vector<16x64xbf16>
    tpu.vector_store %arg8[%c96_88, %c0_89], %199 {strides = array<i32>} : memref<128x64xbf16, #tpu.memory_space<vmem>>, vector<16x64xbf16>,
    %c112 = arith.constant 112 : index
    %c0_90 = arith.constant 0 : index
    %201 = vector.load %arg9[%c112, %c0_90] : memref<128x256xf32, #tpu.memory_space<vmem>>, vector<16x256xf32>
    %202 = arith.truncf %198 : vector<16x64xf32> to vector<16x64xbf16>
    %c0_91 = arith.constant 0 : index
    %c0_92 = arith.constant 0 : index
    %c0_93 = arith.constant 0 : index
    %203 = vector.load %arg3[%c0_91, %c0_92, %c0_93] : memref<3x64x256xbf16, #tpu.memory_space<vmem>>, vector<1x64x256xbf16>
    %204 = vector.shape_cast %203 : vector<1x64x256xbf16> to vector<64x256xbf16>
    %cst_94 = arith.constant dense<0.000000e+00> : vector<16x256xf32>
    %205 = tpu.matmul %202, %204, %cst_94 {dimension_numbers = #tpu.dot_dimension_numbers<[1], [0], [0], [1], [0, 0, 1, 1], [], []>} : vector<16x64xbf16>, vector<64x256xbf16>, vector<16x256xf32> -> vector<16x256xf32>
    %206 = arith.addf %201, %205 : vector<16x256xf32>
    %207 = math.tanh %206 : vector<16x256xf32>
    %208 = vector.extract_strided_slice %207 {offsets = [0, 0], sizes = [16, 128], strides = [1, 1]} : vector<16x256xf32> to vector<16x128xf32>
    %cst_95 = arith.constant 1.000000e+00 : f32
    %209 = vector.broadcast %cst_95 : f32 to vector<16x128xf32>
    %210 = arith.addf %208, %209 : vector<16x128xf32>
    %cst_96 = arith.constant 5.000000e-01 : f32
    %211 = vector.broadcast %cst_96 : f32 to vector<16x128xf32>
    %212 = arith.mulf %211, %210 : vector<16x128xf32>
    %213 = vector.extract_strided_slice %212 {offsets = [0, 0], sizes = [16, 64], strides = [1, 1]} : vector<16x128xf32> to vector<16x64xf32>
    %214 = vector.extract_strided_slice %212 {offsets = [0, 64], sizes = [16, 64], strides = [1, 1]} : vector<16x128xf32> to vector<16x64xf32>
    %215 = vector.extract_strided_slice %207 {offsets = [0, 128], sizes = [16, 64], strides = [1, 1]} : vector<16x256xf32> to vector<16x64xf32>
    %cst_97 = arith.constant 1.000000e+00 : f32
    %216 = vector.broadcast %cst_97 : f32 to vector<16x64xf32>
    %217 = arith.addf %215, %216 : vector<16x64xf32>
    %cst_98 = arith.constant 5.000000e-01 : f32
    %218 = vector.broadcast %cst_98 : f32 to vector<16x64xf32>
    %219 = arith.mulf %218, %217 : vector<16x64xf32>
    %220 = vector.extract_strided_slice %207 {offsets = [0, 192], sizes = [16, 64], strides = [1, 1]} : vector<16x256xf32> to vector<16x64xf32>
    %221 = arith.mulf %214, %196 : vector<16x64xf32>
    %222 = arith.mulf %213, %220 : vector<16x64xf32>
    %223 = arith.addf %221, %222 : vector<16x64xf32>
    %224 = math.tanh %223 : vector<16x64xf32>
    %225 = arith.mulf %219, %224 : vector<16x64xf32>
    %226 = arith.truncf %225 : vector<16x64xf32> to vector<16x64xbf16>
    %c112_99 = arith.constant 112 : index
    %c0_100 = arith.constant 0 : index
    %227 = vector.load %arg8[%c112_99, %c0_100] : memref<128x64xbf16, #tpu.memory_space<vmem>>, vector<16x64xbf16>
    tpu.vector_store %arg8[%c112_99, %c0_100], %226 {strides = array<i32>} : memref<128x64xbf16, #tpu.memory_space<vmem>>, vector<16x64xbf16>,
    %c0_101 = arith.constant 0 : index
    %c0_102 = arith.constant 0 : index
    %228 = vector.load %arg8[%c0_101, %c0_102] : memref<128x64xbf16, #tpu.memory_space<vmem>>, vector<128x64xbf16>
    %c1 = arith.constant 1 : index
    %c0_103 = arith.constant 0 : index
    %c0_104 = arith.constant 0 : index
    %229 = vector.load %arg2[%c1, %c0_103, %c0_104] : memref<3x64x256xbf16, #tpu.memory_space<vmem>>, vector<1x64x256xbf16>
    %230 = vector.shape_cast %229 : vector<1x64x256xbf16> to vector<64x256xbf16>
    %cst_105 = arith.constant dense<0.000000e+00> : vector<128x256xf32>
    %231 = tpu.matmul %228, %230, %cst_105 {dimension_numbers = #tpu.dot_dimension_numbers<[1], [0], [0], [1], [0, 0, 1, 1], [], []>} : vector<128x64xbf16>, vector<64x256xbf16>, vector<128x256xf32> -> vector<128x256xf32>
    %c1_106 = arith.constant 1 : index
    %c0_107 = arith.constant 0 : index
    %c0_108 = arith.constant 0 : index
    %232 = vector.load %arg4[%c1_106, %c0_107, %c0_108] : memref<3x1x256xf32, #tpu.memory_space<vmem>>, vector<1x1x256xf32>
    %233 = vector.shape_cast %232 : vector<1x1x256xf32> to vector<1x256xf32>
    %234 = vector.broadcast %233 : vector<1x256xf32> to vector<128x256xf32>
    %235 = arith.addf %231, %234 : vector<128x256xf32>
    %c0_109 = arith.constant 0 : index
    %c0_110 = arith.constant 0 : index
    %236 = vector.load %arg9[%c0_109, %c0_110] : memref<128x256xf32, #tpu.memory_space<vmem>>, vector<128x256xf32>
    tpu.vector_store %arg9[%c0_109, %c0_110], %235 {strides = array<i32>} : memref<128x256xf32, #tpu.memory_space<vmem>>, vector<128x256xf32>,
    %cst_111 = arith.constant 0.000000e+00 : f32
    %237 = vector.broadcast %cst_111 : f32 to vector<16x64xf32>
    %cst_112 = arith.constant 0.000000e+00 : f32
    %238 = vector.broadcast %cst_112 : f32 to vector<16x64xf32>
    %c0_113 = arith.constant 0 : index
    %c0_114 = arith.constant 0 : index
    %239 = vector.load %arg9[%c0_113, %c0_114] : memref<128x256xf32, #tpu.memory_space<vmem>>, vector<16x256xf32>
    %240 = arith.truncf %237 : vector<16x64xf32> to vector<16x64xbf16>
    %c1_115 = arith.constant 1 : index
    %c0_116 = arith.constant 0 : index
    %c0_117 = arith.constant 0 : index
    %241 = vector.load %arg3[%c1_115, %c0_116, %c0_117] : memref<3x64x256xbf16, #tpu.memory_space<vmem>>, vector<1x64x256xbf16>
    %242 = vector.shape_cast %241 : vector<1x64x256xbf16> to vector<64x256xbf16>
    %cst_118 = arith.constant dense<0.000000e+00> : vector<16x256xf32>
    %243 = tpu.matmul %240, %242, %cst_118 {dimension_numbers = #tpu.dot_dimension_numbers<[1], [0], [0], [1], [0, 0, 1, 1], [], []>} : vector<16x64xbf16>, vector<64x256xbf16>, vector<16x256xf32> -> vector<16x256xf32>
    %244 = arith.addf %239, %243 : vector<16x256xf32>
    %245 = math.tanh %244 : vector<16x256xf32>
    %246 = vector.extract_strided_slice %245 {offsets = [0, 0], sizes = [16, 128], strides = [1, 1]} : vector<16x256xf32> to vector<16x128xf32>
    %cst_119 = arith.constant 1.000000e+00 : f32
    %247 = vector.broadcast %cst_119 : f32 to vector<16x128xf32>
    %248 = arith.addf %246, %247 : vector<16x128xf32>
    %cst_120 = arith.constant 5.000000e-01 : f32
    %249 = vector.broadcast %cst_120 : f32 to vector<16x128xf32>
    %250 = arith.mulf %249, %248 : vector<16x128xf32>
    %251 = vector.extract_strided_slice %250 {offsets = [0, 0], sizes = [16, 64], strides = [1, 1]} : vector<16x128xf32> to vector<16x64xf32>
    %252 = vector.extract_strided_slice %250 {offsets = [0, 64], sizes = [16, 64], strides = [1, 1]} : vector<16x128xf32> to vector<16x64xf32>
    %253 = vector.extract_strided_slice %245 {offsets = [0, 128], sizes = [16, 64], strides = [1, 1]} : vector<16x256xf32> to vector<16x64xf32>
    %cst_121 = arith.constant 1.000000e+00 : f32
    %254 = vector.broadcast %cst_121 : f32 to vector<16x64xf32>
    %255 = arith.addf %253, %254 : vector<16x64xf32>
    %cst_122 = arith.constant 5.000000e-01 : f32
    %256 = vector.broadcast %cst_122 : f32 to vector<16x64xf32>
    %257 = arith.mulf %256, %255 : vector<16x64xf32>
    %258 = vector.extract_strided_slice %245 {offsets = [0, 192], sizes = [16, 64], strides = [1, 1]} : vector<16x256xf32> to vector<16x64xf32>
    %259 = arith.mulf %252, %238 : vector<16x64xf32>
    %260 = arith.mulf %251, %258 : vector<16x64xf32>
    %261 = arith.addf %259, %260 : vector<16x64xf32>
    %262 = math.tanh %261 : vector<16x64xf32>
    %263 = arith.mulf %257, %262 : vector<16x64xf32>
    %264 = arith.truncf %263 : vector<16x64xf32> to vector<16x64xbf16>
    %c0_123 = arith.constant 0 : index
    %c0_124 = arith.constant 0 : index
    %265 = vector.load %arg8[%c0_123, %c0_124] : memref<128x64xbf16, #tpu.memory_space<vmem>>, vector<16x64xbf16>
    tpu.vector_store %arg8[%c0_123, %c0_124], %264 {strides = array<i32>} : memref<128x64xbf16, #tpu.memory_space<vmem>>, vector<16x64xbf16>,
    %c16_125 = arith.constant 16 : index
    %c0_126 = arith.constant 0 : index
    %266 = vector.load %arg9[%c16_125, %c0_126] : memref<128x256xf32, #tpu.memory_space<vmem>>, vector<16x256xf32>
    %267 = arith.truncf %263 : vector<16x64xf32> to vector<16x64xbf16>
    %c1_127 = arith.constant 1 : index
    %c0_128 = arith.constant 0 : index
    %c0_129 = arith.constant 0 : index
    %268 = vector.load %arg3[%c1_127, %c0_128, %c0_129] : memref<3x64x256xbf16, #tpu.memory_space<vmem>>, vector<1x64x256xbf16>
    %269 = vector.shape_cast %268 : vector<1x64x256xbf16> to vector<64x256xbf16>
    %cst_130 = arith.constant dense<0.000000e+00> : vector<16x256xf32>
    %270 = tpu.matmul %267, %269, %cst_130 {dimension_numbers = #tpu.dot_dimension_numbers<[1], [0], [0], [1], [0, 0, 1, 1], [], []>} : vector<16x64xbf16>, vector<64x256xbf16>, vector<16x256xf32> -> vector<16x256xf32>
    %271 = arith.addf %266, %270 : vector<16x256xf32>
    %272 = math.tanh %271 : vector<16x256xf32>
    %273 = vector.extract_strided_slice %272 {offsets = [0, 0], sizes = [16, 128], strides = [1, 1]} : vector<16x256xf32> to vector<16x128xf32>
    %cst_131 = arith.constant 1.000000e+00 : f32
    %274 = vector.broadcast %cst_131 : f32 to vector<16x128xf32>
    %275 = arith.addf %273, %274 : vector<16x128xf32>
    %cst_132 = arith.constant 5.000000e-01 : f32
    %276 = vector.broadcast %cst_132 : f32 to vector<16x128xf32>
    %277 = arith.mulf %276, %275 : vector<16x128xf32>
    %278 = vector.extract_strided_slice %277 {offsets = [0, 0], sizes = [16, 64], strides = [1, 1]} : vector<16x128xf32> to vector<16x64xf32>
    %279 = vector.extract_strided_slice %277 {offsets = [0, 64], sizes = [16, 64], strides = [1, 1]} : vector<16x128xf32> to vector<16x64xf32>
    %280 = vector.extract_strided_slice %272 {offsets = [0, 128], sizes = [16, 64], strides = [1, 1]} : vector<16x256xf32> to vector<16x64xf32>
    %cst_133 = arith.constant 1.000000e+00 : f32
    %281 = vector.broadcast %cst_133 : f32 to vector<16x64xf32>
    %282 = arith.addf %280, %281 : vector<16x64xf32>
    %cst_134 = arith.constant 5.000000e-01 : f32
    %283 = vector.broadcast %cst_134 : f32 to vector<16x64xf32>
    %284 = arith.mulf %283, %282 : vector<16x64xf32>
    %285 = vector.extract_strided_slice %272 {offsets = [0, 192], sizes = [16, 64], strides = [1, 1]} : vector<16x256xf32> to vector<16x64xf32>
    %286 = arith.mulf %279, %261 : vector<16x64xf32>
    %287 = arith.mulf %278, %285 : vector<16x64xf32>
    %288 = arith.addf %286, %287 : vector<16x64xf32>
    %289 = math.tanh %288 : vector<16x64xf32>
    %290 = arith.mulf %284, %289 : vector<16x64xf32>
    %291 = arith.truncf %290 : vector<16x64xf32> to vector<16x64xbf16>
    %c16_135 = arith.constant 16 : index
    %c0_136 = arith.constant 0 : index
    %292 = vector.load %arg8[%c16_135, %c0_136] : memref<128x64xbf16, #tpu.memory_space<vmem>>, vector<16x64xbf16>
    tpu.vector_store %arg8[%c16_135, %c0_136], %291 {strides = array<i32>} : memref<128x64xbf16, #tpu.memory_space<vmem>>, vector<16x64xbf16>,
    %c32_137 = arith.constant 32 : index
    %c0_138 = arith.constant 0 : index
    %293 = vector.load %arg9[%c32_137, %c0_138] : memref<128x256xf32, #tpu.memory_space<vmem>>, vector<16x256xf32>
    %294 = arith.truncf %290 : vector<16x64xf32> to vector<16x64xbf16>
    %c1_139 = arith.constant 1 : index
    %c0_140 = arith.constant 0 : index
    %c0_141 = arith.constant 0 : index
    %295 = vector.load %arg3[%c1_139, %c0_140, %c0_141] : memref<3x64x256xbf16, #tpu.memory_space<vmem>>, vector<1x64x256xbf16>
    %296 = vector.shape_cast %295 : vector<1x64x256xbf16> to vector<64x256xbf16>
    %cst_142 = arith.constant dense<0.000000e+00> : vector<16x256xf32>
    %297 = tpu.matmul %294, %296, %cst_142 {dimension_numbers = #tpu.dot_dimension_numbers<[1], [0], [0], [1], [0, 0, 1, 1], [], []>} : vector<16x64xbf16>, vector<64x256xbf16>, vector<16x256xf32> -> vector<16x256xf32>
    %298 = arith.addf %293, %297 : vector<16x256xf32>
    %299 = math.tanh %298 : vector<16x256xf32>
    %300 = vector.extract_strided_slice %299 {offsets = [0, 0], sizes = [16, 128], strides = [1, 1]} : vector<16x256xf32> to vector<16x128xf32>
    %cst_143 = arith.constant 1.000000e+00 : f32
    %301 = vector.broadcast %cst_143 : f32 to vector<16x128xf32>
    %302 = arith.addf %300, %301 : vector<16x128xf32>
    %cst_144 = arith.constant 5.000000e-01 : f32
    %303 = vector.broadcast %cst_144 : f32 to vector<16x128xf32>
    %304 = arith.mulf %303, %302 : vector<16x128xf32>
    %305 = vector.extract_strided_slice %304 {offsets = [0, 0], sizes = [16, 64], strides = [1, 1]} : vector<16x128xf32> to vector<16x64xf32>
    %306 = vector.extract_strided_slice %304 {offsets = [0, 64], sizes = [16, 64], strides = [1, 1]} : vector<16x128xf32> to vector<16x64xf32>
    %307 = vector.extract_strided_slice %299 {offsets = [0, 128], sizes = [16, 64], strides = [1, 1]} : vector<16x256xf32> to vector<16x64xf32>
    %cst_145 = arith.constant 1.000000e+00 : f32
    %308 = vector.broadcast %cst_145 : f32 to vector<16x64xf32>
    %309 = arith.addf %307, %308 : vector<16x64xf32>
    %cst_146 = arith.constant 5.000000e-01 : f32
    %310 = vector.broadcast %cst_146 : f32 to vector<16x64xf32>
    %311 = arith.mulf %310, %309 : vector<16x64xf32>
    %312 = vector.extract_strided_slice %299 {offsets = [0, 192], sizes = [16, 64], strides = [1, 1]} : vector<16x256xf32> to vector<16x64xf32>
    %313 = arith.mulf %306, %288 : vector<16x64xf32>
    %314 = arith.mulf %305, %312 : vector<16x64xf32>
    %315 = arith.addf %313, %314 : vector<16x64xf32>
    %316 = math.tanh %315 : vector<16x64xf32>
    %317 = arith.mulf %311, %316 : vector<16x64xf32>
    %318 = arith.truncf %317 : vector<16x64xf32> to vector<16x64xbf16>
    %c32_147 = arith.constant 32 : index
    %c0_148 = arith.constant 0 : index
    %319 = vector.load %arg8[%c32_147, %c0_148] : memref<128x64xbf16, #tpu.memory_space<vmem>>, vector<16x64xbf16>
    tpu.vector_store %arg8[%c32_147, %c0_148], %318 {strides = array<i32>} : memref<128x64xbf16, #tpu.memory_space<vmem>>, vector<16x64xbf16>,
    %c48_149 = arith.constant 48 : index
    %c0_150 = arith.constant 0 : index
    %320 = vector.load %arg9[%c48_149, %c0_150] : memref<128x256xf32, #tpu.memory_space<vmem>>, vector<16x256xf32>
    %321 = arith.truncf %317 : vector<16x64xf32> to vector<16x64xbf16>
    %c1_151 = arith.constant 1 : index
    %c0_152 = arith.constant 0 : index
    %c0_153 = arith.constant 0 : index
    %322 = vector.load %arg3[%c1_151, %c0_152, %c0_153] : memref<3x64x256xbf16, #tpu.memory_space<vmem>>, vector<1x64x256xbf16>
    %323 = vector.shape_cast %322 : vector<1x64x256xbf16> to vector<64x256xbf16>
    %cst_154 = arith.constant dense<0.000000e+00> : vector<16x256xf32>
    %324 = tpu.matmul %321, %323, %cst_154 {dimension_numbers = #tpu.dot_dimension_numbers<[1], [0], [0], [1], [0, 0, 1, 1], [], []>} : vector<16x64xbf16>, vector<64x256xbf16>, vector<16x256xf32> -> vector<16x256xf32>
    %325 = arith.addf %320, %324 : vector<16x256xf32>
    %326 = math.tanh %325 : vector<16x256xf32>
    %327 = vector.extract_strided_slice %326 {offsets = [0, 0], sizes = [16, 128], strides = [1, 1]} : vector<16x256xf32> to vector<16x128xf32>
    %cst_155 = arith.constant 1.000000e+00 : f32
    %328 = vector.broadcast %cst_155 : f32 to vector<16x128xf32>
    %329 = arith.addf %327, %328 : vector<16x128xf32>
    %cst_156 = arith.constant 5.000000e-01 : f32
    %330 = vector.broadcast %cst_156 : f32 to vector<16x128xf32>
    %331 = arith.mulf %330, %329 : vector<16x128xf32>
    %332 = vector.extract_strided_slice %331 {offsets = [0, 0], sizes = [16, 64], strides = [1, 1]} : vector<16x128xf32> to vector<16x64xf32>
    %333 = vector.extract_strided_slice %331 {offsets = [0, 64], sizes = [16, 64], strides = [1, 1]} : vector<16x128xf32> to vector<16x64xf32>
    %334 = vector.extract_strided_slice %326 {offsets = [0, 128], sizes = [16, 64], strides = [1, 1]} : vector<16x256xf32> to vector<16x64xf32>
    %cst_157 = arith.constant 1.000000e+00 : f32
    %335 = vector.broadcast %cst_157 : f32 to vector<16x64xf32>
    %336 = arith.addf %334, %335 : vector<16x64xf32>
    %cst_158 = arith.constant 5.000000e-01 : f32
    %337 = vector.broadcast %cst_158 : f32 to vector<16x64xf32>
    %338 = arith.mulf %337, %336 : vector<16x64xf32>
    %339 = vector.extract_strided_slice %326 {offsets = [0, 192], sizes = [16, 64], strides = [1, 1]} : vector<16x256xf32> to vector<16x64xf32>
    %340 = arith.mulf %333, %315 : vector<16x64xf32>
    %341 = arith.mulf %332, %339 : vector<16x64xf32>
    %342 = arith.addf %340, %341 : vector<16x64xf32>
    %343 = math.tanh %342 : vector<16x64xf32>
    %344 = arith.mulf %338, %343 : vector<16x64xf32>
    %345 = arith.truncf %344 : vector<16x64xf32> to vector<16x64xbf16>
    %c48_159 = arith.constant 48 : index
    %c0_160 = arith.constant 0 : index
    %346 = vector.load %arg8[%c48_159, %c0_160] : memref<128x64xbf16, #tpu.memory_space<vmem>>, vector<16x64xbf16>
    tpu.vector_store %arg8[%c48_159, %c0_160], %345 {strides = array<i32>} : memref<128x64xbf16, #tpu.memory_space<vmem>>, vector<16x64xbf16>,
    %c64_161 = arith.constant 64 : index
    %c0_162 = arith.constant 0 : index
    %347 = vector.load %arg9[%c64_161, %c0_162] : memref<128x256xf32, #tpu.memory_space<vmem>>, vector<16x256xf32>
    %348 = arith.truncf %344 : vector<16x64xf32> to vector<16x64xbf16>
    %c1_163 = arith.constant 1 : index
    %c0_164 = arith.constant 0 : index
    %c0_165 = arith.constant 0 : index
    %349 = vector.load %arg3[%c1_163, %c0_164, %c0_165] : memref<3x64x256xbf16, #tpu.memory_space<vmem>>, vector<1x64x256xbf16>
    %350 = vector.shape_cast %349 : vector<1x64x256xbf16> to vector<64x256xbf16>
    %cst_166 = arith.constant dense<0.000000e+00> : vector<16x256xf32>
    %351 = tpu.matmul %348, %350, %cst_166 {dimension_numbers = #tpu.dot_dimension_numbers<[1], [0], [0], [1], [0, 0, 1, 1], [], []>} : vector<16x64xbf16>, vector<64x256xbf16>, vector<16x256xf32> -> vector<16x256xf32>
    %352 = arith.addf %347, %351 : vector<16x256xf32>
    %353 = math.tanh %352 : vector<16x256xf32>
    %354 = vector.extract_strided_slice %353 {offsets = [0, 0], sizes = [16, 128], strides = [1, 1]} : vector<16x256xf32> to vector<16x128xf32>
    %cst_167 = arith.constant 1.000000e+00 : f32
    %355 = vector.broadcast %cst_167 : f32 to vector<16x128xf32>
    %356 = arith.addf %354, %355 : vector<16x128xf32>
    %cst_168 = arith.constant 5.000000e-01 : f32
    %357 = vector.broadcast %cst_168 : f32 to vector<16x128xf32>
    %358 = arith.mulf %357, %356 : vector<16x128xf32>
    %359 = vector.extract_strided_slice %358 {offsets = [0, 0], sizes = [16, 64], strides = [1, 1]} : vector<16x128xf32> to vector<16x64xf32>
    %360 = vector.extract_strided_slice %358 {offsets = [0, 64], sizes = [16, 64], strides = [1, 1]} : vector<16x128xf32> to vector<16x64xf32>
    %361 = vector.extract_strided_slice %353 {offsets = [0, 128], sizes = [16, 64], strides = [1, 1]} : vector<16x256xf32> to vector<16x64xf32>
    %cst_169 = arith.constant 1.000000e+00 : f32
    %362 = vector.broadcast %cst_169 : f32 to vector<16x64xf32>
    %363 = arith.addf %361, %362 : vector<16x64xf32>
    %cst_170 = arith.constant 5.000000e-01 : f32
    %364 = vector.broadcast %cst_170 : f32 to vector<16x64xf32>
    %365 = arith.mulf %364, %363 : vector<16x64xf32>
    %366 = vector.extract_strided_slice %353 {offsets = [0, 192], sizes = [16, 64], strides = [1, 1]} : vector<16x256xf32> to vector<16x64xf32>
    %367 = arith.mulf %360, %342 : vector<16x64xf32>
    %368 = arith.mulf %359, %366 : vector<16x64xf32>
    %369 = arith.addf %367, %368 : vector<16x64xf32>
    %370 = math.tanh %369 : vector<16x64xf32>
    %371 = arith.mulf %365, %370 : vector<16x64xf32>
    %372 = arith.truncf %371 : vector<16x64xf32> to vector<16x64xbf16>
    %c64_171 = arith.constant 64 : index
    %c0_172 = arith.constant 0 : index
    %373 = vector.load %arg8[%c64_171, %c0_172] : memref<128x64xbf16, #tpu.memory_space<vmem>>, vector<16x64xbf16>
    tpu.vector_store %arg8[%c64_171, %c0_172], %372 {strides = array<i32>} : memref<128x64xbf16, #tpu.memory_space<vmem>>, vector<16x64xbf16>,
    %c80_173 = arith.constant 80 : index
    %c0_174 = arith.constant 0 : index
    %374 = vector.load %arg9[%c80_173, %c0_174] : memref<128x256xf32, #tpu.memory_space<vmem>>, vector<16x256xf32>
    %375 = arith.truncf %371 : vector<16x64xf32> to vector<16x64xbf16>
    %c1_175 = arith.constant 1 : index
    %c0_176 = arith.constant 0 : index
    %c0_177 = arith.constant 0 : index
    %376 = vector.load %arg3[%c1_175, %c0_176, %c0_177] : memref<3x64x256xbf16, #tpu.memory_space<vmem>>, vector<1x64x256xbf16>
    %377 = vector.shape_cast %376 : vector<1x64x256xbf16> to vector<64x256xbf16>
    %cst_178 = arith.constant dense<0.000000e+00> : vector<16x256xf32>
    %378 = tpu.matmul %375, %377, %cst_178 {dimension_numbers = #tpu.dot_dimension_numbers<[1], [0], [0], [1], [0, 0, 1, 1], [], []>} : vector<16x64xbf16>, vector<64x256xbf16>, vector<16x256xf32> -> vector<16x256xf32>
    %379 = arith.addf %374, %378 : vector<16x256xf32>
    %380 = math.tanh %379 : vector<16x256xf32>
    %381 = vector.extract_strided_slice %380 {offsets = [0, 0], sizes = [16, 128], strides = [1, 1]} : vector<16x256xf32> to vector<16x128xf32>
    %cst_179 = arith.constant 1.000000e+00 : f32
    %382 = vector.broadcast %cst_179 : f32 to vector<16x128xf32>
    %383 = arith.addf %381, %382 : vector<16x128xf32>
    %cst_180 = arith.constant 5.000000e-01 : f32
    %384 = vector.broadcast %cst_180 : f32 to vector<16x128xf32>
    %385 = arith.mulf %384, %383 : vector<16x128xf32>
    %386 = vector.extract_strided_slice %385 {offsets = [0, 0], sizes = [16, 64], strides = [1, 1]} : vector<16x128xf32> to vector<16x64xf32>
    %387 = vector.extract_strided_slice %385 {offsets = [0, 64], sizes = [16, 64], strides = [1, 1]} : vector<16x128xf32> to vector<16x64xf32>
    %388 = vector.extract_strided_slice %380 {offsets = [0, 128], sizes = [16, 64], strides = [1, 1]} : vector<16x256xf32> to vector<16x64xf32>
    %cst_181 = arith.constant 1.000000e+00 : f32
    %389 = vector.broadcast %cst_181 : f32 to vector<16x64xf32>
    %390 = arith.addf %388, %389 : vector<16x64xf32>
    %cst_182 = arith.constant 5.000000e-01 : f32
    %391 = vector.broadcast %cst_182 : f32 to vector<16x64xf32>
    %392 = arith.mulf %391, %390 : vector<16x64xf32>
    %393 = vector.extract_strided_slice %380 {offsets = [0, 192], sizes = [16, 64], strides = [1, 1]} : vector<16x256xf32> to vector<16x64xf32>
    %394 = arith.mulf %387, %369 : vector<16x64xf32>
    %395 = arith.mulf %386, %393 : vector<16x64xf32>
    %396 = arith.addf %394, %395 : vector<16x64xf32>
    %397 = math.tanh %396 : vector<16x64xf32>
    %398 = arith.mulf %392, %397 : vector<16x64xf32>
    %399 = arith.truncf %398 : vector<16x64xf32> to vector<16x64xbf16>
    %c80_183 = arith.constant 80 : index
    %c0_184 = arith.constant 0 : index
    %400 = vector.load %arg8[%c80_183, %c0_184] : memref<128x64xbf16, #tpu.memory_space<vmem>>, vector<16x64xbf16>
    tpu.vector_store %arg8[%c80_183, %c0_184], %399 {strides = array<i32>} : memref<128x64xbf16, #tpu.memory_space<vmem>>, vector<16x64xbf16>,
    %c96_185 = arith.constant 96 : index
    %c0_186 = arith.constant 0 : index
    %401 = vector.load %arg9[%c96_185, %c0_186] : memref<128x256xf32, #tpu.memory_space<vmem>>, vector<16x256xf32>
    %402 = arith.truncf %398 : vector<16x64xf32> to vector<16x64xbf16>
    %c1_187 = arith.constant 1 : index
    %c0_188 = arith.constant 0 : index
    %c0_189 = arith.constant 0 : index
    %403 = vector.load %arg3[%c1_187, %c0_188, %c0_189] : memref<3x64x256xbf16, #tpu.memory_space<vmem>>, vector<1x64x256xbf16>
    %404 = vector.shape_cast %403 : vector<1x64x256xbf16> to vector<64x256xbf16>
    %cst_190 = arith.constant dense<0.000000e+00> : vector<16x256xf32>
    %405 = tpu.matmul %402, %404, %cst_190 {dimension_numbers = #tpu.dot_dimension_numbers<[1], [0], [0], [1], [0, 0, 1, 1], [], []>} : vector<16x64xbf16>, vector<64x256xbf16>, vector<16x256xf32> -> vector<16x256xf32>
    %406 = arith.addf %401, %405 : vector<16x256xf32>
    %407 = math.tanh %406 : vector<16x256xf32>
    %408 = vector.extract_strided_slice %407 {offsets = [0, 0], sizes = [16, 128], strides = [1, 1]} : vector<16x256xf32> to vector<16x128xf32>
    %cst_191 = arith.constant 1.000000e+00 : f32
    %409 = vector.broadcast %cst_191 : f32 to vector<16x128xf32>
    %410 = arith.addf %408, %409 : vector<16x128xf32>
    %cst_192 = arith.constant 5.000000e-01 : f32
    %411 = vector.broadcast %cst_192 : f32 to vector<16x128xf32>
    %412 = arith.mulf %411, %410 : vector<16x128xf32>
    %413 = vector.extract_strided_slice %412 {offsets = [0, 0], sizes = [16, 64], strides = [1, 1]} : vector<16x128xf32> to vector<16x64xf32>
    %414 = vector.extract_strided_slice %412 {offsets = [0, 64], sizes = [16, 64], strides = [1, 1]} : vector<16x128xf32> to vector<16x64xf32>
    %415 = vector.extract_strided_slice %407 {offsets = [0, 128], sizes = [16, 64], strides = [1, 1]} : vector<16x256xf32> to vector<16x64xf32>
    %cst_193 = arith.constant 1.000000e+00 : f32
    %416 = vector.broadcast %cst_193 : f32 to vector<16x64xf32>
    %417 = arith.addf %415, %416 : vector<16x64xf32>
    %cst_194 = arith.constant 5.000000e-01 : f32
    %418 = vector.broadcast %cst_194 : f32 to vector<16x64xf32>
    %419 = arith.mulf %418, %417 : vector<16x64xf32>
    %420 = vector.extract_strided_slice %407 {offsets = [0, 192], sizes = [16, 64], strides = [1, 1]} : vector<16x256xf32> to vector<16x64xf32>
    %421 = arith.mulf %414, %396 : vector<16x64xf32>
    %422 = arith.mulf %413, %420 : vector<16x64xf32>
    %423 = arith.addf %421, %422 : vector<16x64xf32>
    %424 = math.tanh %423 : vector<16x64xf32>
    %425 = arith.mulf %419, %424 : vector<16x64xf32>
    %426 = arith.truncf %425 : vector<16x64xf32> to vector<16x64xbf16>
    %c96_195 = arith.constant 96 : index
    %c0_196 = arith.constant 0 : index
    %427 = vector.load %arg8[%c96_195, %c0_196] : memref<128x64xbf16, #tpu.memory_space<vmem>>, vector<16x64xbf16>
    tpu.vector_store %arg8[%c96_195, %c0_196], %426 {strides = array<i32>} : memref<128x64xbf16, #tpu.memory_space<vmem>>, vector<16x64xbf16>,
    %c112_197 = arith.constant 112 : index
    %c0_198 = arith.constant 0 : index
    %428 = vector.load %arg9[%c112_197, %c0_198] : memref<128x256xf32, #tpu.memory_space<vmem>>, vector<16x256xf32>
    %429 = arith.truncf %425 : vector<16x64xf32> to vector<16x64xbf16>
    %c1_199 = arith.constant 1 : index
    %c0_200 = arith.constant 0 : index
    %c0_201 = arith.constant 0 : index
    %430 = vector.load %arg3[%c1_199, %c0_200, %c0_201] : memref<3x64x256xbf16, #tpu.memory_space<vmem>>, vector<1x64x256xbf16>
    %431 = vector.shape_cast %430 : vector<1x64x256xbf16> to vector<64x256xbf16>
    %cst_202 = arith.constant dense<0.000000e+00> : vector<16x256xf32>
    %432 = tpu.matmul %429, %431, %cst_202 {dimension_numbers = #tpu.dot_dimension_numbers<[1], [0], [0], [1], [0, 0, 1, 1], [], []>} : vector<16x64xbf16>, vector<64x256xbf16>, vector<16x256xf32> -> vector<16x256xf32>
    %433 = arith.addf %428, %432 : vector<16x256xf32>
    %434 = math.tanh %433 : vector<16x256xf32>
    %435 = vector.extract_strided_slice %434 {offsets = [0, 0], sizes = [16, 128], strides = [1, 1]} : vector<16x256xf32> to vector<16x128xf32>
    %cst_203 = arith.constant 1.000000e+00 : f32
    %436 = vector.broadcast %cst_203 : f32 to vector<16x128xf32>
    %437 = arith.addf %435, %436 : vector<16x128xf32>
    %cst_204 = arith.constant 5.000000e-01 : f32
    %438 = vector.broadcast %cst_204 : f32 to vector<16x128xf32>
    %439 = arith.mulf %438, %437 : vector<16x128xf32>
    %440 = vector.extract_strided_slice %439 {offsets = [0, 0], sizes = [16, 64], strides = [1, 1]} : vector<16x128xf32> to vector<16x64xf32>
    %441 = vector.extract_strided_slice %439 {offsets = [0, 64], sizes = [16, 64], strides = [1, 1]} : vector<16x128xf32> to vector<16x64xf32>
    %442 = vector.extract_strided_slice %434 {offsets = [0, 128], sizes = [16, 64], strides = [1, 1]} : vector<16x256xf32> to vector<16x64xf32>
    %cst_205 = arith.constant 1.000000e+00 : f32
    %443 = vector.broadcast %cst_205 : f32 to vector<16x64xf32>
    %444 = arith.addf %442, %443 : vector<16x64xf32>
    %cst_206 = arith.constant 5.000000e-01 : f32
    %445 = vector.broadcast %cst_206 : f32 to vector<16x64xf32>
    %446 = arith.mulf %445, %444 : vector<16x64xf32>
    %447 = vector.extract_strided_slice %434 {offsets = [0, 192], sizes = [16, 64], strides = [1, 1]} : vector<16x256xf32> to vector<16x64xf32>
    %448 = arith.mulf %441, %423 : vector<16x64xf32>
    %449 = arith.mulf %440, %447 : vector<16x64xf32>
    %450 = arith.addf %448, %449 : vector<16x64xf32>
    %451 = math.tanh %450 : vector<16x64xf32>
    %452 = arith.mulf %446, %451 : vector<16x64xf32>
    %453 = arith.truncf %452 : vector<16x64xf32> to vector<16x64xbf16>
    %c112_207 = arith.constant 112 : index
    %c0_208 = arith.constant 0 : index
    %454 = vector.load %arg8[%c112_207, %c0_208] : memref<128x64xbf16, #tpu.memory_space<vmem>>, vector<16x64xbf16>
    tpu.vector_store %arg8[%c112_207, %c0_208], %453 {strides = array<i32>} : memref<128x64xbf16, #tpu.memory_space<vmem>>, vector<16x64xbf16>,
    %c0_209 = arith.constant 0 : index
    %c0_210 = arith.constant 0 : index
    %455 = vector.load %arg8[%c0_209, %c0_210] : memref<128x64xbf16, #tpu.memory_space<vmem>>, vector<128x64xbf16>
    %c2 = arith.constant 2 : index
    %c0_211 = arith.constant 0 : index
    %c0_212 = arith.constant 0 : index
    %456 = vector.load %arg2[%c2, %c0_211, %c0_212] : memref<3x64x256xbf16, #tpu.memory_space<vmem>>, vector<1x64x256xbf16>
    %457 = vector.shape_cast %456 : vector<1x64x256xbf16> to vector<64x256xbf16>
    %cst_213 = arith.constant dense<0.000000e+00> : vector<128x256xf32>
    %458 = tpu.matmul %455, %457, %cst_213 {dimension_numbers = #tpu.dot_dimension_numbers<[1], [0], [0], [1], [0, 0, 1, 1], [], []>} : vector<128x64xbf16>, vector<64x256xbf16>, vector<128x256xf32> -> vector<128x256xf32>
    %c2_214 = arith.constant 2 : index
    %c0_215 = arith.constant 0 : index
    %c0_216 = arith.constant 0 : index
    %459 = vector.load %arg4[%c2_214, %c0_215, %c0_216] : memref<3x1x256xf32, #tpu.memory_space<vmem>>, vector<1x1x256xf32>
    %460 = vector.shape_cast %459 : vector<1x1x256xf32> to vector<1x256xf32>
    %461 = vector.broadcast %460 : vector<1x256xf32> to vector<128x256xf32>
    %462 = arith.addf %458, %461 : vector<128x256xf32>
    %c0_217 = arith.constant 0 : index
    %c0_218 = arith.constant 0 : index
    %463 = vector.load %arg9[%c0_217, %c0_218] : memref<128x256xf32, #tpu.memory_space<vmem>>, vector<128x256xf32>
    tpu.vector_store %arg9[%c0_217, %c0_218], %462 {strides = array<i32>} : memref<128x256xf32, #tpu.memory_space<vmem>>, vector<128x256xf32>,
    %cst_219 = arith.constant 0.000000e+00 : f32
    %464 = vector.broadcast %cst_219 : f32 to vector<16x64xf32>
    %cst_220 = arith.constant 0.000000e+00 : f32
    %465 = vector.broadcast %cst_220 : f32 to vector<16x64xf32>
    %c0_221 = arith.constant 0 : index
    %c0_222 = arith.constant 0 : index
    %466 = vector.load %arg9[%c0_221, %c0_222] : memref<128x256xf32, #tpu.memory_space<vmem>>, vector<16x256xf32>
    %467 = arith.truncf %464 : vector<16x64xf32> to vector<16x64xbf16>
    %c2_223 = arith.constant 2 : index
    %c0_224 = arith.constant 0 : index
    %c0_225 = arith.constant 0 : index
    %468 = vector.load %arg3[%c2_223, %c0_224, %c0_225] : memref<3x64x256xbf16, #tpu.memory_space<vmem>>, vector<1x64x256xbf16>
    %469 = vector.shape_cast %468 : vector<1x64x256xbf16> to vector<64x256xbf16>
    %cst_226 = arith.constant dense<0.000000e+00> : vector<16x256xf32>
    %470 = tpu.matmul %467, %469, %cst_226 {dimension_numbers = #tpu.dot_dimension_numbers<[1], [0], [0], [1], [0, 0, 1, 1], [], []>} : vector<16x64xbf16>, vector<64x256xbf16>, vector<16x256xf32> -> vector<16x256xf32>
    %471 = arith.addf %466, %470 : vector<16x256xf32>
    %472 = math.tanh %471 : vector<16x256xf32>
    %473 = vector.extract_strided_slice %472 {offsets = [0, 0], sizes = [16, 128], strides = [1, 1]} : vector<16x256xf32> to vector<16x128xf32>
    %cst_227 = arith.constant 1.000000e+00 : f32
    %474 = vector.broadcast %cst_227 : f32 to vector<16x128xf32>
    %475 = arith.addf %473, %474 : vector<16x128xf32>
    %cst_228 = arith.constant 5.000000e-01 : f32
    %476 = vector.broadcast %cst_228 : f32 to vector<16x128xf32>
    %477 = arith.mulf %476, %475 : vector<16x128xf32>
    %478 = vector.extract_strided_slice %477 {offsets = [0, 0], sizes = [16, 64], strides = [1, 1]} : vector<16x128xf32> to vector<16x64xf32>
    %479 = vector.extract_strided_slice %477 {offsets = [0, 64], sizes = [16, 64], strides = [1, 1]} : vector<16x128xf32> to vector<16x64xf32>
    %480 = vector.extract_strided_slice %472 {offsets = [0, 128], sizes = [16, 64], strides = [1, 1]} : vector<16x256xf32> to vector<16x64xf32>
    %cst_229 = arith.constant 1.000000e+00 : f32
    %481 = vector.broadcast %cst_229 : f32 to vector<16x64xf32>
    %482 = arith.addf %480, %481 : vector<16x64xf32>
    %cst_230 = arith.constant 5.000000e-01 : f32
    %483 = vector.broadcast %cst_230 : f32 to vector<16x64xf32>
    %484 = arith.mulf %483, %482 : vector<16x64xf32>
    %485 = vector.extract_strided_slice %472 {offsets = [0, 192], sizes = [16, 64], strides = [1, 1]} : vector<16x256xf32> to vector<16x64xf32>
    %486 = arith.mulf %479, %465 : vector<16x64xf32>
    %487 = arith.mulf %478, %485 : vector<16x64xf32>
    %488 = arith.addf %486, %487 : vector<16x64xf32>
    %489 = math.tanh %488 : vector<16x64xf32>
    %490 = arith.mulf %484, %489 : vector<16x64xf32>
    %c16_231 = arith.constant 16 : index
    %c0_232 = arith.constant 0 : index
    %491 = vector.load %arg9[%c16_231, %c0_232] : memref<128x256xf32, #tpu.memory_space<vmem>>, vector<16x256xf32>
    %492 = arith.truncf %490 : vector<16x64xf32> to vector<16x64xbf16>
    %c2_233 = arith.constant 2 : index
    %c0_234 = arith.constant 0 : index
    %c0_235 = arith.constant 0 : index
    %493 = vector.load %arg3[%c2_233, %c0_234, %c0_235] : memref<3x64x256xbf16, #tpu.memory_space<vmem>>, vector<1x64x256xbf16>
    %494 = vector.shape_cast %493 : vector<1x64x256xbf16> to vector<64x256xbf16>
    %cst_236 = arith.constant dense<0.000000e+00> : vector<16x256xf32>
    %495 = tpu.matmul %492, %494, %cst_236 {dimension_numbers = #tpu.dot_dimension_numbers<[1], [0], [0], [1], [0, 0, 1, 1], [], []>} : vector<16x64xbf16>, vector<64x256xbf16>, vector<16x256xf32> -> vector<16x256xf32>
    %496 = arith.addf %491, %495 : vector<16x256xf32>
    %497 = math.tanh %496 : vector<16x256xf32>
    %498 = vector.extract_strided_slice %497 {offsets = [0, 0], sizes = [16, 128], strides = [1, 1]} : vector<16x256xf32> to vector<16x128xf32>
    %cst_237 = arith.constant 1.000000e+00 : f32
    %499 = vector.broadcast %cst_237 : f32 to vector<16x128xf32>
    %500 = arith.addf %498, %499 : vector<16x128xf32>
    %cst_238 = arith.constant 5.000000e-01 : f32
    %501 = vector.broadcast %cst_238 : f32 to vector<16x128xf32>
    %502 = arith.mulf %501, %500 : vector<16x128xf32>
    %503 = vector.extract_strided_slice %502 {offsets = [0, 0], sizes = [16, 64], strides = [1, 1]} : vector<16x128xf32> to vector<16x64xf32>
    %504 = vector.extract_strided_slice %502 {offsets = [0, 64], sizes = [16, 64], strides = [1, 1]} : vector<16x128xf32> to vector<16x64xf32>
    %505 = vector.extract_strided_slice %497 {offsets = [0, 128], sizes = [16, 64], strides = [1, 1]} : vector<16x256xf32> to vector<16x64xf32>
    %cst_239 = arith.constant 1.000000e+00 : f32
    %506 = vector.broadcast %cst_239 : f32 to vector<16x64xf32>
    %507 = arith.addf %505, %506 : vector<16x64xf32>
    %cst_240 = arith.constant 5.000000e-01 : f32
    %508 = vector.broadcast %cst_240 : f32 to vector<16x64xf32>
    %509 = arith.mulf %508, %507 : vector<16x64xf32>
    %510 = vector.extract_strided_slice %497 {offsets = [0, 192], sizes = [16, 64], strides = [1, 1]} : vector<16x256xf32> to vector<16x64xf32>
    %511 = arith.mulf %504, %488 : vector<16x64xf32>
    %512 = arith.mulf %503, %510 : vector<16x64xf32>
    %513 = arith.addf %511, %512 : vector<16x64xf32>
    %514 = math.tanh %513 : vector<16x64xf32>
    %515 = arith.mulf %509, %514 : vector<16x64xf32>
    %c32_241 = arith.constant 32 : index
    %c0_242 = arith.constant 0 : index
    %516 = vector.load %arg9[%c32_241, %c0_242] : memref<128x256xf32, #tpu.memory_space<vmem>>, vector<16x256xf32>
    %517 = arith.truncf %515 : vector<16x64xf32> to vector<16x64xbf16>
    %c2_243 = arith.constant 2 : index
    %c0_244 = arith.constant 0 : index
    %c0_245 = arith.constant 0 : index
    %518 = vector.load %arg3[%c2_243, %c0_244, %c0_245] : memref<3x64x256xbf16, #tpu.memory_space<vmem>>, vector<1x64x256xbf16>
    %519 = vector.shape_cast %518 : vector<1x64x256xbf16> to vector<64x256xbf16>
    %cst_246 = arith.constant dense<0.000000e+00> : vector<16x256xf32>
    %520 = tpu.matmul %517, %519, %cst_246 {dimension_numbers = #tpu.dot_dimension_numbers<[1], [0], [0], [1], [0, 0, 1, 1], [], []>} : vector<16x64xbf16>, vector<64x256xbf16>, vector<16x256xf32> -> vector<16x256xf32>
    %521 = arith.addf %516, %520 : vector<16x256xf32>
    %522 = math.tanh %521 : vector<16x256xf32>
    %523 = vector.extract_strided_slice %522 {offsets = [0, 0], sizes = [16, 128], strides = [1, 1]} : vector<16x256xf32> to vector<16x128xf32>
    %cst_247 = arith.constant 1.000000e+00 : f32
    %524 = vector.broadcast %cst_247 : f32 to vector<16x128xf32>
    %525 = arith.addf %523, %524 : vector<16x128xf32>
    %cst_248 = arith.constant 5.000000e-01 : f32
    %526 = vector.broadcast %cst_248 : f32 to vector<16x128xf32>
    %527 = arith.mulf %526, %525 : vector<16x128xf32>
    %528 = vector.extract_strided_slice %527 {offsets = [0, 0], sizes = [16, 64], strides = [1, 1]} : vector<16x128xf32> to vector<16x64xf32>
    %529 = vector.extract_strided_slice %527 {offsets = [0, 64], sizes = [16, 64], strides = [1, 1]} : vector<16x128xf32> to vector<16x64xf32>
    %530 = vector.extract_strided_slice %522 {offsets = [0, 128], sizes = [16, 64], strides = [1, 1]} : vector<16x256xf32> to vector<16x64xf32>
    %cst_249 = arith.constant 1.000000e+00 : f32
    %531 = vector.broadcast %cst_249 : f32 to vector<16x64xf32>
    %532 = arith.addf %530, %531 : vector<16x64xf32>
    %cst_250 = arith.constant 5.000000e-01 : f32
    %533 = vector.broadcast %cst_250 : f32 to vector<16x64xf32>
    %534 = arith.mulf %533, %532 : vector<16x64xf32>
    %535 = vector.extract_strided_slice %522 {offsets = [0, 192], sizes = [16, 64], strides = [1, 1]} : vector<16x256xf32> to vector<16x64xf32>
    %536 = arith.mulf %529, %513 : vector<16x64xf32>
    %537 = arith.mulf %528, %535 : vector<16x64xf32>
    %538 = arith.addf %536, %537 : vector<16x64xf32>
    %539 = math.tanh %538 : vector<16x64xf32>
    %540 = arith.mulf %534, %539 : vector<16x64xf32>
    %c48_251 = arith.constant 48 : index
    %c0_252 = arith.constant 0 : index
    %541 = vector.load %arg9[%c48_251, %c0_252] : memref<128x256xf32, #tpu.memory_space<vmem>>, vector<16x256xf32>
    %542 = arith.truncf %540 : vector<16x64xf32> to vector<16x64xbf16>
    %c2_253 = arith.constant 2 : index
    %c0_254 = arith.constant 0 : index
    %c0_255 = arith.constant 0 : index
    %543 = vector.load %arg3[%c2_253, %c0_254, %c0_255] : memref<3x64x256xbf16, #tpu.memory_space<vmem>>, vector<1x64x256xbf16>
    %544 = vector.shape_cast %543 : vector<1x64x256xbf16> to vector<64x256xbf16>
    %cst_256 = arith.constant dense<0.000000e+00> : vector<16x256xf32>
    %545 = tpu.matmul %542, %544, %cst_256 {dimension_numbers = #tpu.dot_dimension_numbers<[1], [0], [0], [1], [0, 0, 1, 1], [], []>} : vector<16x64xbf16>, vector<64x256xbf16>, vector<16x256xf32> -> vector<16x256xf32>
    %546 = arith.addf %541, %545 : vector<16x256xf32>
    %547 = math.tanh %546 : vector<16x256xf32>
    %548 = vector.extract_strided_slice %547 {offsets = [0, 0], sizes = [16, 128], strides = [1, 1]} : vector<16x256xf32> to vector<16x128xf32>
    %cst_257 = arith.constant 1.000000e+00 : f32
    %549 = vector.broadcast %cst_257 : f32 to vector<16x128xf32>
    %550 = arith.addf %548, %549 : vector<16x128xf32>
    %cst_258 = arith.constant 5.000000e-01 : f32
    %551 = vector.broadcast %cst_258 : f32 to vector<16x128xf32>
    %552 = arith.mulf %551, %550 : vector<16x128xf32>
    %553 = vector.extract_strided_slice %552 {offsets = [0, 0], sizes = [16, 64], strides = [1, 1]} : vector<16x128xf32> to vector<16x64xf32>
    %554 = vector.extract_strided_slice %552 {offsets = [0, 64], sizes = [16, 64], strides = [1, 1]} : vector<16x128xf32> to vector<16x64xf32>
    %555 = vector.extract_strided_slice %547 {offsets = [0, 128], sizes = [16, 64], strides = [1, 1]} : vector<16x256xf32> to vector<16x64xf32>
    %cst_259 = arith.constant 1.000000e+00 : f32
    %556 = vector.broadcast %cst_259 : f32 to vector<16x64xf32>
    %557 = arith.addf %555, %556 : vector<16x64xf32>
    %cst_260 = arith.constant 5.000000e-01 : f32
    %558 = vector.broadcast %cst_260 : f32 to vector<16x64xf32>
    %559 = arith.mulf %558, %557 : vector<16x64xf32>
    %560 = vector.extract_strided_slice %547 {offsets = [0, 192], sizes = [16, 64], strides = [1, 1]} : vector<16x256xf32> to vector<16x64xf32>
    %561 = arith.mulf %554, %538 : vector<16x64xf32>
    %562 = arith.mulf %553, %560 : vector<16x64xf32>
    %563 = arith.addf %561, %562 : vector<16x64xf32>
    %564 = math.tanh %563 : vector<16x64xf32>
    %565 = arith.mulf %559, %564 : vector<16x64xf32>
    %c64_261 = arith.constant 64 : index
    %c0_262 = arith.constant 0 : index
    %566 = vector.load %arg9[%c64_261, %c0_262] : memref<128x256xf32, #tpu.memory_space<vmem>>, vector<16x256xf32>
    %567 = arith.truncf %565 : vector<16x64xf32> to vector<16x64xbf16>
    %c2_263 = arith.constant 2 : index
    %c0_264 = arith.constant 0 : index
    %c0_265 = arith.constant 0 : index
    %568 = vector.load %arg3[%c2_263, %c0_264, %c0_265] : memref<3x64x256xbf16, #tpu.memory_space<vmem>>, vector<1x64x256xbf16>
    %569 = vector.shape_cast %568 : vector<1x64x256xbf16> to vector<64x256xbf16>
    %cst_266 = arith.constant dense<0.000000e+00> : vector<16x256xf32>
    %570 = tpu.matmul %567, %569, %cst_266 {dimension_numbers = #tpu.dot_dimension_numbers<[1], [0], [0], [1], [0, 0, 1, 1], [], []>} : vector<16x64xbf16>, vector<64x256xbf16>, vector<16x256xf32> -> vector<16x256xf32>
    %571 = arith.addf %566, %570 : vector<16x256xf32>
    %572 = math.tanh %571 : vector<16x256xf32>
    %573 = vector.extract_strided_slice %572 {offsets = [0, 0], sizes = [16, 128], strides = [1, 1]} : vector<16x256xf32> to vector<16x128xf32>
    %cst_267 = arith.constant 1.000000e+00 : f32
    %574 = vector.broadcast %cst_267 : f32 to vector<16x128xf32>
    %575 = arith.addf %573, %574 : vector<16x128xf32>
    %cst_268 = arith.constant 5.000000e-01 : f32
    %576 = vector.broadcast %cst_268 : f32 to vector<16x128xf32>
    %577 = arith.mulf %576, %575 : vector<16x128xf32>
    %578 = vector.extract_strided_slice %577 {offsets = [0, 0], sizes = [16, 64], strides = [1, 1]} : vector<16x128xf32> to vector<16x64xf32>
    %579 = vector.extract_strided_slice %577 {offsets = [0, 64], sizes = [16, 64], strides = [1, 1]} : vector<16x128xf32> to vector<16x64xf32>
    %580 = vector.extract_strided_slice %572 {offsets = [0, 128], sizes = [16, 64], strides = [1, 1]} : vector<16x256xf32> to vector<16x64xf32>
    %cst_269 = arith.constant 1.000000e+00 : f32
    %581 = vector.broadcast %cst_269 : f32 to vector<16x64xf32>
    %582 = arith.addf %580, %581 : vector<16x64xf32>
    %cst_270 = arith.constant 5.000000e-01 : f32
    %583 = vector.broadcast %cst_270 : f32 to vector<16x64xf32>
    %584 = arith.mulf %583, %582 : vector<16x64xf32>
    %585 = vector.extract_strided_slice %572 {offsets = [0, 192], sizes = [16, 64], strides = [1, 1]} : vector<16x256xf32> to vector<16x64xf32>
    %586 = arith.mulf %579, %563 : vector<16x64xf32>
    %587 = arith.mulf %578, %585 : vector<16x64xf32>
    %588 = arith.addf %586, %587 : vector<16x64xf32>
    %589 = math.tanh %588 : vector<16x64xf32>
    %590 = arith.mulf %584, %589 : vector<16x64xf32>
    %c80_271 = arith.constant 80 : index
    %c0_272 = arith.constant 0 : index
    %591 = vector.load %arg9[%c80_271, %c0_272] : memref<128x256xf32, #tpu.memory_space<vmem>>, vector<16x256xf32>
    %592 = arith.truncf %590 : vector<16x64xf32> to vector<16x64xbf16>
    %c2_273 = arith.constant 2 : index
    %c0_274 = arith.constant 0 : index
    %c0_275 = arith.constant 0 : index
    %593 = vector.load %arg3[%c2_273, %c0_274, %c0_275] : memref<3x64x256xbf16, #tpu.memory_space<vmem>>, vector<1x64x256xbf16>
    %594 = vector.shape_cast %593 : vector<1x64x256xbf16> to vector<64x256xbf16>
    %cst_276 = arith.constant dense<0.000000e+00> : vector<16x256xf32>
    %595 = tpu.matmul %592, %594, %cst_276 {dimension_numbers = #tpu.dot_dimension_numbers<[1], [0], [0], [1], [0, 0, 1, 1], [], []>} : vector<16x64xbf16>, vector<64x256xbf16>, vector<16x256xf32> -> vector<16x256xf32>
    %596 = arith.addf %591, %595 : vector<16x256xf32>
    %597 = math.tanh %596 : vector<16x256xf32>
    %598 = vector.extract_strided_slice %597 {offsets = [0, 0], sizes = [16, 128], strides = [1, 1]} : vector<16x256xf32> to vector<16x128xf32>
    %cst_277 = arith.constant 1.000000e+00 : f32
    %599 = vector.broadcast %cst_277 : f32 to vector<16x128xf32>
    %600 = arith.addf %598, %599 : vector<16x128xf32>
    %cst_278 = arith.constant 5.000000e-01 : f32
    %601 = vector.broadcast %cst_278 : f32 to vector<16x128xf32>
    %602 = arith.mulf %601, %600 : vector<16x128xf32>
    %603 = vector.extract_strided_slice %602 {offsets = [0, 0], sizes = [16, 64], strides = [1, 1]} : vector<16x128xf32> to vector<16x64xf32>
    %604 = vector.extract_strided_slice %602 {offsets = [0, 64], sizes = [16, 64], strides = [1, 1]} : vector<16x128xf32> to vector<16x64xf32>
    %605 = vector.extract_strided_slice %597 {offsets = [0, 128], sizes = [16, 64], strides = [1, 1]} : vector<16x256xf32> to vector<16x64xf32>
    %cst_279 = arith.constant 1.000000e+00 : f32
    %606 = vector.broadcast %cst_279 : f32 to vector<16x64xf32>
    %607 = arith.addf %605, %606 : vector<16x64xf32>
    %cst_280 = arith.constant 5.000000e-01 : f32
    %608 = vector.broadcast %cst_280 : f32 to vector<16x64xf32>
    %609 = arith.mulf %608, %607 : vector<16x64xf32>
    %610 = vector.extract_strided_slice %597 {offsets = [0, 192], sizes = [16, 64], strides = [1, 1]} : vector<16x256xf32> to vector<16x64xf32>
    %611 = arith.mulf %604, %588 : vector<16x64xf32>
    %612 = arith.mulf %603, %610 : vector<16x64xf32>
    %613 = arith.addf %611, %612 : vector<16x64xf32>
    %614 = math.tanh %613 : vector<16x64xf32>
    %615 = arith.mulf %609, %614 : vector<16x64xf32>
    %c96_281 = arith.constant 96 : index
    %c0_282 = arith.constant 0 : index
    %616 = vector.load %arg9[%c96_281, %c0_282] : memref<128x256xf32, #tpu.memory_space<vmem>>, vector<16x256xf32>
    %617 = arith.truncf %615 : vector<16x64xf32> to vector<16x64xbf16>
    %c2_283 = arith.constant 2 : index
    %c0_284 = arith.constant 0 : index
    %c0_285 = arith.constant 0 : index
    %618 = vector.load %arg3[%c2_283, %c0_284, %c0_285] : memref<3x64x256xbf16, #tpu.memory_space<vmem>>, vector<1x64x256xbf16>
    %619 = vector.shape_cast %618 : vector<1x64x256xbf16> to vector<64x256xbf16>
    %cst_286 = arith.constant dense<0.000000e+00> : vector<16x256xf32>
    %620 = tpu.matmul %617, %619, %cst_286 {dimension_numbers = #tpu.dot_dimension_numbers<[1], [0], [0], [1], [0, 0, 1, 1], [], []>} : vector<16x64xbf16>, vector<64x256xbf16>, vector<16x256xf32> -> vector<16x256xf32>
    %621 = arith.addf %616, %620 : vector<16x256xf32>
    %622 = math.tanh %621 : vector<16x256xf32>
    %623 = vector.extract_strided_slice %622 {offsets = [0, 0], sizes = [16, 128], strides = [1, 1]} : vector<16x256xf32> to vector<16x128xf32>
    %cst_287 = arith.constant 1.000000e+00 : f32
    %624 = vector.broadcast %cst_287 : f32 to vector<16x128xf32>
    %625 = arith.addf %623, %624 : vector<16x128xf32>
    %cst_288 = arith.constant 5.000000e-01 : f32
    %626 = vector.broadcast %cst_288 : f32 to vector<16x128xf32>
    %627 = arith.mulf %626, %625 : vector<16x128xf32>
    %628 = vector.extract_strided_slice %627 {offsets = [0, 0], sizes = [16, 64], strides = [1, 1]} : vector<16x128xf32> to vector<16x64xf32>
    %629 = vector.extract_strided_slice %627 {offsets = [0, 64], sizes = [16, 64], strides = [1, 1]} : vector<16x128xf32> to vector<16x64xf32>
    %630 = vector.extract_strided_slice %622 {offsets = [0, 128], sizes = [16, 64], strides = [1, 1]} : vector<16x256xf32> to vector<16x64xf32>
    %cst_289 = arith.constant 1.000000e+00 : f32
    %631 = vector.broadcast %cst_289 : f32 to vector<16x64xf32>
    %632 = arith.addf %630, %631 : vector<16x64xf32>
    %cst_290 = arith.constant 5.000000e-01 : f32
    %633 = vector.broadcast %cst_290 : f32 to vector<16x64xf32>
    %634 = arith.mulf %633, %632 : vector<16x64xf32>
    %635 = vector.extract_strided_slice %622 {offsets = [0, 192], sizes = [16, 64], strides = [1, 1]} : vector<16x256xf32> to vector<16x64xf32>
    %636 = arith.mulf %629, %613 : vector<16x64xf32>
    %637 = arith.mulf %628, %635 : vector<16x64xf32>
    %638 = arith.addf %636, %637 : vector<16x64xf32>
    %639 = math.tanh %638 : vector<16x64xf32>
    %640 = arith.mulf %634, %639 : vector<16x64xf32>
    %c112_291 = arith.constant 112 : index
    %c0_292 = arith.constant 0 : index
    %641 = vector.load %arg9[%c112_291, %c0_292] : memref<128x256xf32, #tpu.memory_space<vmem>>, vector<16x256xf32>
    %642 = arith.truncf %640 : vector<16x64xf32> to vector<16x64xbf16>
    %c2_293 = arith.constant 2 : index
    %c0_294 = arith.constant 0 : index
    %c0_295 = arith.constant 0 : index
    %643 = vector.load %arg3[%c2_293, %c0_294, %c0_295] : memref<3x64x256xbf16, #tpu.memory_space<vmem>>, vector<1x64x256xbf16>
    %644 = vector.shape_cast %643 : vector<1x64x256xbf16> to vector<64x256xbf16>
    %cst_296 = arith.constant dense<0.000000e+00> : vector<16x256xf32>
    %645 = tpu.matmul %642, %644, %cst_296 {dimension_numbers = #tpu.dot_dimension_numbers<[1], [0], [0], [1], [0, 0, 1, 1], [], []>} : vector<16x64xbf16>, vector<64x256xbf16>, vector<16x256xf32> -> vector<16x256xf32>
    %646 = arith.addf %641, %645 : vector<16x256xf32>
    %647 = math.tanh %646 : vector<16x256xf32>
    %648 = vector.extract_strided_slice %647 {offsets = [0, 0], sizes = [16, 128], strides = [1, 1]} : vector<16x256xf32> to vector<16x128xf32>
    %cst_297 = arith.constant 1.000000e+00 : f32
    %649 = vector.broadcast %cst_297 : f32 to vector<16x128xf32>
    %650 = arith.addf %648, %649 : vector<16x128xf32>
    %cst_298 = arith.constant 5.000000e-01 : f32
    %651 = vector.broadcast %cst_298 : f32 to vector<16x128xf32>
    %652 = arith.mulf %651, %650 : vector<16x128xf32>
    %653 = vector.extract_strided_slice %652 {offsets = [0, 0], sizes = [16, 64], strides = [1, 1]} : vector<16x128xf32> to vector<16x64xf32>
    %654 = vector.extract_strided_slice %652 {offsets = [0, 64], sizes = [16, 64], strides = [1, 1]} : vector<16x128xf32> to vector<16x64xf32>
    %655 = vector.extract_strided_slice %647 {offsets = [0, 128], sizes = [16, 64], strides = [1, 1]} : vector<16x256xf32> to vector<16x64xf32>
    %cst_299 = arith.constant 1.000000e+00 : f32
    %656 = vector.broadcast %cst_299 : f32 to vector<16x64xf32>
    %657 = arith.addf %655, %656 : vector<16x64xf32>
    %cst_300 = arith.constant 5.000000e-01 : f32
    %658 = vector.broadcast %cst_300 : f32 to vector<16x64xf32>
    %659 = arith.mulf %658, %657 : vector<16x64xf32>
    %660 = vector.extract_strided_slice %647 {offsets = [0, 192], sizes = [16, 64], strides = [1, 1]} : vector<16x256xf32> to vector<16x64xf32>
    %661 = arith.mulf %654, %638 : vector<16x64xf32>
    %662 = arith.mulf %653, %660 : vector<16x64xf32>
    %663 = arith.addf %661, %662 : vector<16x64xf32>
    %664 = math.tanh %663 : vector<16x64xf32>
    %665 = arith.mulf %659, %664 : vector<16x64xf32>
    %c0_301 = arith.constant 0 : index
    %c0_302 = arith.constant 0 : index
    %666 = vector.load %arg5[%c0_301, %c0_302] : memref<1x64xf32, #tpu.memory_space<vmem>>, vector<1x64xf32>
    %667 = vector.broadcast %666 : vector<1x64xf32> to vector<16x64xf32>
    %668 = arith.mulf %665, %667 : vector<16x64xf32>
    %cst_303 = arith.constant dense<0.000000e+00> : vector<16xf32>
    %669 = vector.multi_reduction <add>, %668, %cst_303 [1] : vector<16x64xf32> to vector<16xf32>
    %670 = vector.shape_cast %669 : vector<16xf32> to vector<16x1xf32>
    %c0_304 = arith.constant 0 : index
    %c0_305 = arith.constant 0 : index
    %671 = memref.load %arg6[%c0_304, %c0_305] : memref<1x1xf32, #tpu.memory_space<smem>>
    %672 = vector.broadcast %671 : f32 to vector<16x1xf32>
    %673 = arith.addf %670, %672 : vector<16x1xf32>
    %c0_306 = arith.constant 0 : index
    %c0_307 = arith.constant 0 : index
    %c0_308 = arith.constant 0 : index
    %674 = vector.load %arg7[%c0_306, %c0_307, %c0_308] : memref<1x16x1xf32, #tpu.memory_space<vmem>>, vector<1x16x1xf32>
    %675 = vector.shape_cast %674 : vector<1x16x1xf32> to vector<16x1xf32>
    %676 = vector.shape_cast %673 : vector<16x1xf32> to vector<1x16x1xf32>
    tpu.vector_store %arg7[%c0_306, %c0_307, %c0_308], %676 {strides = array<i32>} : memref<1x16x1xf32, #tpu.memory_space<vmem>>, vector<1x16x1xf32>,
    return
  }
  func.func @transform_0(%arg0: i32) -> (i32, i32, i32) {
    %c0_i32 = arith.constant 0 : i32
    %c0_i32_0 = arith.constant 0 : i32
    %c0_i32_1 = arith.constant 0 : i32
    return %arg0, %c0_i32, %c0_i32_0 : i32, i32, i32
  }
  func.func @transform_1(%arg0: i32) -> (i32, i32, i32) {
    %c0_i32 = arith.constant 0 : i32
    %c0_i32_0 = arith.constant 0 : i32
    %c0_i32_1 = arith.constant 0 : i32
    %c0_i32_2 = arith.constant 0 : i32
    return %c0_i32, %c0_i32_0, %c0_i32_1 : i32, i32, i32
  }
  func.func @transform_2(%arg0: i32) -> (i32, i32, i32) {
    %c0_i32 = arith.constant 0 : i32
    %c0_i32_0 = arith.constant 0 : i32
    %c0_i32_1 = arith.constant 0 : i32
    %c0_i32_2 = arith.constant 0 : i32
    return %c0_i32, %c0_i32_0, %c0_i32_1 : i32, i32, i32
  }
  func.func @transform_3(%arg0: i32) -> (i32, i32, i32) {
    %c0_i32 = arith.constant 0 : i32
    %c0_i32_0 = arith.constant 0 : i32
    %c0_i32_1 = arith.constant 0 : i32
    %c0_i32_2 = arith.constant 0 : i32
    return %c0_i32, %c0_i32_0, %c0_i32_1 : i32, i32, i32
  }
  func.func @transform_4(%arg0: i32) -> (i32, i32) {
    %c0_i32 = arith.constant 0 : i32
    %c0_i32_0 = arith.constant 0 : i32
    %c0_i32_1 = arith.constant 0 : i32
    return %c0_i32, %c0_i32_0 : i32, i32
  }
  func.func @transform_5(%arg0: i32) -> (i32, i32) {
    %c0_i32 = arith.constant 0 : i32
    %c0_i32_0 = arith.constant 0 : i32
    %c0_i32_1 = arith.constant 0 : i32
    return %c0_i32, %c0_i32_0 : i32, i32
  }
  func.func @transform_6(%arg0: i32) -> (i32, i32, i32) {
    %c0_i32 = arith.constant 0 : i32
    %c0_i32_0 = arith.constant 0 : i32
    %c0_i32_1 = arith.constant 0 : i32
    return %arg0, %c0_i32, %c0_i32_0 : i32, i32, i32
  }
}

</mosaic_0001>

<llo_original>
// kernel: lstm_forward.1
$region0: #{lstm_forward.1}
  #allocation0 [shape = 'u32[]', space=smem, size = 0x4, offset = 0x4, fixed_abs, tag = 'smem constant byte address 0x4 - core index']
  #allocation1 [shape = 'u32[144,128]{1,0:T(1,128)}', space=vmem, size = 0x12000, scoped, tag = 'internal scratch']
  #allocation2 [shape = 'bf16[128,64]{1,0:T(8,128)(2,1)}', space=vmem, size = 0x8000, scoped, tag = 'scratch operand']
  #allocation3 [shape = 'f32[128,256]{1,0:T(8,128)}', space=vmem, size = 0x20000, scoped, tag = 'scratch operand']
  #allocation4 [shape = 'f32[1,1]{1,0:T(1,128)S(6)}', space=smem, size = 0x200, scoped, tag = 'scoped memory for lstm_forward.1']
  %s0 = inlined_call_operand.vmem [shape: bf16[1,128,64], index: 0, kind: input, shape index: {}]
  %s1 = inlined_call_operand.vmem [shape: bf16[3,64,256], index: 1, kind: input, shape index: {}]
  %s2 = inlined_call_operand.vmem [shape: bf16[3,64,256], index: 2, kind: input, shape index: {}]
  %s3 = inlined_call_operand.vmem [shape: f32[3,1,256], index: 3, kind: input, shape index: {}]
  %s4 = inlined_call_operand.vmem [shape: f32[1,64], index: 4, kind: input, shape index: {}]
  %s5 = inlined_call_operand.<no memory space> [shape: f32[1,1], index: 5, kind: input, shape index: {}]
  %s6 = inlined_call_operand.vmem [shape: f32[1,16,1], index: 6, kind: output, shape index: {}]
  %s7 = sld [smem:[#allocation0]]
  $region34: #{lstm_forward.1} parent=0
    _
  %s9 = ssub.s32 1, %s7
  %s10 = scalar_select 0, %s9, %s7
  %11 = sst [smem:[#allocation4]] %s5
  // Predicated region
  $region2: #{lstm_forward.1} parent=0 // pred_check
    _
  $region3: #{lstm_forward.1} parent=0 // pred_check_branch
    %13 = sbr.rel (0) target = $region5
  $region4: #{lstm_forward.1} parent=0 // pred_region
    _
  $region5: #{lstm_forward.1} parent=0 // pred_fallthru
    _
  // Predicated region
  $region6: #{lstm_forward.1} parent=0 // pred_check
    _
  $region7: #{lstm_forward.1} parent=0 // pred_check_branch
    %15 = sbr.rel (0) target = $region9
  $region8: #{lstm_forward.1} parent=0 // pred_region
    _
  $region9: #{lstm_forward.1} parent=0 // pred_fallthru
    _
  // Predicated region
  $region10: #{lstm_forward.1} parent=0 // pred_check
    _
  $region11: #{lstm_forward.1} parent=0 // pred_check_branch
    %17 = sbr.rel (0) target = $region13
  $region12: #{lstm_forward.1} parent=0 // pred_region
    _
  $region13: #{lstm_forward.1} parent=0 // pred_fallthru
    _
  // Predicated region
  $region14: #{lstm_forward.1} parent=0 // pred_check
    _
  $region15: #{lstm_forward.1} parent=0 // pred_check_branch
    %19 = sbr.rel (0) target = $region17
  $region16: #{lstm_forward.1} parent=0 // pred_region
    _
  $region17: #{lstm_forward.1} parent=0 // pred_fallthru
    _
  // Predicated region
  $region18: #{lstm_forward.1} parent=0 // pred_check
    _
  $region19: #{lstm_forward.1} parent=0 // pred_check_branch
    %21 = sbr.rel (0) target = $region21
  $region20: #{lstm_forward.1} parent=0 // pred_region
    _
  $region21: #{lstm_forward.1} parent=0 // pred_fallthru
    _
  // Predicated region
  $region22: #{lstm_forward.1} parent=0 // pred_check
    _
  $region23: #{lstm_forward.1} parent=0 // pred_check_branch
    %23 = sbr.rel (0) target = $region25
  $region24: #{lstm_forward.1} parent=0 // pred_region
    _
  $region25: #{lstm_forward.1} parent=0 // pred_fallthru
    _
  %v25 = vld [vmem:[%s0] sm:$0xf]
  %v26 = vld [vmem:[%s0 + $0x4] sm:$0xf]
  %v27 = vld [vmem:[%s0 + $0x8] sm:$0xf]
  %v28 = vld [vmem:[%s0 + $0xc] sm:$0xf]
  %v29 = vld [vmem:[%s0 + $0x10] sm:$0xf]
  %v30 = vld [vmem:[%s0 + $0x14] sm:$0xf]
  %v31 = vld [vmem:[%s0 + $0x18] sm:$0xf]
  %v32 = vld [vmem:[%s0 + $0x1c] sm:$0xf]
  %v33 = vld [vmem:[%s0 + $0x20] sm:$0xf]
  %v34 = vld [vmem:[%s0 + $0x24] sm:$0xf]
  %v35 = vld [vmem:[%s0 + $0x28] sm:$0xf]
  %v36 = vld [vmem:[%s0 + $0x2c] sm:$0xf]
  %v37 = vld [vmem:[%s0 + $0x30] sm:$0xf]
  %v38 = vld [vmem:[%s0 + $0x34] sm:$0xf]
  %v39 = vld [vmem:[%s0 + $0x38] sm:$0xf]
  %v40 = vld [vmem:[%s0 + $0x3c] sm:$0xf]
  %v41 = vld [vmem:[%s1] sm:$0xff]
  %v42 = vld [vmem:[%s1 + $0x8] sm:$0xff]
  %v43 = vld [vmem:[%s1 + $0x10] sm:$0xff]
  %v44 = vld [vmem:[%s1 + $0x18] sm:$0xff]
  %v45 = vld [vmem:[%s1 + $0x20] sm:$0xff]
  %v46 = vld [vmem:[%s1 + $0x28] sm:$0xff]
  %v47 = vld [vmem:[%s1 + $0x30] sm:$0xff]
  %v48 = vld [vmem:[%s1 + $0x38] sm:$0xff]
  %v49 = vld [vmem:[%s3] sm:$0x3]
  %v51 = vlaneseq
  %v52 = vshrl.u32 %v51, 7
  %v53 = vsub.s32 0, %v52
  %v54 = vrot.slane %v49, %v53
  %v55 = vlaneseq
  %v56 = vshrl.u32 %v55, 7
  %v57 = vsub.s32 1, %v56
  %v58 = vrot.slane %v49, %v57
  %v77 = vunpack.c.l.b16 %v25
  %v78 = vunpack.c.l.b16 %v26
  %v79 = vunpack.c.l.b16 %v27
  %v80 = vunpack.c.l.b16 %v28
  %v81 = vunpack.c.l.b16 %v29
  %v82 = vunpack.c.l.b16 %v30
  %v83 = vunpack.c.l.b16 %v31
  %v84 = vunpack.c.l.b16 %v32
  %v85 = vunpack.c.l.b16 %v33
  %v86 = vunpack.c.l.b16 %v34
  %v87 = vunpack.c.l.b16 %v35
  %v88 = vunpack.c.l.b16 %v36
  %v89 = vunpack.c.l.b16 %v37
  %v90 = vunpack.c.l.b16 %v38
  %v91 = vunpack.c.l.b16 %v39
  %v92 = vunpack.c.l.b16 %v40
  %v93 = vpack.c.b16 %v78, %v77
  %v94 = vpack.c.b16 %v80, %v79
  %v95 = vpack.c.b16 %v82, %v81
  %v96 = vpack.c.b16 %v84, %v83
  %v97 = vpack.c.b16 %v86, %v85
  %v98 = vpack.c.b16 %v88, %v87
  %v99 = vpack.c.b16 %v90, %v89
  %v100 = vpack.c.b16 %v92, %v91
  %v109 = vunpack.c.l.b16 %v41
  %v110 = vunpack.c.h.b16 %v41
  %v111 = vunpack.c.l.b16 %v42
  %v112 = vunpack.c.h.b16 %v42
  %v113 = vunpack.c.l.b16 %v43
  %v114 = vunpack.c.h.b16 %v43
  %v115 = vunpack.c.l.b16 %v44
  %v116 = vunpack.c.h.b16 %v44
  %v117 = vunpack.c.l.b16 %v45
  %v118 = vunpack.c.h.b16 %v45
  %v119 = vunpack.c.l.b16 %v46
  %v120 = vunpack.c.h.b16 %v46
  %v121 = vunpack.c.l.b16 %v47
  %v122 = vunpack.c.h.b16 %v47
  %v123 = vunpack.c.l.b16 %v48
  %v124 = vunpack.c.h.b16 %v48
  %v125 = vpack.c.b16 %v111, %v109
  %v126 = vpack.c.b16 %v112, %v110
  %v127 = vpack.c.b16 %v115, %v113
  %v128 = vpack.c.b16 %v116, %v114
  %v129 = vpack.c.b16 %v119, %v117
  %v130 = vpack.c.b16 %v120, %v118
  %v131 = vpack.c.b16 %v123, %v121
  %v132 = vpack.c.b16 %v124, %v122
  %vm141 = vcmask 523264
  %v143 = vsel %vm141, %v93, 0
  %v146 = vsel %vm141, %v94, 0
  %v149 = vsel %vm141, %v95, 0
  %v152 = vsel %vm141, %v96, 0
  %v155 = vsel %vm141, %v97, 0
  %v158 = vsel %vm141, %v98, 0
  %v161 = vsel %vm141, %v99, 0
  %v164 = vsel %vm141, %v100, 0
  %166 = vmatprep.subr.bf16.mxu0 0
  %167 = vmatpush1.bf16.msra.mxu0 0
  %168 = vmatprep.subr.bf16.mxu0 0
  %169 = vmatpush1.bf16.msra.mxu0 0
  %170 = vmatprep.subr.bf16.mxu0 0
  %171 = vmatpush1.bf16.msra.mxu0 0
  %172 = vmatprep.subr.bf16.mxu0 0
  %173 = vmatpush1.bf16.msra.mxu0 0
  %174 = vmatprep.subr.bf16.mxu0 %v132
  %175 = vmatpush1.bf16.msra.mxu0 %v131
  %176 = vmatprep.subr.bf16.mxu0 %v130
  %177 = vmatpush1.bf16.msra.mxu0 %v129
  %178 = vmatprep.subr.bf16.mxu0 %v128
  %179 = vmatpush1.bf16.msra.mxu0 %v127
  %180 = vmatprep.subr.bf16.mxu0 %v126
  %181 = vmatpush1.bf16.msra.mxu0 %v125
  %182 = vmatprep.subr.bf16.mxu0 0
  %183 = vmatpush2.bf16.msra.mxu0 0
  %184 = vmatprep.subr.bf16.mxu0 0
  %185 = vmatpush2.bf16.msra.mxu0 0
  %186 = vmatprep.subr.bf16.mxu0 0
  %187 = vmatpush2.bf16.msra.mxu0 0
  %188 = vmatprep.subr.bf16.mxu0 0
  %189 = vmatpush2.bf16.msra.mxu0 0
  %190 = vmatprep.subr.bf16.mxu0 0
  %191 = vmatpush2.bf16.msra.mxu0 0
  %192 = vmatprep.subr.bf16.mxu0 0
  %193 = vmatpush2.bf16.msra.mxu0 0
  %194 = vmatprep.subr.bf16.mxu0 0
  %195 = vmatpush2.bf16.msra.mxu0 0
  %196 = vmatprep.subr.bf16.mxu0 0
  %197 = vmatpush2.bf16.msra.mxu0 0
  %198 = vmatprep.mubr.bf16.mxu0 0
  %199 = vmatmul.mubr.bf16.gmra.mxu0 %v143
  %v200 = vpop.f32.mrf.mxu0
  %v201 = vadd.f32 %v54, %v200
  %v202 = vpop.f32.mrf.mxu0
  %v203 = vadd.f32 %v58, %v202
  %v204 = vpop.f32.mrf.mxu0
  %v205 = vadd.f32 %v54, %v204
  %v206 = vpop.f32.mrf.mxu0
  %v207 = vadd.f32 %v58, %v206
  %208 = vmatprep.mubr.bf16.mxu0 0
  %209 = vmatmul.mubr.bf16.gmra.mxu0 %v146
  %v210 = vpop.f32.mrf.mxu0
  %v211 = vadd.f32 %v54, %v210
  %v212 = vpop.f32.mrf.mxu0
  %v213 = vadd.f32 %v58, %v212
  %v214 = vpop.f32.mrf.mxu0
  %v215 = vadd.f32 %v54, %v214
  %v216 = vpop.f32.mrf.mxu0
  %v217 = vadd.f32 %v58, %v216
  %218 = vmatprep.mubr.bf16.mxu0 0
  %219 = vmatmul.mubr.bf16.gmra.mxu0 %v149
  %v220 = vpop.f32.mrf.mxu0
  %v221 = vadd.f32 %v54, %v220
  %v222 = vpop.f32.mrf.mxu0
  %v223 = vadd.f32 %v58, %v222
  %v224 = vpop.f32.mrf.mxu0
  %v225 = vadd.f32 %v54, %v224
  %v226 = vpop.f32.mrf.mxu0
  %v227 = vadd.f32 %v58, %v226
  %228 = vmatprep.mubr.bf16.mxu0 0
  %229 = vmatmul.mubr.bf16.gmra.mxu0 %v152
  %v230 = vpop.f32.mrf.mxu0
  %v231 = vadd.f32 %v54, %v230
  %v232 = vpop.f32.mrf.mxu0
  %v233 = vadd.f32 %v58, %v232
  %v234 = vpop.f32.mrf.mxu0
  %v235 = vadd.f32 %v54, %v234
  %v236 = vpop.f32.mrf.mxu0
  %v237 = vadd.f32 %v58, %v236
  %238 = vmatprep.mubr.bf16.mxu0 0
  %239 = vmatmul.mubr.bf16.gmra.mxu0 %v155
  %v240 = vpop.f32.mrf.mxu0
  %v241 = vadd.f32 %v54, %v240
  %v242 = vpop.f32.mrf.mxu0
  %v243 = vadd.f32 %v58, %v242
  %v244 = vpop.f32.mrf.mxu0
  %v245 = vadd.f32 %v54, %v244
  %v246 = vpop.f32.mrf.mxu0
  %v247 = vadd.f32 %v58, %v246
  %248 = vmatprep.mubr.bf16.mxu0 0
  %249 = vmatmul.mubr.bf16.gmra.mxu0 %v158
  %v250 = vpop.f32.mrf.mxu0
  %v251 = vadd.f32 %v54, %v250
  %v252 = vpop.f32.mrf.mxu0
  %v253 = vadd.f32 %v58, %v252
  %v254 = vpop.f32.mrf.mxu0
  %v255 = vadd.f32 %v54, %v254
  %v256 = vpop.f32.mrf.mxu0
  %v257 = vadd.f32 %v58, %v256
  %258 = vmatprep.mubr.bf16.mxu0 0
  %259 = vmatmul.mubr.bf16.gmra.mxu0 %v161
  %v260 = vpop.f32.mrf.mxu0
  %v261 = vadd.f32 %v54, %v260
  %v262 = vpop.f32.mrf.mxu0
  %v263 = vadd.f32 %v58, %v262
  %v264 = vpop.f32.mrf.mxu0
  %v265 = vadd.f32 %v54, %v264
  %v266 = vpop.f32.mrf.mxu0
  %v267 = vadd.f32 %v58, %v266
  %268 = vmatprep.mubr.bf16.mxu0 0
  %269 = vmatmul.mubr.bf16.gmra.mxu0 %v164
  %v270 = vpop.f32.mrf.mxu0
  %v271 = vadd.f32 %v54, %v270
  %v272 = vpop.f32.mrf.mxu0
  %v273 = vadd.f32 %v58, %v272
  %v274 = vpop.f32.mrf.mxu0
  %v275 = vadd.f32 %v54, %v274
  %v276 = vpop.f32.mrf.mxu0
  %v277 = vadd.f32 %v58, %v276
  %278 = vdwg.mxu0
  %279 = vst [vmem:[#allocation3] sm:$0xff] %v201
  %280 = vst [vmem:[#allocation3 + $0x8] sm:$0xff] %v203
  %281 = vst [vmem:[#allocation3 + $0x10] sm:$0xff] %v205
  %282 = vst [vmem:[#allocation3 + $0x18] sm:$0xff] %v207
  %283 = vst [vmem:[#allocation3 + $0x20] sm:$0xff] %v211
  %284 = vst [vmem:[#allocation3 + $0x28] sm:$0xff] %v213
  %285 = vst [vmem:[#allocation3 + $0x30] sm:$0xff] %v215
  %286 = vst [vmem:[#allocation3 + $0x38] sm:$0xff] %v217
  %287 = vst [vmem:[#allocation3 + $0x40] sm:$0xff] %v221
  %288 = vst [vmem:[#allocation3 + $0x48] sm:$0xff] %v223
  %289 = vst [vmem:[#allocation3 + $0x50] sm:$0xff] %v225
  %290 = vst [vmem:[#allocation3 + $0x58] sm:$0xff] %v227
  %291 = vst [vmem:[#allocation3 + $0x60] sm:$0xff] %v231
  %292 = vst [vmem:[#allocation3 + $0x68] sm:$0xff] %v233
  %293 = vst [vmem:[#allocation3 + $0x70] sm:$0xff] %v235
  %294 = vst [vmem:[#allocation3 + $0x78] sm:$0xff] %v237
  %295 = vst [vmem:[#allocation3 + $0x80] sm:$0xff] %v241
  %296 = vst [vmem:[#allocation3 + $0x88] sm:$0xff] %v243
  %297 = vst [vmem:[#allocation3 + $0x90] sm:$0xff] %v245
  %298 = vst [vmem:[#allocation3 + $0x98] sm:$0xff] %v247
  %299 = vst [vmem:[#allocation3 + $0xa0] sm:$0xff] %v251
  %300 = vst [vmem:[#allocation3 + $0xa8] sm:$0xff] %v253
  %301 = vst [vmem:[#allocation3 + $0xb0] sm:$0xff] %v255
  %302 = vst [vmem:[#allocation3 + $0xb8] sm:$0xff] %v257
  %303 = vst [vmem:[#allocation3 + $0xc0] sm:$0xff] %v261
  %304 = vst [vmem:[#allocation3 + $0xc8] sm:$0xff] %v263
  %305 = vst [vmem:[#allocation3 + $0xd0] sm:$0xff] %v265
  %306 = vst [vmem:[#allocation3 + $0xd8] sm:$0xff] %v267
  %307 = vst [vmem:[#allocation3 + $0xe0] sm:$0xff] %v271
  %308 = vst [vmem:[#allocation3 + $0xe8] sm:$0xff] %v273
  %309 = vst [vmem:[#allocation3 + $0xf0] sm:$0xff] %v275
  %310 = vst [vmem:[#allocation3 + $0xf8] sm:$0xff] %v277
  %v311 = vld [vmem:[#allocation3] sm:$0xff]
  %v312 = vld [vmem:[#allocation3 + $0x8] sm:$0xff]
  %v313 = vld [vmem:[#allocation3 + $0x10] sm:$0xff]
  %v314 = vld [vmem:[#allocation3 + $0x18] sm:$0xff]
  %v315 = vld [vmem:[%s2] sm:$0xff]
  %v316 = vld [vmem:[%s2 + $0x8] sm:$0xff]
  %v317 = vld [vmem:[%s2 + $0x10] sm:$0xff]
  %v318 = vld [vmem:[%s2 + $0x18] sm:$0xff]
  %v319 = vld [vmem:[%s2 + $0x20] sm:$0xff]
  %v320 = vld [vmem:[%s2 + $0x28] sm:$0xff]
  %v321 = vld [vmem:[%s2 + $0x30] sm:$0xff]
  %v322 = vld [vmem:[%s2 + $0x38] sm:$0xff]
  %v331 = vunpack.c.l.b16 %v315
  %v332 = vunpack.c.h.b16 %v315
  %v333 = vunpack.c.l.b16 %v316
  %v334 = vunpack.c.h.b16 %v316
  %v335 = vunpack.c.l.b16 %v317
  %v336 = vunpack.c.h.b16 %v317
  %v337 = vunpack.c.l.b16 %v318
  %v338 = vunpack.c.h.b16 %v318
  %v339 = vunpack.c.l.b16 %v319
  %v340 = vunpack.c.h.b16 %v319
  %v341 = vunpack.c.l.b16 %v320
  %v342 = vunpack.c.h.b16 %v320
  %v343 = vunpack.c.l.b16 %v321
  %v344 = vunpack.c.h.b16 %v321
  %v345 = vunpack.c.l.b16 %v322
  %v346 = vunpack.c.h.b16 %v322
  %v347 = vpack.c.b16 %v333, %v331
  %v348 = vpack.c.b16 %v334, %v332
  %v349 = vpack.c.b16 %v337, %v335
  %v350 = vpack.c.b16 %v338, %v336
  %v351 = vpack.c.b16 %v341, %v339
  %v352 = vpack.c.b16 %v342, %v340
  %v353 = vpack.c.b16 %v345, %v343
  %v354 = vpack.c.b16 %v346, %v344
  %v364 = vsel %vm141, 0, 0
  %366 = vmatprep.subr.bf16.mxu0 0
  %367 = vmatpush1.bf16.msra.mxu0 0
  %368 = vmatprep.subr.bf16.mxu0 0
  %369 = vmatpush1.bf16.msra.mxu0 0
  %370 = vmatprep.subr.bf16.mxu0 0
  %371 = vmatpush1.bf16.msra.mxu0 0
  %372 = vmatprep.subr.bf16.mxu0 0
  %373 = vmatpush1.bf16.msra.mxu0 0
  %374 = vmatprep.subr.bf16.mxu0 %v354
  %375 = vmatpush1.bf16.msra.mxu0 %v353
  %376 = vmatprep.subr.bf16.mxu0 %v352
  %377 = vmatpush1.bf16.msra.mxu0 %v351
  %378 = vmatprep.subr.bf16.mxu0 %v350
  %379 = vmatpush1.bf16.msra.mxu0 %v349
  %380 = vmatprep.subr.bf16.mxu0 %v348
  %381 = vmatpush1.bf16.msra.mxu0 %v347
  %382 = vmatprep.subr.bf16.mxu0 0
  %383 = vmatpush2.bf16.msra.mxu0 0
  %384 = vmatprep.subr.bf16.mxu0 0
  %385 = vmatpush2.bf16.msra.mxu0 0
  %386 = vmatprep.subr.bf16.mxu0 0
  %387 = vmatpush2.bf16.msra.mxu0 0
  %388 = vmatprep.subr.bf16.mxu0 0
  %389 = vmatpush2.bf16.msra.mxu0 0
  %390 = vmatprep.subr.bf16.mxu0 0
  %391 = vmatpush2.bf16.msra.mxu0 0
  %392 = vmatprep.subr.bf16.mxu0 0
  %393 = vmatpush2.bf16.msra.mxu0 0
  %394 = vmatprep.subr.bf16.mxu0 0
  %395 = vmatpush2.bf16.msra.mxu0 0
  %396 = vmatprep.subr.bf16.mxu0 0
  %397 = vmatpush2.bf16.msra.mxu0 0
  %398 = vmatprep.mubr.bf16.mxu0 0
  %399 = vmatmul.mubr.bf16.gmra.mxu0 %v364
  %v400 = vpop.f32.mrf.mxu0
  %v401 = vadd.f32 0.0, %v400
  %v402 = vpop.f32.mrf.mxu0
  %v403 = vadd.f32 0.0, %v402
  %v404 = vpop.f32.mrf.mxu0
  %v405 = vadd.f32 0.0, %v404
  %v406 = vpop.f32.mrf.mxu0
  %v407 = vadd.f32 0.0, %v406
  %408 = vdwg.mxu0
  %v409 = vadd.f32 %v311, %v401
  %v410 = vadd.f32 %v312, %v403
  %v411 = vadd.f32 %v313, %v405
  %v412 = vadd.f32 %v314, %v407
  %v413 = vtanh.pop %v409
  %v414 = vtanh.pop %v410
  %v415 = vtanh.pop %v411
  %v416 = vtanh.pop %v412
  %v417 = vadd.f32 %v413, 1.0
  %v418 = vadd.f32 %v415, 1.0
  %v419 = vmul.f32 %v417, 0.5
  %v420 = vmul.f32 %v418, 0.5
  %v421 = vadd.f32 %v414, 1.0
  %v422 = vadd.f32 %v416, 1.0
  %v423 = vmul.f32 %v421, 0.5
  %v424 = vmul.f32 %v422, 0.5
  %v425 = vmul.f32 %v419, 0.0
  %v426 = vmul.f32 %v420, 0.0
  %429 = vrot.lane.b32.xlu0 %v414, 64
  %v430 = vpop.permute.xlu0 %429
  %431 = vrot.lane.b32.xlu0 %v416, 64
  %v432 = vpop.permute.xlu0 %431
  %v435 = vmul.f32 %v419, %v430
  %v436 = vmul.f32 %v420, %v432
  %439 = vrot.lane.b32.xlu0 %v435, 64
  %v440 = vpop.permute.xlu0 %439
  %441 = vrot.lane.b32.xlu0 %v436, 64
  %v442 = vpop.permute.xlu0 %441
  %v445 = vadd.f32 %v425, %v440
  %v446 = vadd.f32 %v426, %v442
  %v447 = vtanh.pop %v445
  %v448 = vtanh.pop %v446
  %451 = vrot.lane.b32.xlu0 %v447, 64
  %v452 = vpop.permute.xlu0 %451
  %453 = vrot.lane.b32.xlu0 %v448, 64
  %v454 = vpop.permute.xlu0 %453
  %v457 = vmul.f32 %v423, %v452
  %v458 = vmul.f32 %v424, %v454
  %v459 = vpack.c.bf16 %v458, %v457
  %v461 = vunpack.c.l.b16 %v459
  %v462 = vunpack.c.h.b16 %v459
  %v463 = vpack.c.b16 %v461, %v461
  %v464 = vpack.c.b16 %v462, %v462
  %vm467 = vcmask 519168
  %468 = vst.msk [vmem:[#allocation2] sm:$0xf] %vm467, %v463
  %469 = vst.msk [vmem:[#allocation2 + $0x4] sm:$0xf] %vm467, %v464
  %v470 = vld [vmem:[#allocation3 + $0x20] sm:$0xff]
  %v471 = vld [vmem:[#allocation3 + $0x28] sm:$0xff]
  %v472 = vld [vmem:[#allocation3 + $0x30] sm:$0xff]
  %v473 = vld [vmem:[#allocation3 + $0x38] sm:$0xff]
  %v474 = vld [vmem:[%s2] sm:$0xff]
  %v475 = vld [vmem:[%s2 + $0x8] sm:$0xff]
  %v476 = vld [vmem:[%s2 + $0x10] sm:$0xff]
  %v477 = vld [vmem:[%s2 + $0x18] sm:$0xff]
  %v478 = vld [vmem:[%s2 + $0x20] sm:$0xff]
  %v479 = vld [vmem:[%s2 + $0x28] sm:$0xff]
  %v480 = vld [vmem:[%s2 + $0x30] sm:$0xff]
  %v481 = vld [vmem:[%s2 + $0x38] sm:$0xff]
  %v490 = vunpack.c.l.b16 %v474
  %v491 = vunpack.c.h.b16 %v474
  %v492 = vunpack.c.l.b16 %v475
  %v493 = vunpack.c.h.b16 %v475
  %v494 = vunpack.c.l.b16 %v476
  %v495 = vunpack.c.h.b16 %v476
  %v496 = vunpack.c.l.b16 %v477
  %v497 = vunpack.c.h.b16 %v477
  %v498 = vunpack.c.l.b16 %v478
  %v499 = vunpack.c.h.b16 %v478
  %v500 = vunpack.c.l.b16 %v479
  %v501 = vunpack.c.h.b16 %v479
  %v502 = vunpack.c.l.b16 %v480
  %v503 = vunpack.c.h.b16 %v480
  %v504 = vunpack.c.l.b16 %v481
  %v505 = vunpack.c.h.b16 %v481
  %v506 = vpack.c.b16 %v492, %v490
  %v507 = vpack.c.b16 %v493, %v491
  %v508 = vpack.c.b16 %v496, %v494
  %v509 = vpack.c.b16 %v497, %v495
  %v510 = vpack.c.b16 %v500, %v498
  %v511 = vpack.c.b16 %v501, %v499
  %v512 = vpack.c.b16 %v504, %v502
  %v513 = vpack.c.b16 %v505, %v503
  %v523 = vsel %vm141, %v459, 0
  %525 = vmatprep.subr.bf16.mxu0 0
  %526 = vmatpush1.bf16.msra.mxu0 0
  %527 = vmatprep.subr.bf16.mxu0 0
  %528 = vmatpush1.bf16.msra.mxu0 0
  %529 = vmatprep.subr.bf16.mxu0 0
  %530 = vmatpush1.bf16.msra.mxu0 0
  %531 = vmatprep.subr.bf16.mxu0 0
  %532 = vmatpush1.bf16.msra.mxu0 0
  %533 = vmatprep.subr.bf16.mxu0 %v513
  %534 = vmatpush1.bf16.msra.mxu0 %v512
  %535 = vmatprep.subr.bf16.mxu0 %v511
  %536 = vmatpush1.bf16.msra.mxu0 %v510
  %537 = vmatprep.subr.bf16.mxu0 %v509
  %538 = vmatpush1.bf16.msra.mxu0 %v508
  %539 = vmatprep.subr.bf16.mxu0 %v507
  %540 = vmatpush1.bf16.msra.mxu0 %v506
  %541 = vmatprep.subr.bf16.mxu0 0
  %542 = vmatpush2.bf16.msra.mxu0 0
  %543 = vmatprep.subr.bf16.mxu0 0
  %544 = vmatpush2.bf16.msra.mxu0 0
  %545 = vmatprep.subr.bf16.mxu0 0
  %546 = vmatpush2.bf16.msra.mxu0 0
  %547 = vmatprep.subr.bf16.mxu0 0
  %548 = vmatpush2.bf16.msra.mxu0 0
  %549 = vmatprep.subr.bf16.mxu0 0
  %550 = vmatpush2.bf16.msra.mxu0 0
  %551 = vmatprep.subr.bf16.mxu0 0
  %552 = vmatpush2.bf16.msra.mxu0 0
  %553 = vmatprep.subr.bf16.mxu0 0
  %554 = vmatpush2.bf16.msra.mxu0 0
  %555 = vmatprep.subr.bf16.mxu0 0
  %556 = vmatpush2.bf16.msra.mxu0 0
  %557 = vmatprep.mubr.bf16.mxu0 0
  %558 = vmatmul.mubr.bf16.gmra.mxu0 %v523
  %v559 = vpop.f32.mrf.mxu0
  %v560 = vadd.f32 0.0, %v559
  %v561 = vpop.f32.mrf.mxu0
  %v562 = vadd.f32 0.0, %v561
  %v563 = vpop.f32.mrf.mxu0
  %v564 = vadd.f32 0.0, %v563
  %v565 = vpop.f32.mrf.mxu0
  %v566 = vadd.f32 0.0, %v565
  %567 = vdwg.mxu0
  %v568 = vadd.f32 %v470, %v560
  %v569 = vadd.f32 %v471, %v562
  %v570 = vadd.f32 %v472, %v564
  %v571 = vadd.f32 %v473, %v566
  %v572 = vtanh.pop %v568
  %v573 = vtanh.pop %v569
  %v574 = vtanh.pop %v570
  %v575 = vtanh.pop %v571
  %v576 = vadd.f32 %v572, 1.0
  %v577 = vadd.f32 %v574, 1.0
  %v578 = vmul.f32 %v576, 0.5
  %v579 = vmul.f32 %v577, 0.5
  %v580 = vadd.f32 %v573, 1.0
  %v581 = vadd.f32 %v575, 1.0
  %v582 = vmul.f32 %v580, 0.5
  %v583 = vmul.f32 %v581, 0.5
  %v584 = vmul.f32 %v578, %v445
  %v585 = vmul.f32 %v579, %v446
  %588 = vrot.lane.b32.xlu0 %v573, 64
  %v589 = vpop.permute.xlu0 %588
  %590 = vrot.lane.b32.xlu0 %v575, 64
  %v591 = vpop.permute.xlu0 %590
  %v594 = vmul.f32 %v578, %v589
  %v595 = vmul.f32 %v579, %v591
  %598 = vrot.lane.b32.xlu0 %v594, 64
  %v599 = vpop.permute.xlu0 %598
  %600 = vrot.lane.b32.xlu0 %v595, 64
  %v601 = vpop.permute.xlu0 %600
  %v604 = vadd.f32 %v584, %v599
  %v605 = vadd.f32 %v585, %v601
  %v606 = vtanh.pop %v604
  %v607 = vtanh.pop %v605
  %610 = vrot.lane.b32.xlu0 %v606, 64
  %v611 = vpop.permute.xlu0 %610
  %612 = vrot.lane.b32.xlu0 %v607, 64
  %v613 = vpop.permute.xlu0 %612
  %v616 = vmul.f32 %v582, %v611
  %v617 = vmul.f32 %v583, %v613
  %v618 = vpack.c.bf16 %v617, %v616
  %v620 = vunpack.c.l.b16 %v618
  %v621 = vunpack.c.h.b16 %v618
  %v622 = vpack.c.b16 %v620, %v620
  %v623 = vpack.c.b16 %v621, %v621
  %626 = vst.msk [vmem:[#allocation2 + $0x8] sm:$0xf] %vm467, %v622
  %627 = vst.msk [vmem:[#allocation2 + $0xc] sm:$0xf] %vm467, %v623
  %v628 = vld [vmem:[#allocation3 + $0x40] sm:$0xff]
  %v629 = vld [vmem:[#allocation3 + $0x48] sm:$0xff]
  %v630 = vld [vmem:[#allocation3 + $0x50] sm:$0xff]
  %v631 = vld [vmem:[#allocation3 + $0x58] sm:$0xff]
  %v632 = vld [vmem:[%s2] sm:$0xff]
  %v633 = vld [vmem:[%s2 + $0x8] sm:$0xff]
  %v634 = vld [vmem:[%s2 + $0x10] sm:$0xff]
  %v635 = vld [vmem:[%s2 + $0x18] sm:$0xff]
  %v636 = vld [vmem:[%s2 + $0x20] sm:$0xff]
  %v637 = vld [vmem:[%s2 + $0x28] sm:$0xff]
  %v638 = vld [vmem:[%s2 + $0x30] sm:$0xff]
  %v639 = vld [vmem:[%s2 + $0x38] sm:$0xff]
  %v648 = vunpack.c.l.b16 %v632
  %v649 = vunpack.c.h.b16 %v632
  %v650 = vunpack.c.l.b16 %v633
  %v651 = vunpack.c.h.b16 %v633
  %v652 = vunpack.c.l.b16 %v634
  %v653 = vunpack.c.h.b16 %v634
  %v654 = vunpack.c.l.b16 %v635
  %v655 = vunpack.c.h.b16 %v635
  %v656 = vunpack.c.l.b16 %v636
  %v657 = vunpack.c.h.b16 %v636
  %v658 = vunpack.c.l.b16 %v637
  %v659 = vunpack.c.h.b16 %v637
  %v660 = vunpack.c.l.b16 %v638
  %v661 = vunpack.c.h.b16 %v638
  %v662 = vunpack.c.l.b16 %v639
  %v663 = vunpack.c.h.b16 %v639
  %v664 = vpack.c.b16 %v650, %v648
  %v665 = vpack.c.b16 %v651, %v649
  %v666 = vpack.c.b16 %v654, %v652
  %v667 = vpack.c.b16 %v655, %v653
  %v668 = vpack.c.b16 %v658, %v656
  %v669 = vpack.c.b16 %v659, %v657
  %v670 = vpack.c.b16 %v662, %v660
  %v671 = vpack.c.b16 %v663, %v661
  %v681 = vsel %vm141, %v618, 0
  %683 = vmatprep.subr.bf16.mxu0 0
  %684 = vmatpush1.bf16.msra.mxu0 0
  %685 = vmatprep.subr.bf16.mxu0 0
  %686 = vmatpush1.bf16.msra.mxu0 0
  %687 = vmatprep.subr.bf16.mxu0 0
  %688 = vmatpush1.bf16.msra.mxu0 0
  %689 = vmatprep.subr.bf16.mxu0 0
  %690 = vmatpush1.bf16.msra.mxu0 0
  %691 = vmatprep.subr.bf16.mxu0 %v671
  %692 = vmatpush1.bf16.msra.mxu0 %v670
  %693 = vmatprep.subr.bf16.mxu0 %v669
  %694 = vmatpush1.bf16.msra.mxu0 %v668
  %695 = vmatprep.subr.bf16.mxu0 %v667
  %696 = vmatpush1.bf16.msra.mxu0 %v666
  %697 = vmatprep.subr.bf16.mxu0 %v665
  %698 = vmatpush1.bf16.msra.mxu0 %v664
  %699 = vmatprep.subr.bf16.mxu0 0
  %700 = vmatpush2.bf16.msra.mxu0 0
  %701 = vmatprep.subr.bf16.mxu0 0
  %702 = vmatpush2.bf16.msra.mxu0 0
  %703 = vmatprep.subr.bf16.mxu0 0
  %704 = vmatpush2.bf16.msra.mxu0 0
  %705 = vmatprep.subr.bf16.mxu0 0
  %706 = vmatpush2.bf16.msra.mxu0 0
  %707 = vmatprep.subr.bf16.mxu0 0
  %708 = vmatpush2.bf16.msra.mxu0 0
  %709 = vmatprep.subr.bf16.mxu0 0
  %710 = vmatpush2.bf16.msra.mxu0 0
  %711 = vmatprep.subr.bf16.mxu0 0
  %712 = vmatpush2.bf16.msra.mxu0 0
  %713 = vmatprep.subr.bf16.mxu0 0
  %714 = vmatpush2.bf16.msra.mxu0 0
  %715 = vmatprep.mubr.bf16.mxu0 0
  %716 = vmatmul.mubr.bf16.gmra.mxu0 %v681
  %v717 = vpop.f32.mrf.mxu0
  %v718 = vadd.f32 0.0, %v717
  %v719 = vpop.f32.mrf.mxu0
  %v720 = vadd.f32 0.0, %v719
  %v721 = vpop.f32.mrf.mxu0
  %v722 = vadd.f32 0.0, %v721
  %v723 = vpop.f32.mrf.mxu0
  %v724 = vadd.f32 0.0, %v723
  %725 = vdwg.mxu0
  %v726 = vadd.f32 %v628, %v718
  %v727 = vadd.f32 %v629, %v720
  %v728 = vadd.f32 %v630, %v722
  %v729 = vadd.f32 %v631, %v724
  %v730 = vtanh.pop %v726
  %v731 = vtanh.pop %v727
  %v732 = vtanh.pop %v728
  %v733 = vtanh.pop %v729
  %v734 = vadd.f32 %v730, 1.0
  %v735 = vadd.f32 %v732, 1.0
  %v736 = vmul.f32 %v734, 0.5
  %v737 = vmul.f32 %v735, 0.5
  %v738 = vadd.f32 %v731, 1.0
  %v739 = vadd.f32 %v733, 1.0
  %v740 = vmul.f32 %v738, 0.5
  %v741 = vmul.f32 %v739, 0.5
  %v742 = vmul.f32 %v736, %v604
  %v743 = vmul.f32 %v737, %v605
  %746 = vrot.lane.b32.xlu0 %v731, 64
  %v747 = vpop.permute.xlu0 %746
  %748 = vrot.lane.b32.xlu0 %v733, 64
  %v749 = vpop.permute.xlu0 %748
  %v752 = vmul.f32 %v736, %v747
  %v753 = vmul.f32 %v737, %v749
  %756 = vrot.lane.b32.xlu0 %v752, 64
  %v757 = vpop.permute.xlu0 %756
  %758 = vrot.lane.b32.xlu0 %v753, 64
  %v759 = vpop.permute.xlu0 %758
  %v762 = vadd.f32 %v742, %v757
  %v763 = vadd.f32 %v743, %v759
  %v764 = vtanh.pop %v762
  %v765 = vtanh.pop %v763
  %768 = vrot.lane.b32.xlu0 %v764, 64
  %v769 = vpop.permute.xlu0 %768
  %770 = vrot.lane.b32.xlu0 %v765, 64
  %v771 = vpop.permute.xlu0 %770
  %v774 = vmul.f32 %v740, %v769
  %v775 = vmul.f32 %v741, %v771
  %v776 = vpack.c.bf16 %v775, %v774
  %v778 = vunpack.c.l.b16 %v776
  %v779 = vunpack.c.h.b16 %v776
  %v780 = vpack.c.b16 %v778, %v778
  %v781 = vpack.c.b16 %v779, %v779
  %784 = vst.msk [vmem:[#allocation2 + $0x10] sm:$0xf] %vm467, %v780
  %785 = vst.msk [vmem:[#allocation2 + $0x14] sm:$0xf] %vm467, %v781
  %v786 = vld [vmem:[#allocation3 + $0x60] sm:$0xff]
  %v787 = vld [vmem:[#allocation3 + $0x68] sm:$0xff]
  %v788 = vld [vmem:[#allocation3 + $0x70] sm:$0xff]
  %v789 = vld [vmem:[#allocation3 + $0x78] sm:$0xff]
  %v790 = vld [vmem:[%s2] sm:$0xff]
  %v791 = vld [vmem:[%s2 + $0x8] sm:$0xff]
  %v792 = vld [vmem:[%s2 + $0x10] sm:$0xff]
  %v793 = vld [vmem:[%s2 + $0x18] sm:$0xff]
  %v794 = vld [vmem:[%s2 + $0x20] sm:$0xff]
  %v795 = vld [vmem:[%s2 + $0x28] sm:$0xff]
  %v796 = vld [vmem:[%s2 + $0x30] sm:$0xff]
  %v797 = vld [vmem:[%s2 + $0x38] sm:$0xff]
  %v806 = vunpack.c.l.b16 %v790
  %v807 = vunpack.c.h.b16 %v790
  %v808 = vunpack.c.l.b16 %v791
  %v809 = vunpack.c.h.b16 %v791
  %v810 = vunpack.c.l.b16 %v792
  %v811 = vunpack.c.h.b16 %v792
  %v812 = vunpack.c.l.b16 %v793
  %v813 = vunpack.c.h.b16 %v793
  %v814 = vunpack.c.l.b16 %v794
  %v815 = vunpack.c.h.b16 %v794
  %v816 = vunpack.c.l.b16 %v795
  %v817 = vunpack.c.h.b16 %v795
  %v818 = vunpack.c.l.b16 %v796
  %v819 = vunpack.c.h.b16 %v796
  %v820 = vunpack.c.l.b16 %v797
  %v821 = vunpack.c.h.b16 %v797
  %v822 = vpack.c.b16 %v808, %v806
  %v823 = vpack.c.b16 %v809, %v807
  %v824 = vpack.c.b16 %v812, %v810
  %v825 = vpack.c.b16 %v813, %v811
  %v826 = vpack.c.b16 %v816, %v814
  %v827 = vpack.c.b16 %v817, %v815
  %v828 = vpack.c.b16 %v820, %v818
  %v829 = vpack.c.b16 %v821, %v819
  %v839 = vsel %vm141, %v776, 0
  %841 = vmatprep.subr.bf16.mxu0 0
  %842 = vmatpush1.bf16.msra.mxu0 0
  %843 = vmatprep.subr.bf16.mxu0 0
  %844 = vmatpush1.bf16.msra.mxu0 0
  %845 = vmatprep.subr.bf16.mxu0 0
  %846 = vmatpush1.bf16.msra.mxu0 0
  %847 = vmatprep.subr.bf16.mxu0 0
  %848 = vmatpush1.bf16.msra.mxu0 0
  %849 = vmatprep.subr.bf16.mxu0 %v829
  %850 = vmatpush1.bf16.msra.mxu0 %v828
  %851 = vmatprep.subr.bf16.mxu0 %v827
  %852 = vmatpush1.bf16.msra.mxu0 %v826
  %853 = vmatprep.subr.bf16.mxu0 %v825
  %854 = vmatpush1.bf16.msra.mxu0 %v824
  %855 = vmatprep.subr.bf16.mxu0 %v823
  %856 = vmatpush1.bf16.msra.mxu0 %v822
  %857 = vmatprep.subr.bf16.mxu0 0
  %858 = vmatpush2.bf16.msra.mxu0 0
  %859 = vmatprep.subr.bf16.mxu0 0
  %860 = vmatpush2.bf16.msra.mxu0 0
  %861 = vmatprep.subr.bf16.mxu0 0
  %862 = vmatpush2.bf16.msra.mxu0 0
  %863 = vmatprep.subr.bf16.mxu0 0
  %864 = vmatpush2.bf16.msra.mxu0 0
  %865 = vmatprep.subr.bf16.mxu0 0
  %866 = vmatpush2.bf16.msra.mxu0 0
  %867 = vmatprep.subr.bf16.mxu0 0
  %868 = vmatpush2.bf16.msra.mxu0 0
  %869 = vmatprep.subr.bf16.mxu0 0
  %870 = vmatpush2.bf16.msra.mxu0 0
  %871 = vmatprep.subr.bf16.mxu0 0
  %872 = vmatpush2.bf16.msra.mxu0 0
  %873 = vmatprep.mubr.bf16.mxu0 0
  %874 = vmatmul.mubr.bf16.gmra.mxu0 %v839
  %v875 = vpop.f32.mrf.mxu0
  %v876 = vadd.f32 0.0, %v875
  %v877 = vpop.f32.mrf.mxu0
  %v878 = vadd.f32 0.0, %v877
  %v879 = vpop.f32.mrf.mxu0
  %v880 = vadd.f32 0.0, %v879
  %v881 = vpop.f32.mrf.mxu0
  %v882 = vadd.f32 0.0, %v881
  %883 = vdwg.mxu0
  %v884 = vadd.f32 %v786, %v876
  %v885 = vadd.f32 %v787, %v878
  %v886 = vadd.f32 %v788, %v880
  %v887 = vadd.f32 %v789, %v882
  %v888 = vtanh.pop %v884
  %v889 = vtanh.pop %v885
  %v890 = vtanh.pop %v886
  %v891 = vtanh.pop %v887
  %v892 = vadd.f32 %v888, 1.0
  %v893 = vadd.f32 %v890, 1.0
  %v894 = vmul.f32 %v892, 0.5
  %v895 = vmul.f32 %v893, 0.5
  %v896 = vadd.f32 %v889, 1.0
  %v897 = vadd.f32 %v891, 1.0
  %v898 = vmul.f32 %v896, 0.5
  %v899 = vmul.f32 %v897, 0.5
  %v900 = vmul.f32 %v894, %v762
  %v901 = vmul.f32 %v895, %v763
  %904 = vrot.lane.b32.xlu0 %v889, 64
  %v905 = vpop.permute.xlu0 %904
  %906 = vrot.lane.b32.xlu0 %v891, 64
  %v907 = vpop.permute.xlu0 %906
  %v910 = vmul.f32 %v894, %v905
  %v911 = vmul.f32 %v895, %v907
  %914 = vrot.lane.b32.xlu0 %v910, 64
  %v915 = vpop.permute.xlu0 %914
  %916 = vrot.lane.b32.xlu0 %v911, 64
  %v917 = vpop.permute.xlu0 %916
  %v920 = vadd.f32 %v900, %v915
  %v921 = vadd.f32 %v901, %v917
  %v922 = vtanh.pop %v920
  %v923 = vtanh.pop %v921
  %926 = vrot.lane.b32.xlu0 %v922, 64
  %v927 = vpop.permute.xlu0 %926
  %928 = vrot.lane.b32.xlu0 %v923, 64
  %v929 = vpop.permute.xlu0 %928
  %v932 = vmul.f32 %v898, %v927
  %v933 = vmul.f32 %v899, %v929
  %v934 = vpack.c.bf16 %v933, %v932
  %v936 = vunpack.c.l.b16 %v934
  %v937 = vunpack.c.h.b16 %v934
  %v938 = vpack.c.b16 %v936, %v936
  %v939 = vpack.c.b16 %v937, %v937
  %942 = vst.msk [vmem:[#allocation2 + $0x18] sm:$0xf] %vm467, %v938
  %943 = vst.msk [vmem:[#allocation2 + $0x1c] sm:$0xf] %vm467, %v939
  %v944 = vld [vmem:[#allocation3 + $0x80] sm:$0xff]
  %v945 = vld [vmem:[#allocation3 + $0x88] sm:$0xff]
  %v946 = vld [vmem:[#allocation3 + $0x90] sm:$0xff]
  %v947 = vld [vmem:[#allocation3 + $0x98] sm:$0xff]
  %v948 = vld [vmem:[%s2] sm:$0xff]
  %v949 = vld [vmem:[%s2 + $0x8] sm:$0xff]
  %v950 = vld [vmem:[%s2 + $0x10] sm:$0xff]
  %v951 = vld [vmem:[%s2 + $0x18] sm:$0xff]
  %v952 = vld [vmem:[%s2 + $0x20] sm:$0xff]
  %v953 = vld [vmem:[%s2 + $0x28] sm:$0xff]
  %v954 = vld [vmem:[%s2 + $0x30] sm:$0xff]
  %v955 = vld [vmem:[%s2 + $0x38] sm:$0xff]
  %v964 = vunpack.c.l.b16 %v948
  %v965 = vunpack.c.h.b16 %v948
  %v966 = vunpack.c.l.b16 %v949
  %v967 = vunpack.c.h.b16 %v949
  %v968 = vunpack.c.l.b16 %v950
  %v969 = vunpack.c.h.b16 %v950
  %v970 = vunpack.c.l.b16 %v951
  %v971 = vunpack.c.h.b16 %v951
  %v972 = vunpack.c.l.b16 %v952
  %v973 = vunpack.c.h.b16 %v952
  %v974 = vunpack.c.l.b16 %v953
  %v975 = vunpack.c.h.b16 %v953
  %v976 = vunpack.c.l.b16 %v954
  %v977 = vunpack.c.h.b16 %v954
  %v978 = vunpack.c.l.b16 %v955
  %v979 = vunpack.c.h.b16 %v955
  %v980 = vpack.c.b16 %v966, %v964
  %v981 = vpack.c.b16 %v967, %v965
  %v982 = vpack.c.b16 %v970, %v968
  %v983 = vpack.c.b16 %v971, %v969
  %v984 = vpack.c.b16 %v974, %v972
  %v985 = vpack.c.b16 %v975, %v973
  %v986 = vpack.c.b16 %v978, %v976
  %v987 = vpack.c.b16 %v979, %v977
  %v997 = vsel %vm141, %v934, 0
  %999 = vmatprep.subr.bf16.mxu0 0
  %1000 = vmatpush1.bf16.msra.mxu0 0
  %1001 = vmatprep.subr.bf16.mxu0 0
  %1002 = vmatpush1.bf16.msra.mxu0 0
  %1003 = vmatprep.subr.bf16.mxu0 0
  %1004 = vmatpush1.bf16.msra.mxu0 0
  %1005 = vmatprep.subr.bf16.mxu0 0
  %1006 = vmatpush1.bf16.msra.mxu0 0
  %1007 = vmatprep.subr.bf16.mxu0 %v987
  %1008 = vmatpush1.bf16.msra.mxu0 %v986
  %1009 = vmatprep.subr.bf16.mxu0 %v985
  %1010 = vmatpush1.bf16.msra.mxu0 %v984
  %1011 = vmatprep.subr.bf16.mxu0 %v983
  %1012 = vmatpush1.bf16.msra.mxu0 %v982
  %1013 = vmatprep.subr.bf16.mxu0 %v981
  %1014 = vmatpush1.bf16.msra.mxu0 %v980
  %1015 = vmatprep.subr.bf16.mxu0 0
  %1016 = vmatpush2.bf16.msra.mxu0 0
  %1017 = vmatprep.subr.bf16.mxu0 0
  %1018 = vmatpush2.bf16.msra.mxu0 0
  %1019 = vmatprep.subr.bf16.mxu0 0
  %1020 = vmatpush2.bf16.msra.mxu0 0
  %1021 = vmatprep.subr.bf16.mxu0 0
  %1022 = vmatpush2.bf16.msra.mxu0 0
  %1023 = vmatprep.subr.bf16.mxu0 0
  %1024 = vmatpush2.bf16.msra.mxu0 0
  %1025 = vmatprep.subr.bf16.mxu0 0
  %1026 = vmatpush2.bf16.msra.mxu0 0
  %1027 = vmatprep.subr.bf16.mxu0 0
  %1028 = vmatpush2.bf16.msra.mxu0 0
  %1029 = vmatprep.subr.bf16.mxu0 0
  %1030 = vmatpush2.bf16.msra.mxu0 0
  %1031 = vmatprep.mubr.bf16.mxu0 0
  %1032 = vmatmul.mubr.bf16.gmra.mxu0 %v997
  %v1033 = vpop.f32.mrf.mxu0
  %v1034 = vadd.f32 0.0, %v1033
  %v1035 = vpop.f32.mrf.mxu0
  %v1036 = vadd.f32 0.0, %v1035
  %v1037 = vpop.f32.mrf.mxu0
  %v1038 = vadd.f32 0.0, %v1037
  %v1039 = vpop.f32.mrf.mxu0
  %v1040 = vadd.f32 0.0, %v1039
  %1041 = vdwg.mxu0
  %v1042 = vadd.f32 %v944, %v1034
  %v1043 = vadd.f32 %v945, %v1036
  %v1044 = vadd.f32 %v946, %v1038
  %v1045 = vadd.f32 %v947, %v1040
  %v1046 = vtanh.pop %v1042
  %v1047 = vtanh.pop %v1043
  %v1048 = vtanh.pop %v1044
  %v1049 = vtanh.pop %v1045
  %v1050 = vadd.f32 %v1046, 1.0
  %v1051 = vadd.f32 %v1048, 1.0
  %v1052 = vmul.f32 %v1050, 0.5
  %v1053 = vmul.f32 %v1051, 0.5
  %v1054 = vadd.f32 %v1047, 1.0
  %v1055 = vadd.f32 %v1049, 1.0
  %v1056 = vmul.f32 %v1054, 0.5
  %v1057 = vmul.f32 %v1055, 0.5
  %v1058 = vmul.f32 %v1052, %v920
  %v1059 = vmul.f32 %v1053, %v921
  %1062 = vrot.lane.b32.xlu0 %v1047, 64
  %v1063 = vpop.permute.xlu0 %1062
  %1064 = vrot.lane.b32.xlu0 %v1049, 64
  %v1065 = vpop.permute.xlu0 %1064
  %v1068 = vmul.f32 %v1052, %v1063
  %v1069 = vmul.f32 %v1053, %v1065
  %1072 = vrot.lane.b32.xlu0 %v1068, 64
  %v1073 = vpop.permute.xlu0 %1072
  %1074 = vrot.lane.b32.xlu0 %v1069, 64
  %v1075 = vpop.permute.xlu0 %1074
  %v1078 = vadd.f32 %v1058, %v1073
  %v1079 = vadd.f32 %v1059, %v1075
  %v1080 = vtanh.pop %v1078
  %v1081 = vtanh.pop %v1079
  %1084 = vrot.lane.b32.xlu0 %v1080, 64
  %v1085 = vpop.permute.xlu0 %1084
  %1086 = vrot.lane.b32.xlu0 %v1081, 64
  %v1087 = vpop.permute.xlu0 %1086
  %v1090 = vmul.f32 %v1056, %v1085
  %v1091 = vmul.f32 %v1057, %v1087
  %v1092 = vpack.c.bf16 %v1091, %v1090
  %v1094 = vunpack.c.l.b16 %v1092
  %v1095 = vunpack.c.h.b16 %v1092
  %v1096 = vpack.c.b16 %v1094, %v1094
  %v1097 = vpack.c.b16 %v1095, %v1095
  %1100 = vst.msk [vmem:[#allocation2 + $0x20] sm:$0xf] %vm467, %v1096
  %1101 = vst.msk [vmem:[#allocation2 + $0x24] sm:$0xf] %vm467, %v1097
  %v1102 = vld [vmem:[#allocation3 + $0xa0] sm:$0xff]
  %v1103 = vld [vmem:[#allocation3 + $0xa8] sm:$0xff]
  %v1104 = vld [vmem:[#allocation3 + $0xb0] sm:$0xff]
  %v1105 = vld [vmem:[#allocation3 + $0xb8] sm:$0xff]
  %v1106 = vld [vmem:[%s2] sm:$0xff]
  %v1107 = vld [vmem:[%s2 + $0x8] sm:$0xff]
  %v1108 = vld [vmem:[%s2 + $0x10] sm:$0xff]
  %v1109 = vld [vmem:[%s2 + $0x18] sm:$0xff]
  %v1110 = vld [vmem:[%s2 + $0x20] sm:$0xff]
  %v1111 = vld [vmem:[%s2 + $0x28] sm:$0xff]
  %v1112 = vld [vmem:[%s2 + $0x30] sm:$0xff]
  %v1113 = vld [vmem:[%s2 + $0x38] sm:$0xff]
  %v1122 = vunpack.c.l.b16 %v1106
  %v1123 = vunpack.c.h.b16 %v1106
  %v1124 = vunpack.c.l.b16 %v1107
  %v1125 = vunpack.c.h.b16 %v1107
  %v1126 = vunpack.c.l.b16 %v1108
  %v1127 = vunpack.c.h.b16 %v1108
  %v1128 = vunpack.c.l.b16 %v1109
  %v1129 = vunpack.c.h.b16 %v1109
  %v1130 = vunpack.c.l.b16 %v1110
  %v1131 = vunpack.c.h.b16 %v1110
  %v1132 = vunpack.c.l.b16 %v1111
  %v1133 = vunpack.c.h.b16 %v1111
  %v1134 = vunpack.c.l.b16 %v1112
  %v1135 = vunpack.c.h.b16 %v1112
  %v1136 = vunpack.c.l.b16 %v1113
  %v1137 = vunpack.c.h.b16 %v1113
  %v1138 = vpack.c.b16 %v1124, %v1122
  %v1139 = vpack.c.b16 %v1125, %v1123
  %v1140 = vpack.c.b16 %v1128, %v1126
  %v1141 = vpack.c.b16 %v1129, %v1127
  %v1142 = vpack.c.b16 %v1132, %v1130
  %v1143 = vpack.c.b16 %v1133, %v1131
  %v1144 = vpack.c.b16 %v1136, %v1134
  %v1145 = vpack.c.b16 %v1137, %v1135
  %v1155 = vsel %vm141, %v1092, 0
  %1157 = vmatprep.subr.bf16.mxu0 0
  %1158 = vmatpush1.bf16.msra.mxu0 0
  %1159 = vmatprep.subr.bf16.mxu0 0
  %1160 = vmatpush1.bf16.msra.mxu0 0
  %1161 = vmatprep.subr.bf16.mxu0 0
  %1162 = vmatpush1.bf16.msra.mxu0 0
  %1163 = vmatprep.subr.bf16.mxu0 0
  %1164 = vmatpush1.bf16.msra.mxu0 0
  %1165 = vmatprep.subr.bf16.mxu0 %v1145
  %1166 = vmatpush1.bf16.msra.mxu0 %v1144
  %1167 = vmatprep.subr.bf16.mxu0 %v1143
  %1168 = vmatpush1.bf16.msra.mxu0 %v1142
  %1169 = vmatprep.subr.bf16.mxu0 %v1141
  %1170 = vmatpush1.bf16.msra.mxu0 %v1140
  %1171 = vmatprep.subr.bf16.mxu0 %v1139
  %1172 = vmatpush1.bf16.msra.mxu0 %v1138
  %1173 = vmatprep.subr.bf16.mxu0 0
  %1174 = vmatpush2.bf16.msra.mxu0 0
  %1175 = vmatprep.subr.bf16.mxu0 0
  %1176 = vmatpush2.bf16.msra.mxu0 0
  %1177 = vmatprep.subr.bf16.mxu0 0
  %1178 = vmatpush2.bf16.msra.mxu0 0
  %1179 = vmatprep.subr.bf16.mxu0 0
  %1180 = vmatpush2.bf16.msra.mxu0 0
  %1181 = vmatprep.subr.bf16.mxu0 0
  %1182 = vmatpush2.bf16.msra.mxu0 0
  %1183 = vmatprep.subr.bf16.mxu0 0
  %1184 = vmatpush2.bf16.msra.mxu0 0
  %1185 = vmatprep.subr.bf16.mxu0 0
  %1186 = vmatpush2.bf16.msra.mxu0 0
  %1187 = vmatprep.subr.bf16.mxu0 0
  %1188 = vmatpush2.bf16.msra.mxu0 0
  %1189 = vmatprep.mubr.bf16.mxu0 0
  %1190 = vmatmul.mubr.bf16.gmra.mxu0 %v1155
  %v1191 = vpop.f32.mrf.mxu0
  %v1192 = vadd.f32 0.0, %v1191
  %v1193 = vpop.f32.mrf.mxu0
  %v1194 = vadd.f32 0.0, %v1193
  %v1195 = vpop.f32.mrf.mxu0
  %v1196 = vadd.f32 0.0, %v1195
  %v1197 = vpop.f32.mrf.mxu0
  %v1198 = vadd.f32 0.0, %v1197
  %1199 = vdwg.mxu0
  %v1200 = vadd.f32 %v1102, %v1192
  %v1201 = vadd.f32 %v1103, %v1194
  %v1202 = vadd.f32 %v1104, %v1196
  %v1203 = vadd.f32 %v1105, %v1198
  %v1204 = vtanh.pop %v1200
  %v1205 = vtanh.pop %v1201
  %v1206 = vtanh.pop %v1202
  %v1207 = vtanh.pop %v1203
  %v1208 = vadd.f32 %v1204, 1.0
  %v1209 = vadd.f32 %v1206, 1.0
  %v1210 = vmul.f32 %v1208, 0.5
  %v1211 = vmul.f32 %v1209, 0.5
  %v1212 = vadd.f32 %v1205, 1.0
  %v1213 = vadd.f32 %v1207, 1.0
  %v1214 = vmul.f32 %v1212, 0.5
  %v1215 = vmul.f32 %v1213, 0.5
  %v1216 = vmul.f32 %v1210, %v1078
  %v1217 = vmul.f32 %v1211, %v1079
  %1220 = vrot.lane.b32.xlu0 %v1205, 64
  %v1221 = vpop.permute.xlu0 %1220
  %1222 = vrot.lane.b32.xlu0 %v1207, 64
  %v1223 = vpop.permute.xlu0 %1222
  %v1226 = vmul.f32 %v1210, %v1221
  %v1227 = vmul.f32 %v1211, %v1223
  %1230 = vrot.lane.b32.xlu0 %v1226, 64
  %v1231 = vpop.permute.xlu0 %1230
  %1232 = vrot.lane.b32.xlu0 %v1227, 64
  %v1233 = vpop.permute.xlu0 %1232
  %v1236 = vadd.f32 %v1216, %v1231
  %v1237 = vadd.f32 %v1217, %v1233
  %v1238 = vtanh.pop %v1236
  %v1239 = vtanh.pop %v1237
  %1242 = vrot.lane.b32.xlu0 %v1238, 64
  %v1243 = vpop.permute.xlu0 %1242
  %1244 = vrot.lane.b32.xlu0 %v1239, 64
  %v1245 = vpop.permute.xlu0 %1244
  %v1248 = vmul.f32 %v1214, %v1243
  %v1249 = vmul.f32 %v1215, %v1245
  %v1250 = vpack.c.bf16 %v1249, %v1248
  %v1252 = vunpack.c.l.b16 %v1250
  %v1253 = vunpack.c.h.b16 %v1250
  %v1254 = vpack.c.b16 %v1252, %v1252
  %v1255 = vpack.c.b16 %v1253, %v1253
  %1258 = vst.msk [vmem:[#allocation2 + $0x28] sm:$0xf] %vm467, %v1254
  %1259 = vst.msk [vmem:[#allocation2 + $0x2c] sm:$0xf] %vm467, %v1255
  %v1260 = vld [vmem:[#allocation3 + $0xc0] sm:$0xff]
  %v1261 = vld [vmem:[#allocation3 + $0xc8] sm:$0xff]
  %v1262 = vld [vmem:[#allocation3 + $0xd0] sm:$0xff]
  %v1263 = vld [vmem:[#allocation3 + $0xd8] sm:$0xff]
  %v1264 = vld [vmem:[%s2] sm:$0xff]
  %v1265 = vld [vmem:[%s2 + $0x8] sm:$0xff]
  %v1266 = vld [vmem:[%s2 + $0x10] sm:$0xff]
  %v1267 = vld [vmem:[%s2 + $0x18] sm:$0xff]
  %v1268 = vld [vmem:[%s2 + $0x20] sm:$0xff]
  %v1269 = vld [vmem:[%s2 + $0x28] sm:$0xff]
  %v1270 = vld [vmem:[%s2 + $0x30] sm:$0xff]
  %v1271 = vld [vmem:[%s2 + $0x38] sm:$0xff]
  %v1280 = vunpack.c.l.b16 %v1264
  %v1281 = vunpack.c.h.b16 %v1264
  %v1282 = vunpack.c.l.b16 %v1265
  %v1283 = vunpack.c.h.b16 %v1265
  %v1284 = vunpack.c.l.b16 %v1266
  %v1285 = vunpack.c.h.b16 %v1266
  %v1286 = vunpack.c.l.b16 %v1267
  %v1287 = vunpack.c.h.b16 %v1267
  %v1288 = vunpack.c.l.b16 %v1268
  %v1289 = vunpack.c.h.b16 %v1268
  %v1290 = vunpack.c.l.b16 %v1269
  %v1291 = vunpack.c.h.b16 %v1269
  %v1292 = vunpack.c.l.b16 %v1270
  %v1293 = vunpack.c.h.b16 %v1270
  %v1294 = vunpack.c.l.b16 %v1271
  %v1295 = vunpack.c.h.b16 %v1271
  %v1296 = vpack.c.b16 %v1282, %v1280
  %v1297 = vpack.c.b16 %v1283, %v1281
  %v1298 = vpack.c.b16 %v1286, %v1284
  %v1299 = vpack.c.b16 %v1287, %v1285
  %v1300 = vpack.c.b16 %v1290, %v1288
  %v1301 = vpack.c.b16 %v1291, %v1289
  %v1302 = vpack.c.b16 %v1294, %v1292
  %v1303 = vpack.c.b16 %v1295, %v1293
  %v1313 = vsel %vm141, %v1250, 0
  %1315 = vmatprep.subr.bf16.mxu0 0
  %1316 = vmatpush1.bf16.msra.mxu0 0
  %1317 = vmatprep.subr.bf16.mxu0 0
  %1318 = vmatpush1.bf16.msra.mxu0 0
  %1319 = vmatprep.subr.bf16.mxu0 0
  %1320 = vmatpush1.bf16.msra.mxu0 0
  %1321 = vmatprep.subr.bf16.mxu0 0
  %1322 = vmatpush1.bf16.msra.mxu0 0
  %1323 = vmatprep.subr.bf16.mxu0 %v1303
  %1324 = vmatpush1.bf16.msra.mxu0 %v1302
  %1325 = vmatprep.subr.bf16.mxu0 %v1301
  %1326 = vmatpush1.bf16.msra.mxu0 %v1300
  %1327 = vmatprep.subr.bf16.mxu0 %v1299
  %1328 = vmatpush1.bf16.msra.mxu0 %v1298
  %1329 = vmatprep.subr.bf16.mxu0 %v1297
  %1330 = vmatpush1.bf16.msra.mxu0 %v1296
  %1331 = vmatprep.subr.bf16.mxu0 0
  %1332 = vmatpush2.bf16.msra.mxu0 0
  %1333 = vmatprep.subr.bf16.mxu0 0
  %1334 = vmatpush2.bf16.msra.mxu0 0
  %1335 = vmatprep.subr.bf16.mxu0 0
  %1336 = vmatpush2.bf16.msra.mxu0 0
  %1337 = vmatprep.subr.bf16.mxu0 0
  %1338 = vmatpush2.bf16.msra.mxu0 0
  %1339 = vmatprep.subr.bf16.mxu0 0
  %1340 = vmatpush2.bf16.msra.mxu0 0
  %1341 = vmatprep.subr.bf16.mxu0 0
  %1342 = vmatpush2.bf16.msra.mxu0 0
  %1343 = vmatprep.subr.bf16.mxu0 0
  %1344 = vmatpush2.bf16.msra.mxu0 0
  %1345 = vmatprep.subr.bf16.mxu0 0
  %1346 = vmatpush2.bf16.msra.mxu0 0
  %1347 = vmatprep.mubr.bf16.mxu0 0
  %1348 = vmatmul.mubr.bf16.gmra.mxu0 %v1313
  %v1349 = vpop.f32.mrf.mxu0
  %v1350 = vadd.f32 0.0, %v1349
  %v1351 = vpop.f32.mrf.mxu0
  %v1352 = vadd.f32 0.0, %v1351
  %v1353 = vpop.f32.mrf.mxu0
  %v1354 = vadd.f32 0.0, %v1353
  %v1355 = vpop.f32.mrf.mxu0
  %v1356 = vadd.f32 0.0, %v1355
  %1357 = vdwg.mxu0
  %v1358 = vadd.f32 %v1260, %v1350
  %v1359 = vadd.f32 %v1261, %v1352
  %v1360 = vadd.f32 %v1262, %v1354
  %v1361 = vadd.f32 %v1263, %v1356
  %v1362 = vtanh.pop %v1358
  %v1363 = vtanh.pop %v1359
  %v1364 = vtanh.pop %v1360
  %v1365 = vtanh.pop %v1361
  %v1366 = vadd.f32 %v1362, 1.0
  %v1367 = vadd.f32 %v1364, 1.0
  %v1368 = vmul.f32 %v1366, 0.5
  %v1369 = vmul.f32 %v1367, 0.5
  %v1370 = vadd.f32 %v1363, 1.0
  %v1371 = vadd.f32 %v1365, 1.0
  %v1372 = vmul.f32 %v1370, 0.5
  %v1373 = vmul.f32 %v1371, 0.5
  %v1374 = vmul.f32 %v1368, %v1236
  %v1375 = vmul.f32 %v1369, %v1237
  %1378 = vrot.lane.b32.xlu0 %v1363, 64
  %v1379 = vpop.permute.xlu0 %1378
  %1380 = vrot.lane.b32.xlu0 %v1365, 64
  %v1381 = vpop.permute.xlu0 %1380
  %v1384 = vmul.f32 %v1368, %v1379
  %v1385 = vmul.f32 %v1369, %v1381
  %1388 = vrot.lane.b32.xlu0 %v1384, 64
  %v1389 = vpop.permute.xlu0 %1388
  %1390 = vrot.lane.b32.xlu0 %v1385, 64
  %v1391 = vpop.permute.xlu0 %1390
  %v1394 = vadd.f32 %v1374, %v1389
  %v1395 = vadd.f32 %v1375, %v1391
  %v1396 = vtanh.pop %v1394
  %v1397 = vtanh.pop %v1395
  %1400 = vrot.lane.b32.xlu0 %v1396, 64
  %v1401 = vpop.permute.xlu0 %1400
  %1402 = vrot.lane.b32.xlu0 %v1397, 64
  %v1403 = vpop.permute.xlu0 %1402
  %v1406 = vmul.f32 %v1372, %v1401
  %v1407 = vmul.f32 %v1373, %v1403
  %v1408 = vpack.c.bf16 %v1407, %v1406
  %v1410 = vunpack.c.l.b16 %v1408
  %v1411 = vunpack.c.h.b16 %v1408
  %v1412 = vpack.c.b16 %v1410, %v1410
  %v1413 = vpack.c.b16 %v1411, %v1411
  %1416 = vst.msk [vmem:[#allocation2 + $0x30] sm:$0xf] %vm467, %v1412
  %1417 = vst.msk [vmem:[#allocation2 + $0x34] sm:$0xf] %vm467, %v1413
  %v1418 = vld [vmem:[#allocation3 + $0xe0] sm:$0xff]
  %v1419 = vld [vmem:[#allocation3 + $0xe8] sm:$0xff]
  %v1420 = vld [vmem:[#allocation3 + $0xf0] sm:$0xff]
  %v1421 = vld [vmem:[#allocation3 + $0xf8] sm:$0xff]
  %v1422 = vld [vmem:[%s2] sm:$0xff]
  %v1423 = vld [vmem:[%s2 + $0x8] sm:$0xff]
  %v1424 = vld [vmem:[%s2 + $0x10] sm:$0xff]
  %v1425 = vld [vmem:[%s2 + $0x18] sm:$0xff]
  %v1426 = vld [vmem:[%s2 + $0x20] sm:$0xff]
  %v1427 = vld [vmem:[%s2 + $0x28] sm:$0xff]
  %v1428 = vld [vmem:[%s2 + $0x30] sm:$0xff]
  %v1429 = vld [vmem:[%s2 + $0x38] sm:$0xff]
  %v1438 = vunpack.c.l.b16 %v1422
  %v1439 = vunpack.c.h.b16 %v1422
  %v1440 = vunpack.c.l.b16 %v1423
  %v1441 = vunpack.c.h.b16 %v1423
  %v1442 = vunpack.c.l.b16 %v1424
  %v1443 = vunpack.c.h.b16 %v1424
  %v1444 = vunpack.c.l.b16 %v1425
  %v1445 = vunpack.c.h.b16 %v1425
  %v1446 = vunpack.c.l.b16 %v1426
  %v1447 = vunpack.c.h.b16 %v1426
  %v1448 = vunpack.c.l.b16 %v1427
  %v1449 = vunpack.c.h.b16 %v1427
  %v1450 = vunpack.c.l.b16 %v1428
  %v1451 = vunpack.c.h.b16 %v1428
  %v1452 = vunpack.c.l.b16 %v1429
  %v1453 = vunpack.c.h.b16 %v1429
  %v1454 = vpack.c.b16 %v1440, %v1438
  %v1455 = vpack.c.b16 %v1441, %v1439
  %v1456 = vpack.c.b16 %v1444, %v1442
  %v1457 = vpack.c.b16 %v1445, %v1443
  %v1458 = vpack.c.b16 %v1448, %v1446
  %v1459 = vpack.c.b16 %v1449, %v1447
  %v1460 = vpack.c.b16 %v1452, %v1450
  %v1461 = vpack.c.b16 %v1453, %v1451
  %v1471 = vsel %vm141, %v1408, 0
  %1473 = vmatprep.subr.bf16.mxu0 0
  %1474 = vmatpush1.bf16.msra.mxu0 0
  %1475 = vmatprep.subr.bf16.mxu0 0
  %1476 = vmatpush1.bf16.msra.mxu0 0
  %1477 = vmatprep.subr.bf16.mxu0 0
  %1478 = vmatpush1.bf16.msra.mxu0 0
  %1479 = vmatprep.subr.bf16.mxu0 0
  %1480 = vmatpush1.bf16.msra.mxu0 0
  %1481 = vmatprep.subr.bf16.mxu0 %v1461
  %1482 = vmatpush1.bf16.msra.mxu0 %v1460
  %1483 = vmatprep.subr.bf16.mxu0 %v1459
  %1484 = vmatpush1.bf16.msra.mxu0 %v1458
  %1485 = vmatprep.subr.bf16.mxu0 %v1457
  %1486 = vmatpush1.bf16.msra.mxu0 %v1456
  %1487 = vmatprep.subr.bf16.mxu0 %v1455
  %1488 = vmatpush1.bf16.msra.mxu0 %v1454
  %1489 = vmatprep.subr.bf16.mxu0 0
  %1490 = vmatpush2.bf16.msra.mxu0 0
  %1491 = vmatprep.subr.bf16.mxu0 0
  %1492 = vmatpush2.bf16.msra.mxu0 0
  %1493 = vmatprep.subr.bf16.mxu0 0
  %1494 = vmatpush2.bf16.msra.mxu0 0
  %1495 = vmatprep.subr.bf16.mxu0 0
  %1496 = vmatpush2.bf16.msra.mxu0 0
  %1497 = vmatprep.subr.bf16.mxu0 0
  %1498 = vmatpush2.bf16.msra.mxu0 0
  %1499 = vmatprep.subr.bf16.mxu0 0
  %1500 = vmatpush2.bf16.msra.mxu0 0
  %1501 = vmatprep.subr.bf16.mxu0 0
  %1502 = vmatpush2.bf16.msra.mxu0 0
  %1503 = vmatprep.subr.bf16.mxu0 0
  %1504 = vmatpush2.bf16.msra.mxu0 0
  %1505 = vmatprep.mubr.bf16.mxu0 0
  %1506 = vmatmul.mubr.bf16.gmra.mxu0 %v1471
  %v1507 = vpop.f32.mrf.mxu0
  %v1508 = vadd.f32 0.0, %v1507
  %v1509 = vpop.f32.mrf.mxu0
  %v1510 = vadd.f32 0.0, %v1509
  %v1511 = vpop.f32.mrf.mxu0
  %v1512 = vadd.f32 0.0, %v1511
  %v1513 = vpop.f32.mrf.mxu0
  %v1514 = vadd.f32 0.0, %v1513
  %1515 = vdwg.mxu0
  %v1516 = vadd.f32 %v1418, %v1508
  %v1517 = vadd.f32 %v1419, %v1510
  %v1518 = vadd.f32 %v1420, %v1512
  %v1519 = vadd.f32 %v1421, %v1514
  %v1520 = vtanh.pop %v1516
  %v1521 = vtanh.pop %v1517
  %v1522 = vtanh.pop %v1518
  %v1523 = vtanh.pop %v1519
  %v1524 = vadd.f32 %v1520, 1.0
  %v1525 = vadd.f32 %v1522, 1.0
  %v1526 = vmul.f32 %v1524, 0.5
  %v1527 = vmul.f32 %v1525, 0.5
  %v1528 = vadd.f32 %v1521, 1.0
  %v1529 = vadd.f32 %v1523, 1.0
  %v1530 = vmul.f32 %v1528, 0.5
  %v1531 = vmul.f32 %v1529, 0.5
  %v1532 = vmul.f32 %v1526, %v1394
  %v1533 = vmul.f32 %v1527, %v1395
  %1536 = vrot.lane.b32.xlu0 %v1521, 64
  %v1537 = vpop.permute.xlu0 %1536
  %1538 = vrot.lane.b32.xlu0 %v1523, 64
  %v1539 = vpop.permute.xlu0 %1538
  %v1542 = vmul.f32 %v1526, %v1537
  %v1543 = vmul.f32 %v1527, %v1539
  %1546 = vrot.lane.b32.xlu0 %v1542, 64
  %v1547 = vpop.permute.xlu0 %1546
  %1548 = vrot.lane.b32.xlu0 %v1543, 64
  %v1549 = vpop.permute.xlu0 %1548
  %v1552 = vadd.f32 %v1532, %v1547
  %v1553 = vadd.f32 %v1533, %v1549
  %v1554 = vtanh.pop %v1552
  %v1555 = vtanh.pop %v1553
  %1558 = vrot.lane.b32.xlu0 %v1554, 64
  %v1559 = vpop.permute.xlu0 %1558
  %1560 = vrot.lane.b32.xlu0 %v1555, 64
  %v1561 = vpop.permute.xlu0 %1560
  %v1564 = vmul.f32 %v1530, %v1559
  %v1565 = vmul.f32 %v1531, %v1561
  %v1566 = vpack.c.bf16 %v1565, %v1564
  %v1568 = vunpack.c.l.b16 %v1566
  %v1569 = vunpack.c.h.b16 %v1566
  %v1570 = vpack.c.b16 %v1568, %v1568
  %v1571 = vpack.c.b16 %v1569, %v1569
  %1574 = vst.msk [vmem:[#allocation2 + $0x38] sm:$0xf] %vm467, %v1570
  %1575 = vst.msk [vmem:[#allocation2 + $0x3c] sm:$0xf] %vm467, %v1571
  %v1576 = vld [vmem:[#allocation2] sm:$0xf]
  %v1577 = vld [vmem:[#allocation2 + $0x4] sm:$0xf]
  %v1578 = vld [vmem:[#allocation2 + $0x8] sm:$0xf]
  %v1579 = vld [vmem:[#allocation2 + $0xc] sm:$0xf]
  %v1580 = vld [vmem:[#allocation2 + $0x10] sm:$0xf]
  %v1581 = vld [vmem:[#allocation2 + $0x14] sm:$0xf]
  %v1582 = vld [vmem:[#allocation2 + $0x18] sm:$0xf]
  %v1583 = vld [vmem:[#allocation2 + $0x1c] sm:$0xf]
  %v1584 = vld [vmem:[#allocation2 + $0x20] sm:$0xf]
  %v1585 = vld [vmem:[#allocation2 + $0x24] sm:$0xf]
  %v1586 = vld [vmem:[#allocation2 + $0x28] sm:$0xf]
  %v1587 = vld [vmem:[#allocation2 + $0x2c] sm:$0xf]
  %v1588 = vld [vmem:[#allocation2 + $0x30] sm:$0xf]
  %v1589 = vld [vmem:[#allocation2 + $0x34] sm:$0xf]
  %v1590 = vld [vmem:[#allocation2 + $0x38] sm:$0xf]
  %v1591 = vld [vmem:[#allocation2 + $0x3c] sm:$0xf]
  %s1592 = scalar_lea.vmem %s1, 64
  %v1593 = vld [vmem:[%s1592] sm:$0xff]
  %v1594 = vld [vmem:[%s1592 + $0x8] sm:$0xff]
  %v1595 = vld [vmem:[%s1592 + $0x10] sm:$0xff]
  %v1596 = vld [vmem:[%s1592 + $0x18] sm:$0xff]
  %v1597 = vld [vmem:[%s1592 + $0x20] sm:$0xff]
  %v1598 = vld [vmem:[%s1592 + $0x28] sm:$0xff]
  %v1599 = vld [vmem:[%s1592 + $0x30] sm:$0xff]
  %v1600 = vld [vmem:[%s1592 + $0x38] sm:$0xff]
  %s1601 = scalar_lea.vmem %s3, 2
  %v1602 = vld [vmem:[%s1601] sm:$0x3]
  %v1604 = vlaneseq
  %v1605 = vshrl.u32 %v1604, 7
  %v1606 = vsub.s32 0, %v1605
  %v1607 = vrot.slane %v1602, %v1606
  %v1608 = vlaneseq
  %v1609 = vshrl.u32 %v1608, 7
  %v1610 = vsub.s32 1, %v1609
  %v1611 = vrot.slane %v1602, %v1610
  %v1630 = vunpack.c.l.b16 %v1576
  %v1631 = vunpack.c.l.b16 %v1577
  %v1632 = vunpack.c.l.b16 %v1578
  %v1633 = vunpack.c.l.b16 %v1579
  %v1634 = vunpack.c.l.b16 %v1580
  %v1635 = vunpack.c.l.b16 %v1581
  %v1636 = vunpack.c.l.b16 %v1582
  %v1637 = vunpack.c.l.b16 %v1583
  %v1638 = vunpack.c.l.b16 %v1584
  %v1639 = vunpack.c.l.b16 %v1585
  %v1640 = vunpack.c.l.b16 %v1586
  %v1641 = vunpack.c.l.b16 %v1587
  %v1642 = vunpack.c.l.b16 %v1588
  %v1643 = vunpack.c.l.b16 %v1589
  %v1644 = vunpack.c.l.b16 %v1590
  %v1645 = vunpack.c.l.b16 %v1591
  %v1646 = vpack.c.b16 %v1631, %v1630
  %v1647 = vpack.c.b16 %v1633, %v1632
  %v1648 = vpack.c.b16 %v1635, %v1634
  %v1649 = vpack.c.b16 %v1637, %v1636
  %v1650 = vpack.c.b16 %v1639, %v1638
  %v1651 = vpack.c.b16 %v1641, %v1640
  %v1652 = vpack.c.b16 %v1643, %v1642
  %v1653 = vpack.c.b16 %v1645, %v1644
  %v1662 = vunpack.c.l.b16 %v1593
  %v1663 = vunpack.c.h.b16 %v1593
  %v1664 = vunpack.c.l.b16 %v1594
  %v1665 = vunpack.c.h.b16 %v1594
  %v1666 = vunpack.c.l.b16 %v1595
  %v1667 = vunpack.c.h.b16 %v1595
  %v1668 = vunpack.c.l.b16 %v1596
  %v1669 = vunpack.c.h.b16 %v1596
  %v1670 = vunpack.c.l.b16 %v1597
  %v1671 = vunpack.c.h.b16 %v1597
  %v1672 = vunpack.c.l.b16 %v1598
  %v1673 = vunpack.c.h.b16 %v1598
  %v1674 = vunpack.c.l.b16 %v1599
  %v1675 = vunpack.c.h.b16 %v1599
  %v1676 = vunpack.c.l.b16 %v1600
  %v1677 = vunpack.c.h.b16 %v1600
  %v1678 = vpack.c.b16 %v1664, %v1662
  %v1679 = vpack.c.b16 %v1665, %v1663
  %v1680 = vpack.c.b16 %v1668, %v1666
  %v1681 = vpack.c.b16 %v1669, %v1667
  %v1682 = vpack.c.b16 %v1672, %v1670
  %v1683 = vpack.c.b16 %v1673, %v1671
  %v1684 = vpack.c.b16 %v1676, %v1674
  %v1685 = vpack.c.b16 %v1677, %v1675
  %v1695 = vsel %vm141, %v1646, 0
  %v1698 = vsel %vm141, %v1647, 0
  %v1701 = vsel %vm141, %v1648, 0
  %v1704 = vsel %vm141, %v1649, 0
  %v1707 = vsel %vm141, %v1650, 0
  %v1710 = vsel %vm141, %v1651, 0
  %v1713 = vsel %vm141, %v1652, 0
  %v1716 = vsel %vm141, %v1653, 0
  %1718 = vmatprep.subr.bf16.mxu0 0
  %1719 = vmatpush1.bf16.msra.mxu0 0
  %1720 = vmatprep.subr.bf16.mxu0 0
  %1721 = vmatpush1.bf16.msra.mxu0 0
  %1722 = vmatprep.subr.bf16.mxu0 0
  %1723 = vmatpush1.bf16.msra.mxu0 0
  %1724 = vmatprep.subr.bf16.mxu0 0
  %1725 = vmatpush1.bf16.msra.mxu0 0
  %1726 = vmatprep.subr.bf16.mxu0 %v1685
  %1727 = vmatpush1.bf16.msra.mxu0 %v1684
  %1728 = vmatprep.subr.bf16.mxu0 %v1683
  %1729 = vmatpush1.bf16.msra.mxu0 %v1682
  %1730 = vmatprep.subr.bf16.mxu0 %v1681
  %1731 = vmatpush1.bf16.msra.mxu0 %v1680
  %1732 = vmatprep.subr.bf16.mxu0 %v1679
  %1733 = vmatpush1.bf16.msra.mxu0 %v1678
  %1734 = vmatprep.subr.bf16.mxu0 0
  %1735 = vmatpush2.bf16.msra.mxu0 0
  %1736 = vmatprep.subr.bf16.mxu0 0
  %1737 = vmatpush2.bf16.msra.mxu0 0
  %1738 = vmatprep.subr.bf16.mxu0 0
  %1739 = vmatpush2.bf16.msra.mxu0 0
  %1740 = vmatprep.subr.bf16.mxu0 0
  %1741 = vmatpush2.bf16.msra.mxu0 0
  %1742 = vmatprep.subr.bf16.mxu0 0
  %1743 = vmatpush2.bf16.msra.mxu0 0
  %1744 = vmatprep.subr.bf16.mxu0 0
  %1745 = vmatpush2.bf16.msra.mxu0 0
  %1746 = vmatprep.subr.bf16.mxu0 0
  %1747 = vmatpush2.bf16.msra.mxu0 0
  %1748 = vmatprep.subr.bf16.mxu0 0
  %1749 = vmatpush2.bf16.msra.mxu0 0
  %1750 = vmatprep.mubr.bf16.mxu0 0
  %1751 = vmatmul.mubr.bf16.gmra.mxu0 %v1695
  %v1752 = vpop.f32.mrf.mxu0
  %v1753 = vadd.f32 %v1607, %v1752
  %v1754 = vpop.f32.mrf.mxu0
  %v1755 = vadd.f32 %v1611, %v1754
  %v1756 = vpop.f32.mrf.mxu0
  %v1757 = vadd.f32 %v1607, %v1756
  %v1758 = vpop.f32.mrf.mxu0
  %v1759 = vadd.f32 %v1611, %v1758
  %1760 = vmatprep.mubr.bf16.mxu0 0
  %1761 = vmatmul.mubr.bf16.gmra.mxu0 %v1698
  %v1762 = vpop.f32.mrf.mxu0
  %v1763 = vadd.f32 %v1607, %v1762
  %v1764 = vpop.f32.mrf.mxu0
  %v1765 = vadd.f32 %v1611, %v1764
  %v1766 = vpop.f32.mrf.mxu0
  %v1767 = vadd.f32 %v1607, %v1766
  %v1768 = vpop.f32.mrf.mxu0
  %v1769 = vadd.f32 %v1611, %v1768
  %1770 = vmatprep.mubr.bf16.mxu0 0
  %1771 = vmatmul.mubr.bf16.gmra.mxu0 %v1701
  %v1772 = vpop.f32.mrf.mxu0
  %v1773 = vadd.f32 %v1607, %v1772
  %v1774 = vpop.f32.mrf.mxu0
  %v1775 = vadd.f32 %v1611, %v1774
  %v1776 = vpop.f32.mrf.mxu0
  %v1777 = vadd.f32 %v1607, %v1776
  %v1778 = vpop.f32.mrf.mxu0
  %v1779 = vadd.f32 %v1611, %v1778
  %1780 = vmatprep.mubr.bf16.mxu0 0
  %1781 = vmatmul.mubr.bf16.gmra.mxu0 %v1704
  %v1782 = vpop.f32.mrf.mxu0
  %v1783 = vadd.f32 %v1607, %v1782
  %v1784 = vpop.f32.mrf.mxu0
  %v1785 = vadd.f32 %v1611, %v1784
  %v1786 = vpop.f32.mrf.mxu0
  %v1787 = vadd.f32 %v1607, %v1786
  %v1788 = vpop.f32.mrf.mxu0
  %v1789 = vadd.f32 %v1611, %v1788
  %1790 = vmatprep.mubr.bf16.mxu0 0
  %1791 = vmatmul.mubr.bf16.gmra.mxu0 %v1707
  %v1792 = vpop.f32.mrf.mxu0
  %v1793 = vadd.f32 %v1607, %v1792
  %v1794 = vpop.f32.mrf.mxu0
  %v1795 = vadd.f32 %v1611, %v1794
  %v1796 = vpop.f32.mrf.mxu0
  %v1797 = vadd.f32 %v1607, %v1796
  %v1798 = vpop.f32.mrf.mxu0
  %v1799 = vadd.f32 %v1611, %v1798
  %1800 = vmatprep.mubr.bf16.mxu0 0
  %1801 = vmatmul.mubr.bf16.gmra.mxu0 %v1710
  %v1802 = vpop.f32.mrf.mxu0
  %v1803 = vadd.f32 %v1607, %v1802
  %v1804 = vpop.f32.mrf.mxu0
  %v1805 = vadd.f32 %v1611, %v1804
  %v1806 = vpop.f32.mrf.mxu0
  %v1807 = vadd.f32 %v1607, %v1806
  %v1808 = vpop.f32.mrf.mxu0
  %v1809 = vadd.f32 %v1611, %v1808
  %1810 = vmatprep.mubr.bf16.mxu0 0
  %1811 = vmatmul.mubr.bf16.gmra.mxu0 %v1713
  %v1812 = vpop.f32.mrf.mxu0
  %v1813 = vadd.f32 %v1607, %v1812
  %v1814 = vpop.f32.mrf.mxu0
  %v1815 = vadd.f32 %v1611, %v1814
  %v1816 = vpop.f32.mrf.mxu0
  %v1817 = vadd.f32 %v1607, %v1816
  %v1818 = vpop.f32.mrf.mxu0
  %v1819 = vadd.f32 %v1611, %v1818
  %1820 = vmatprep.mubr.bf16.mxu0 0
  %1821 = vmatmul.mubr.bf16.gmra.mxu0 %v1716
  %v1822 = vpop.f32.mrf.mxu0
  %v1823 = vadd.f32 %v1607, %v1822
  %v1824 = vpop.f32.mrf.mxu0
  %v1825 = vadd.f32 %v1611, %v1824
  %v1826 = vpop.f32.mrf.mxu0
  %v1827 = vadd.f32 %v1607, %v1826
  %v1828 = vpop.f32.mrf.mxu0
  %v1829 = vadd.f32 %v1611, %v1828
  %1830 = vdwg.mxu0
  %1831 = vst [vmem:[#allocation3] sm:$0xff] %v1753
  %1832 = vst [vmem:[#allocation3 + $0x8] sm:$0xff] %v1755
  %1833 = vst [vmem:[#allocation3 + $0x10] sm:$0xff] %v1757
  %1834 = vst [vmem:[#allocation3 + $0x18] sm:$0xff] %v1759
  %1835 = vst [vmem:[#allocation3 + $0x20] sm:$0xff] %v1763
  %1836 = vst [vmem:[#allocation3 + $0x28] sm:$0xff] %v1765
  %1837 = vst [vmem:[#allocation3 + $0x30] sm:$0xff] %v1767
  %1838 = vst [vmem:[#allocation3 + $0x38] sm:$0xff] %v1769
  %1839 = vst [vmem:[#allocation3 + $0x40] sm:$0xff] %v1773
  %1840 = vst [vmem:[#allocation3 + $0x48] sm:$0xff] %v1775
  %1841 = vst [vmem:[#allocation3 + $0x50] sm:$0xff] %v1777
  %1842 = vst [vmem:[#allocation3 + $0x58] sm:$0xff] %v1779
  %1843 = vst [vmem:[#allocation3 + $0x60] sm:$0xff] %v1783
  %1844 = vst [vmem:[#allocation3 + $0x68] sm:$0xff] %v1785
  %1845 = vst [vmem:[#allocation3 + $0x70] sm:$0xff] %v1787
  %1846 = vst [vmem:[#allocation3 + $0x78] sm:$0xff] %v1789
  %1847 = vst [vmem:[#allocation3 + $0x80] sm:$0xff] %v1793
  %1848 = vst [vmem:[#allocation3 + $0x88] sm:$0xff] %v1795
  %1849 = vst [vmem:[#allocation3 + $0x90] sm:$0xff] %v1797
  %1850 = vst [vmem:[#allocation3 + $0x98] sm:$0xff] %v1799
  %1851 = vst [vmem:[#allocation3 + $0xa0] sm:$0xff] %v1803
  %1852 = vst [vmem:[#allocation3 + $0xa8] sm:$0xff] %v1805
  %1853 = vst [vmem:[#allocation3 + $0xb0] sm:$0xff] %v1807
  %1854 = vst [vmem:[#allocation3 + $0xb8] sm:$0xff] %v1809
  %1855 = vst [vmem:[#allocation3 + $0xc0] sm:$0xff] %v1813
  %1856 = vst [vmem:[#allocation3 + $0xc8] sm:$0xff] %v1815
  %1857 = vst [vmem:[#allocation3 + $0xd0] sm:$0xff] %v1817
  %1858 = vst [vmem:[#allocation3 + $0xd8] sm:$0xff] %v1819
  %1859 = vst [vmem:[#allocation3 + $0xe0] sm:$0xff] %v1823
  %1860 = vst [vmem:[#allocation3 + $0xe8] sm:$0xff] %v1825
  %1861 = vst [vmem:[#allocation3 + $0xf0] sm:$0xff] %v1827
  %1862 = vst [vmem:[#allocation3 + $0xf8] sm:$0xff] %v1829
  %v1863 = vld [vmem:[#allocation3] sm:$0xff]
  %v1864 = vld [vmem:[#allocation3 + $0x8] sm:$0xff]
  %v1865 = vld [vmem:[#allocation3 + $0x10] sm:$0xff]
  %v1866 = vld [vmem:[#allocation3 + $0x18] sm:$0xff]
  %s1867 = scalar_lea.vmem %s2, 64
  %v1868 = vld [vmem:[%s1867] sm:$0xff]
  %v1869 = vld [vmem:[%s1867 + $0x8] sm:$0xff]
  %v1870 = vld [vmem:[%s1867 + $0x10] sm:$0xff]
  %v1871 = vld [vmem:[%s1867 + $0x18] sm:$0xff]
  %v1872 = vld [vmem:[%s1867 + $0x20] sm:$0xff]
  %v1873 = vld [vmem:[%s1867 + $0x28] sm:$0xff]
  %v1874 = vld [vmem:[%s1867 + $0x30] sm:$0xff]
  %v1875 = vld [vmem:[%s1867 + $0x38] sm:$0xff]
  %v1884 = vunpack.c.l.b16 %v1868
  %v1885 = vunpack.c.h.b16 %v1868
  %v1886 = vunpack.c.l.b16 %v1869
  %v1887 = vunpack.c.h.b16 %v1869
  %v1888 = vunpack.c.l.b16 %v1870
  %v1889 = vunpack.c.h.b16 %v1870
  %v1890 = vunpack.c.l.b16 %v1871
  %v1891 = vunpack.c.h.b16 %v1871
  %v1892 = vunpack.c.l.b16 %v1872
  %v1893 = vunpack.c.h.b16 %v1872
  %v1894 = vunpack.c.l.b16 %v1873
  %v1895 = vunpack.c.h.b16 %v1873
  %v1896 = vunpack.c.l.b16 %v1874
  %v1897 = vunpack.c.h.b16 %v1874
  %v1898 = vunpack.c.l.b16 %v1875
  %v1899 = vunpack.c.h.b16 %v1875
  %v1900 = vpack.c.b16 %v1886, %v1884
  %v1901 = vpack.c.b16 %v1887, %v1885
  %v1902 = vpack.c.b16 %v1890, %v1888
  %v1903 = vpack.c.b16 %v1891, %v1889
  %v1904 = vpack.c.b16 %v1894, %v1892
  %v1905 = vpack.c.b16 %v1895, %v1893
  %v1906 = vpack.c.b16 %v1898, %v1896
  %v1907 = vpack.c.b16 %v1899, %v1897
  %1916 = vmatprep.subr.bf16.mxu0 0
  %1917 = vmatpush1.bf16.msra.mxu0 0
  %1918 = vmatprep.subr.bf16.mxu0 0
  %1919 = vmatpush1.bf16.msra.mxu0 0
  %1920 = vmatprep.subr.bf16.mxu0 0
  %1921 = vmatpush1.bf16.msra.mxu0 0
  %1922 = vmatprep.subr.bf16.mxu0 0
  %1923 = vmatpush1.bf16.msra.mxu0 0
  %1924 = vmatprep.subr.bf16.mxu0 %v1907
  %1925 = vmatpush1.bf16.msra.mxu0 %v1906
  %1926 = vmatprep.subr.bf16.mxu0 %v1905
  %1927 = vmatpush1.bf16.msra.mxu0 %v1904
  %1928 = vmatprep.subr.bf16.mxu0 %v1903
  %1929 = vmatpush1.bf16.msra.mxu0 %v1902
  %1930 = vmatprep.subr.bf16.mxu0 %v1901
  %1931 = vmatpush1.bf16.msra.mxu0 %v1900
  %1932 = vmatprep.subr.bf16.mxu0 0
  %1933 = vmatpush2.bf16.msra.mxu0 0
  %1934 = vmatprep.subr.bf16.mxu0 0
  %1935 = vmatpush2.bf16.msra.mxu0 0
  %1936 = vmatprep.subr.bf16.mxu0 0
  %1937 = vmatpush2.bf16.msra.mxu0 0
  %1938 = vmatprep.subr.bf16.mxu0 0
  %1939 = vmatpush2.bf16.msra.mxu0 0
  %1940 = vmatprep.subr.bf16.mxu0 0
  %1941 = vmatpush2.bf16.msra.mxu0 0
  %1942 = vmatprep.subr.bf16.mxu0 0
  %1943 = vmatpush2.bf16.msra.mxu0 0
  %1944 = vmatprep.subr.bf16.mxu0 0
  %1945 = vmatpush2.bf16.msra.mxu0 0
  %1946 = vmatprep.subr.bf16.mxu0 0
  %1947 = vmatpush2.bf16.msra.mxu0 0
  %1948 = vmatprep.mubr.bf16.mxu0 0
  %1949 = vmatmul.mubr.bf16.gmra.mxu0 %v364
  %v1950 = vpop.f32.mrf.mxu0
  %v1951 = vadd.f32 0.0, %v1950
  %v1952 = vpop.f32.mrf.mxu0
  %v1953 = vadd.f32 0.0, %v1952
  %v1954 = vpop.f32.mrf.mxu0
  %v1955 = vadd.f32 0.0, %v1954
  %v1956 = vpop.f32.mrf.mxu0
  %v1957 = vadd.f32 0.0, %v1956
  %1958 = vdwg.mxu0
  %v1959 = vadd.f32 %v1863, %v1951
  %v1960 = vadd.f32 %v1864, %v1953
  %v1961 = vadd.f32 %v1865, %v1955
  %v1962 = vadd.f32 %v1866, %v1957
  %v1963 = vtanh.pop %v1959
  %v1964 = vtanh.pop %v1960
  %v1965 = vtanh.pop %v1961
  %v1966 = vtanh.pop %v1962
  %v1967 = vadd.f32 %v1963, 1.0
  %v1968 = vadd.f32 %v1965, 1.0
  %v1969 = vmul.f32 %v1967, 0.5
  %v1970 = vmul.f32 %v1968, 0.5
  %v1971 = vadd.f32 %v1964, 1.0
  %v1972 = vadd.f32 %v1966, 1.0
  %v1973 = vmul.f32 %v1971, 0.5
  %v1974 = vmul.f32 %v1972, 0.5
  %v1975 = vmul.f32 %v1969, 0.0
  %v1976 = vmul.f32 %v1970, 0.0
  %1979 = vrot.lane.b32.xlu0 %v1964, 64
  %v1980 = vpop.permute.xlu0 %1979
  %1981 = vrot.lane.b32.xlu0 %v1966, 64
  %v1982 = vpop.permute.xlu0 %1981
  %v1985 = vmul.f32 %v1969, %v1980
  %v1986 = vmul.f32 %v1970, %v1982
  %1989 = vrot.lane.b32.xlu0 %v1985, 64
  %v1990 = vpop.permute.xlu0 %1989
  %1991 = vrot.lane.b32.xlu0 %v1986, 64
  %v1992 = vpop.permute.xlu0 %1991
  %v1995 = vadd.f32 %v1975, %v1990
  %v1996 = vadd.f32 %v1976, %v1992
  %v1997 = vtanh.pop %v1995
  %v1998 = vtanh.pop %v1996
  %2001 = vrot.lane.b32.xlu0 %v1997, 64
  %v2002 = vpop.permute.xlu0 %2001
  %2003 = vrot.lane.b32.xlu0 %v1998, 64
  %v2004 = vpop.permute.xlu0 %2003
  %v2007 = vmul.f32 %v1973, %v2002
  %v2008 = vmul.f32 %v1974, %v2004
  %v2009 = vpack.c.bf16 %v2008, %v2007
  %v2011 = vunpack.c.l.b16 %v2009
  %v2012 = vunpack.c.h.b16 %v2009
  %v2013 = vpack.c.b16 %v2011, %v2011
  %v2014 = vpack.c.b16 %v2012, %v2012
  %2017 = vst.msk [vmem:[#allocation2] sm:$0xf] %vm467, %v2013
  %2018 = vst.msk [vmem:[#allocation2 + $0x4] sm:$0xf] %vm467, %v2014
  %v2019 = vld [vmem:[#allocation3 + $0x20] sm:$0xff]
  %v2020 = vld [vmem:[#allocation3 + $0x28] sm:$0xff]
  %v2021 = vld [vmem:[#allocation3 + $0x30] sm:$0xff]
  %v2022 = vld [vmem:[#allocation3 + $0x38] sm:$0xff]
  %v2023 = vld [vmem:[%s1867] sm:$0xff]
  %v2024 = vld [vmem:[%s1867 + $0x8] sm:$0xff]
  %v2025 = vld [vmem:[%s1867 + $0x10] sm:$0xff]
  %v2026 = vld [vmem:[%s1867 + $0x18] sm:$0xff]
  %v2027 = vld [vmem:[%s1867 + $0x20] sm:$0xff]
  %v2028 = vld [vmem:[%s1867 + $0x28] sm:$0xff]
  %v2029 = vld [vmem:[%s1867 + $0x30] sm:$0xff]
  %v2030 = vld [vmem:[%s1867 + $0x38] sm:$0xff]
  %v2039 = vunpack.c.l.b16 %v2023
  %v2040 = vunpack.c.h.b16 %v2023
  %v2041 = vunpack.c.l.b16 %v2024
  %v2042 = vunpack.c.h.b16 %v2024
  %v2043 = vunpack.c.l.b16 %v2025
  %v2044 = vunpack.c.h.b16 %v2025
  %v2045 = vunpack.c.l.b16 %v2026
  %v2046 = vunpack.c.h.b16 %v2026
  %v2047 = vunpack.c.l.b16 %v2027
  %v2048 = vunpack.c.h.b16 %v2027
  %v2049 = vunpack.c.l.b16 %v2028
  %v2050 = vunpack.c.h.b16 %v2028
  %v2051 = vunpack.c.l.b16 %v2029
  %v2052 = vunpack.c.h.b16 %v2029
  %v2053 = vunpack.c.l.b16 %v2030
  %v2054 = vunpack.c.h.b16 %v2030
  %v2055 = vpack.c.b16 %v2041, %v2039
  %v2056 = vpack.c.b16 %v2042, %v2040
  %v2057 = vpack.c.b16 %v2045, %v2043
  %v2058 = vpack.c.b16 %v2046, %v2044
  %v2059 = vpack.c.b16 %v2049, %v2047
  %v2060 = vpack.c.b16 %v2050, %v2048
  %v2061 = vpack.c.b16 %v2053, %v2051
  %v2062 = vpack.c.b16 %v2054, %v2052
  %v2072 = vsel %vm141, %v2009, 0
  %2074 = vmatprep.subr.bf16.mxu0 0
  %2075 = vmatpush1.bf16.msra.mxu0 0
  %2076 = vmatprep.subr.bf16.mxu0 0
  %2077 = vmatpush1.bf16.msra.mxu0 0
  %2078 = vmatprep.subr.bf16.mxu0 0
  %2079 = vmatpush1.bf16.msra.mxu0 0
  %2080 = vmatprep.subr.bf16.mxu0 0
  %2081 = vmatpush1.bf16.msra.mxu0 0
  %2082 = vmatprep.subr.bf16.mxu0 %v2062
  %2083 = vmatpush1.bf16.msra.mxu0 %v2061
  %2084 = vmatprep.subr.bf16.mxu0 %v2060
  %2085 = vmatpush1.bf16.msra.mxu0 %v2059
  %2086 = vmatprep.subr.bf16.mxu0 %v2058
  %2087 = vmatpush1.bf16.msra.mxu0 %v2057
  %2088 = vmatprep.subr.bf16.mxu0 %v2056
  %2089 = vmatpush1.bf16.msra.mxu0 %v2055
  %2090 = vmatprep.subr.bf16.mxu0 0
  %2091 = vmatpush2.bf16.msra.mxu0 0
  %2092 = vmatprep.subr.bf16.mxu0 0
  %2093 = vmatpush2.bf16.msra.mxu0 0
  %2094 = vmatprep.subr.bf16.mxu0 0
  %2095 = vmatpush2.bf16.msra.mxu0 0
  %2096 = vmatprep.subr.bf16.mxu0 0
  %2097 = vmatpush2.bf16.msra.mxu0 0
  %2098 = vmatprep.subr.bf16.mxu0 0
  %2099 = vmatpush2.bf16.msra.mxu0 0
  %2100 = vmatprep.subr.bf16.mxu0 0
  %2101 = vmatpush2.bf16.msra.mxu0 0
  %2102 = vmatprep.subr.bf16.mxu0 0
  %2103 = vmatpush2.bf16.msra.mxu0 0
  %2104 = vmatprep.subr.bf16.mxu0 0
  %2105 = vmatpush2.bf16.msra.mxu0 0
  %2106 = vmatprep.mubr.bf16.mxu0 0
  %2107 = vmatmul.mubr.bf16.gmra.mxu0 %v2072
  %v2108 = vpop.f32.mrf.mxu0
  %v2109 = vadd.f32 0.0, %v2108
  %v2110 = vpop.f32.mrf.mxu0
  %v2111 = vadd.f32 0.0, %v2110
  %v2112 = vpop.f32.mrf.mxu0
  %v2113 = vadd.f32 0.0, %v2112
  %v2114 = vpop.f32.mrf.mxu0
  %v2115 = vadd.f32 0.0, %v2114
  %2116 = vdwg.mxu0
  %v2117 = vadd.f32 %v2019, %v2109
  %v2118 = vadd.f32 %v2020, %v2111
  %v2119 = vadd.f32 %v2021, %v2113
  %v2120 = vadd.f32 %v2022, %v2115
  %v2121 = vtanh.pop %v2117
  %v2122 = vtanh.pop %v2118
  %v2123 = vtanh.pop %v2119
  %v2124 = vtanh.pop %v2120
  %v2125 = vadd.f32 %v2121, 1.0
  %v2126 = vadd.f32 %v2123, 1.0
  %v2127 = vmul.f32 %v2125, 0.5
  %v2128 = vmul.f32 %v2126, 0.5
  %v2129 = vadd.f32 %v2122, 1.0
  %v2130 = vadd.f32 %v2124, 1.0
  %v2131 = vmul.f32 %v2129, 0.5
  %v2132 = vmul.f32 %v2130, 0.5
  %v2133 = vmul.f32 %v2127, %v1995
  %v2134 = vmul.f32 %v2128, %v1996
  %2137 = vrot.lane.b32.xlu0 %v2122, 64
  %v2138 = vpop.permute.xlu0 %2137
  %2139 = vrot.lane.b32.xlu0 %v2124, 64
  %v2140 = vpop.permute.xlu0 %2139
  %v2143 = vmul.f32 %v2127, %v2138
  %v2144 = vmul.f32 %v2128, %v2140
  %2147 = vrot.lane.b32.xlu0 %v2143, 64
  %v2148 = vpop.permute.xlu0 %2147
  %2149 = vrot.lane.b32.xlu0 %v2144, 64
  %v2150 = vpop.permute.xlu0 %2149
  %v2153 = vadd.f32 %v2133, %v2148
  %v2154 = vadd.f32 %v2134, %v2150
  %v2155 = vtanh.pop %v2153
  %v2156 = vtanh.pop %v2154
  %2159 = vrot.lane.b32.xlu0 %v2155, 64
  %v2160 = vpop.permute.xlu0 %2159
  %2161 = vrot.lane.b32.xlu0 %v2156, 64
  %v2162 = vpop.permute.xlu0 %2161
  %v2165 = vmul.f32 %v2131, %v2160
  %v2166 = vmul.f32 %v2132, %v2162
  %v2167 = vpack.c.bf16 %v2166, %v2165
  %v2169 = vunpack.c.l.b16 %v2167
  %v2170 = vunpack.c.h.b16 %v2167
  %v2171 = vpack.c.b16 %v2169, %v2169
  %v2172 = vpack.c.b16 %v2170, %v2170
  %2175 = vst.msk [vmem:[#allocation2 + $0x8] sm:$0xf] %vm467, %v2171
  %2176 = vst.msk [vmem:[#allocation2 + $0xc] sm:$0xf] %vm467, %v2172
  %v2177 = vld [vmem:[#allocation3 + $0x40] sm:$0xff]
  %v2178 = vld [vmem:[#allocation3 + $0x48] sm:$0xff]
  %v2179 = vld [vmem:[#allocation3 + $0x50] sm:$0xff]
  %v2180 = vld [vmem:[#allocation3 + $0x58] sm:$0xff]
  %v2181 = vld [vmem:[%s1867] sm:$0xff]
  %v2182 = vld [vmem:[%s1867 + $0x8] sm:$0xff]
  %v2183 = vld [vmem:[%s1867 + $0x10] sm:$0xff]
  %v2184 = vld [vmem:[%s1867 + $0x18] sm:$0xff]
  %v2185 = vld [vmem:[%s1867 + $0x20] sm:$0xff]
  %v2186 = vld [vmem:[%s1867 + $0x28] sm:$0xff]
  %v2187 = vld [vmem:[%s1867 + $0x30] sm:$0xff]
  %v2188 = vld [vmem:[%s1867 + $0x38] sm:$0xff]
  %v2197 = vunpack.c.l.b16 %v2181
  %v2198 = vunpack.c.h.b16 %v2181
  %v2199 = vunpack.c.l.b16 %v2182
  %v2200 = vunpack.c.h.b16 %v2182
  %v2201 = vunpack.c.l.b16 %v2183
  %v2202 = vunpack.c.h.b16 %v2183
  %v2203 = vunpack.c.l.b16 %v2184
  %v2204 = vunpack.c.h.b16 %v2184
  %v2205 = vunpack.c.l.b16 %v2185
  %v2206 = vunpack.c.h.b16 %v2185
  %v2207 = vunpack.c.l.b16 %v2186
  %v2208 = vunpack.c.h.b16 %v2186
  %v2209 = vunpack.c.l.b16 %v2187
  %v2210 = vunpack.c.h.b16 %v2187
  %v2211 = vunpack.c.l.b16 %v2188
  %v2212 = vunpack.c.h.b16 %v2188
  %v2213 = vpack.c.b16 %v2199, %v2197
  %v2214 = vpack.c.b16 %v2200, %v2198
  %v2215 = vpack.c.b16 %v2203, %v2201
  %v2216 = vpack.c.b16 %v2204, %v2202
  %v2217 = vpack.c.b16 %v2207, %v2205
  %v2218 = vpack.c.b16 %v2208, %v2206
  %v2219 = vpack.c.b16 %v2211, %v2209
  %v2220 = vpack.c.b16 %v2212, %v2210
  %v2230 = vsel %vm141, %v2167, 0
  %2232 = vmatprep.subr.bf16.mxu0 0
  %2233 = vmatpush1.bf16.msra.mxu0 0
  %2234 = vmatprep.subr.bf16.mxu0 0
  %2235 = vmatpush1.bf16.msra.mxu0 0
  %2236 = vmatprep.subr.bf16.mxu0 0
  %2237 = vmatpush1.bf16.msra.mxu0 0
  %2238 = vmatprep.subr.bf16.mxu0 0
  %2239 = vmatpush1.bf16.msra.mxu0 0
  %2240 = vmatprep.subr.bf16.mxu0 %v2220
  %2241 = vmatpush1.bf16.msra.mxu0 %v2219
  %2242 = vmatprep.subr.bf16.mxu0 %v2218
  %2243 = vmatpush1.bf16.msra.mxu0 %v2217
  %2244 = vmatprep.subr.bf16.mxu0 %v2216
  %2245 = vmatpush1.bf16.msra.mxu0 %v2215
  %2246 = vmatprep.subr.bf16.mxu0 %v2214
  %2247 = vmatpush1.bf16.msra.mxu0 %v2213
  %2248 = vmatprep.subr.bf16.mxu0 0
  %2249 = vmatpush2.bf16.msra.mxu0 0
  %2250 = vmatprep.subr.bf16.mxu0 0
  %2251 = vmatpush2.bf16.msra.mxu0 0
  %2252 = vmatprep.subr.bf16.mxu0 0
  %2253 = vmatpush2.bf16.msra.mxu0 0
  %2254 = vmatprep.subr.bf16.mxu0 0
  %2255 = vmatpush2.bf16.msra.mxu0 0
  %2256 = vmatprep.subr.bf16.mxu0 0
  %2257 = vmatpush2.bf16.msra.mxu0 0
  %2258 = vmatprep.subr.bf16.mxu0 0
  %2259 = vmatpush2.bf16.msra.mxu0 0
  %2260 = vmatprep.subr.bf16.mxu0 0
  %2261 = vmatpush2.bf16.msra.mxu0 0
  %2262 = vmatprep.subr.bf16.mxu0 0
  %2263 = vmatpush2.bf16.msra.mxu0 0
  %2264 = vmatprep.mubr.bf16.mxu0 0
  %2265 = vmatmul.mubr.bf16.gmra.mxu0 %v2230
  %v2266 = vpop.f32.mrf.mxu0
  %v2267 = vadd.f32 0.0, %v2266
  %v2268 = vpop.f32.mrf.mxu0
  %v2269 = vadd.f32 0.0, %v2268
  %v2270 = vpop.f32.mrf.mxu0
  %v2271 = vadd.f32 0.0, %v2270
  %v2272 = vpop.f32.mrf.mxu0
  %v2273 = vadd.f32 0.0, %v2272
  %2274 = vdwg.mxu0
  %v2275 = vadd.f32 %v2177, %v2267
  %v2276 = vadd.f32 %v2178, %v2269
  %v2277 = vadd.f32 %v2179, %v2271
  %v2278 = vadd.f32 %v2180, %v2273
  %v2279 = vtanh.pop %v2275
  %v2280 = vtanh.pop %v2276
  %v2281 = vtanh.pop %v2277
  %v2282 = vtanh.pop %v2278
  %v2283 = vadd.f32 %v2279, 1.0
  %v2284 = vadd.f32 %v2281, 1.0
  %v2285 = vmul.f32 %v2283, 0.5
  %v2286 = vmul.f32 %v2284, 0.5
  %v2287 = vadd.f32 %v2280, 1.0
  %v2288 = vadd.f32 %v2282, 1.0
  %v2289 = vmul.f32 %v2287, 0.5
  %v2290 = vmul.f32 %v2288, 0.5
  %v2291 = vmul.f32 %v2285, %v2153
  %v2292 = vmul.f32 %v2286, %v2154
  %2295 = vrot.lane.b32.xlu0 %v2280, 64
  %v2296 = vpop.permute.xlu0 %2295
  %2297 = vrot.lane.b32.xlu0 %v2282, 64
  %v2298 = vpop.permute.xlu0 %2297
  %v2301 = vmul.f32 %v2285, %v2296
  %v2302 = vmul.f32 %v2286, %v2298
  %2305 = vrot.lane.b32.xlu0 %v2301, 64
  %v2306 = vpop.permute.xlu0 %2305
  %2307 = vrot.lane.b32.xlu0 %v2302, 64
  %v2308 = vpop.permute.xlu0 %2307
  %v2311 = vadd.f32 %v2291, %v2306
  %v2312 = vadd.f32 %v2292, %v2308
  %v2313 = vtanh.pop %v2311
  %v2314 = vtanh.pop %v2312
  %2317 = vrot.lane.b32.xlu0 %v2313, 64
  %v2318 = vpop.permute.xlu0 %2317
  %2319 = vrot.lane.b32.xlu0 %v2314, 64
  %v2320 = vpop.permute.xlu0 %2319
  %v2323 = vmul.f32 %v2289, %v2318
  %v2324 = vmul.f32 %v2290, %v2320
  %v2325 = vpack.c.bf16 %v2324, %v2323
  %v2327 = vunpack.c.l.b16 %v2325
  %v2328 = vunpack.c.h.b16 %v2325
  %v2329 = vpack.c.b16 %v2327, %v2327
  %v2330 = vpack.c.b16 %v2328, %v2328
  %2333 = vst.msk [vmem:[#allocation2 + $0x10] sm:$0xf] %vm467, %v2329
  %2334 = vst.msk [vmem:[#allocation2 + $0x14] sm:$0xf] %vm467, %v2330
  %v2335 = vld [vmem:[#allocation3 + $0x60] sm:$0xff]
  %v2336 = vld [vmem:[#allocation3 + $0x68] sm:$0xff]
  %v2337 = vld [vmem:[#allocation3 + $0x70] sm:$0xff]
  %v2338 = vld [vmem:[#allocation3 + $0x78] sm:$0xff]
  %v2339 = vld [vmem:[%s1867] sm:$0xff]
  %v2340 = vld [vmem:[%s1867 + $0x8] sm:$0xff]
  %v2341 = vld [vmem:[%s1867 + $0x10] sm:$0xff]
  %v2342 = vld [vmem:[%s1867 + $0x18] sm:$0xff]
  %v2343 = vld [vmem:[%s1867 + $0x20] sm:$0xff]
  %v2344 = vld [vmem:[%s1867 + $0x28] sm:$0xff]
  %v2345 = vld [vmem:[%s1867 + $0x30] sm:$0xff]
  %v2346 = vld [vmem:[%s1867 + $0x38] sm:$0xff]
  %v2355 = vunpack.c.l.b16 %v2339
  %v2356 = vunpack.c.h.b16 %v2339
  %v2357 = vunpack.c.l.b16 %v2340
  %v2358 = vunpack.c.h.b16 %v2340
  %v2359 = vunpack.c.l.b16 %v2341
  %v2360 = vunpack.c.h.b16 %v2341
  %v2361 = vunpack.c.l.b16 %v2342
  %v2362 = vunpack.c.h.b16 %v2342
  %v2363 = vunpack.c.l.b16 %v2343
  %v2364 = vunpack.c.h.b16 %v2343
  %v2365 = vunpack.c.l.b16 %v2344
  %v2366 = vunpack.c.h.b16 %v2344
  %v2367 = vunpack.c.l.b16 %v2345
  %v2368 = vunpack.c.h.b16 %v2345
  %v2369 = vunpack.c.l.b16 %v2346
  %v2370 = vunpack.c.h.b16 %v2346
  %v2371 = vpack.c.b16 %v2357, %v2355
  %v2372 = vpack.c.b16 %v2358, %v2356
  %v2373 = vpack.c.b16 %v2361, %v2359
  %v2374 = vpack.c.b16 %v2362, %v2360
  %v2375 = vpack.c.b16 %v2365, %v2363
  %v2376 = vpack.c.b16 %v2366, %v2364
  %v2377 = vpack.c.b16 %v2369, %v2367
  %v2378 = vpack.c.b16 %v2370, %v2368
  %v2388 = vsel %vm141, %v2325, 0
  %2390 = vmatprep.subr.bf16.mxu0 0
  %2391 = vmatpush1.bf16.msra.mxu0 0
  %2392 = vmatprep.subr.bf16.mxu0 0
  %2393 = vmatpush1.bf16.msra.mxu0 0
  %2394 = vmatprep.subr.bf16.mxu0 0
  %2395 = vmatpush1.bf16.msra.mxu0 0
  %2396 = vmatprep.subr.bf16.mxu0 0
  %2397 = vmatpush1.bf16.msra.mxu0 0
  %2398 = vmatprep.subr.bf16.mxu0 %v2378
  %2399 = vmatpush1.bf16.msra.mxu0 %v2377
  %2400 = vmatprep.subr.bf16.mxu0 %v2376
  %2401 = vmatpush1.bf16.msra.mxu0 %v2375
  %2402 = vmatprep.subr.bf16.mxu0 %v2374
  %2403 = vmatpush1.bf16.msra.mxu0 %v2373
  %2404 = vmatprep.subr.bf16.mxu0 %v2372
  %2405 = vmatpush1.bf16.msra.mxu0 %v2371
  %2406 = vmatprep.subr.bf16.mxu0 0
  %2407 = vmatpush2.bf16.msra.mxu0 0
  %2408 = vmatprep.subr.bf16.mxu0 0
  %2409 = vmatpush2.bf16.msra.mxu0 0
  %2410 = vmatprep.subr.bf16.mxu0 0
  %2411 = vmatpush2.bf16.msra.mxu0 0
  %2412 = vmatprep.subr.bf16.mxu0 0
  %2413 = vmatpush2.bf16.msra.mxu0 0
  %2414 = vmatprep.subr.bf16.mxu0 0
  %2415 = vmatpush2.bf16.msra.mxu0 0
  %2416 = vmatprep.subr.bf16.mxu0 0
  %2417 = vmatpush2.bf16.msra.mxu0 0
  %2418 = vmatprep.subr.bf16.mxu0 0
  %2419 = vmatpush2.bf16.msra.mxu0 0
  %2420 = vmatprep.subr.bf16.mxu0 0
  %2421 = vmatpush2.bf16.msra.mxu0 0
  %2422 = vmatprep.mubr.bf16.mxu0 0
  %2423 = vmatmul.mubr.bf16.gmra.mxu0 %v2388
  %v2424 = vpop.f32.mrf.mxu0
  %v2425 = vadd.f32 0.0, %v2424
  %v2426 = vpop.f32.mrf.mxu0
  %v2427 = vadd.f32 0.0, %v2426
  %v2428 = vpop.f32.mrf.mxu0
  %v2429 = vadd.f32 0.0, %v2428
  %v2430 = vpop.f32.mrf.mxu0
  %v2431 = vadd.f32 0.0, %v2430
  %2432 = vdwg.mxu0
  %v2433 = vadd.f32 %v2335, %v2425
  %v2434 = vadd.f32 %v2336, %v2427
  %v2435 = vadd.f32 %v2337, %v2429
  %v2436 = vadd.f32 %v2338, %v2431
  %v2437 = vtanh.pop %v2433
  %v2438 = vtanh.pop %v2434
  %v2439 = vtanh.pop %v2435
  %v2440 = vtanh.pop %v2436
  %v2441 = vadd.f32 %v2437, 1.0
  %v2442 = vadd.f32 %v2439, 1.0
  %v2443 = vmul.f32 %v2441, 0.5
  %v2444 = vmul.f32 %v2442, 0.5
  %v2445 = vadd.f32 %v2438, 1.0
  %v2446 = vadd.f32 %v2440, 1.0
  %v2447 = vmul.f32 %v2445, 0.5
  %v2448 = vmul.f32 %v2446, 0.5
  %v2449 = vmul.f32 %v2443, %v2311
  %v2450 = vmul.f32 %v2444, %v2312
  %2453 = vrot.lane.b32.xlu0 %v2438, 64
  %v2454 = vpop.permute.xlu0 %2453
  %2455 = vrot.lane.b32.xlu0 %v2440, 64
  %v2456 = vpop.permute.xlu0 %2455
  %v2459 = vmul.f32 %v2443, %v2454
  %v2460 = vmul.f32 %v2444, %v2456
  %2463 = vrot.lane.b32.xlu0 %v2459, 64
  %v2464 = vpop.permute.xlu0 %2463
  %2465 = vrot.lane.b32.xlu0 %v2460, 64
  %v2466 = vpop.permute.xlu0 %2465
  %v2469 = vadd.f32 %v2449, %v2464
  %v2470 = vadd.f32 %v2450, %v2466
  %v2471 = vtanh.pop %v2469
  %v2472 = vtanh.pop %v2470
  %2475 = vrot.lane.b32.xlu0 %v2471, 64
  %v2476 = vpop.permute.xlu0 %2475
  %2477 = vrot.lane.b32.xlu0 %v2472, 64
  %v2478 = vpop.permute.xlu0 %2477
  %v2481 = vmul.f32 %v2447, %v2476
  %v2482 = vmul.f32 %v2448, %v2478
  %v2483 = vpack.c.bf16 %v2482, %v2481
  %v2485 = vunpack.c.l.b16 %v2483
  %v2486 = vunpack.c.h.b16 %v2483
  %v2487 = vpack.c.b16 %v2485, %v2485
  %v2488 = vpack.c.b16 %v2486, %v2486
  %2491 = vst.msk [vmem:[#allocation2 + $0x18] sm:$0xf] %vm467, %v2487
  %2492 = vst.msk [vmem:[#allocation2 + $0x1c] sm:$0xf] %vm467, %v2488
  %v2493 = vld [vmem:[#allocation3 + $0x80] sm:$0xff]
  %v2494 = vld [vmem:[#allocation3 + $0x88] sm:$0xff]
  %v2495 = vld [vmem:[#allocation3 + $0x90] sm:$0xff]
  %v2496 = vld [vmem:[#allocation3 + $0x98] sm:$0xff]
  %v2497 = vld [vmem:[%s1867] sm:$0xff]
  %v2498 = vld [vmem:[%s1867 + $0x8] sm:$0xff]
  %v2499 = vld [vmem:[%s1867 + $0x10] sm:$0xff]
  %v2500 = vld [vmem:[%s1867 + $0x18] sm:$0xff]
  %v2501 = vld [vmem:[%s1867 + $0x20] sm:$0xff]
  %v2502 = vld [vmem:[%s1867 + $0x28] sm:$0xff]
  %v2503 = vld [vmem:[%s1867 + $0x30] sm:$0xff]
  %v2504 = vld [vmem:[%s1867 + $0x38] sm:$0xff]
  %v2513 = vunpack.c.l.b16 %v2497
  %v2514 = vunpack.c.h.b16 %v2497
  %v2515 = vunpack.c.l.b16 %v2498
  %v2516 = vunpack.c.h.b16 %v2498
  %v2517 = vunpack.c.l.b16 %v2499
  %v2518 = vunpack.c.h.b16 %v2499
  %v2519 = vunpack.c.l.b16 %v2500
  %v2520 = vunpack.c.h.b16 %v2500
  %v2521 = vunpack.c.l.b16 %v2501
  %v2522 = vunpack.c.h.b16 %v2501
  %v2523 = vunpack.c.l.b16 %v2502
  %v2524 = vunpack.c.h.b16 %v2502
  %v2525 = vunpack.c.l.b16 %v2503
  %v2526 = vunpack.c.h.b16 %v2503
  %v2527 = vunpack.c.l.b16 %v2504
  %v2528 = vunpack.c.h.b16 %v2504
  %v2529 = vpack.c.b16 %v2515, %v2513
  %v2530 = vpack.c.b16 %v2516, %v2514
  %v2531 = vpack.c.b16 %v2519, %v2517
  %v2532 = vpack.c.b16 %v2520, %v2518
  %v2533 = vpack.c.b16 %v2523, %v2521
  %v2534 = vpack.c.b16 %v2524, %v2522
  %v2535 = vpack.c.b16 %v2527, %v2525
  %v2536 = vpack.c.b16 %v2528, %v2526
  %v2546 = vsel %vm141, %v2483, 0
  %2548 = vmatprep.subr.bf16.mxu0 0
  %2549 = vmatpush1.bf16.msra.mxu0 0
  %2550 = vmatprep.subr.bf16.mxu0 0
  %2551 = vmatpush1.bf16.msra.mxu0 0
  %2552 = vmatprep.subr.bf16.mxu0 0
  %2553 = vmatpush1.bf16.msra.mxu0 0
  %2554 = vmatprep.subr.bf16.mxu0 0
  %2555 = vmatpush1.bf16.msra.mxu0 0
  %2556 = vmatprep.subr.bf16.mxu0 %v2536
  %2557 = vmatpush1.bf16.msra.mxu0 %v2535
  %2558 = vmatprep.subr.bf16.mxu0 %v2534
  %2559 = vmatpush1.bf16.msra.mxu0 %v2533
  %2560 = vmatprep.subr.bf16.mxu0 %v2532
  %2561 = vmatpush1.bf16.msra.mxu0 %v2531
  %2562 = vmatprep.subr.bf16.mxu0 %v2530
  %2563 = vmatpush1.bf16.msra.mxu0 %v2529
  %2564 = vmatprep.subr.bf16.mxu0 0
  %2565 = vmatpush2.bf16.msra.mxu0 0
  %2566 = vmatprep.subr.bf16.mxu0 0
  %2567 = vmatpush2.bf16.msra.mxu0 0
  %2568 = vmatprep.subr.bf16.mxu0 0
  %2569 = vmatpush2.bf16.msra.mxu0 0
  %2570 = vmatprep.subr.bf16.mxu0 0
  %2571 = vmatpush2.bf16.msra.mxu0 0
  %2572 = vmatprep.subr.bf16.mxu0 0
  %2573 = vmatpush2.bf16.msra.mxu0 0
  %2574 = vmatprep.subr.bf16.mxu0 0
  %2575 = vmatpush2.bf16.msra.mxu0 0
  %2576 = vmatprep.subr.bf16.mxu0 0
  %2577 = vmatpush2.bf16.msra.mxu0 0
  %2578 = vmatprep.subr.bf16.mxu0 0
  %2579 = vmatpush2.bf16.msra.mxu0 0
  %2580 = vmatprep.mubr.bf16.mxu0 0
  %2581 = vmatmul.mubr.bf16.gmra.mxu0 %v2546
  %v2582 = vpop.f32.mrf.mxu0
  %v2583 = vadd.f32 0.0, %v2582
  %v2584 = vpop.f32.mrf.mxu0
  %v2585 = vadd.f32 0.0, %v2584
  %v2586 = vpop.f32.mrf.mxu0
  %v2587 = vadd.f32 0.0, %v2586
  %v2588 = vpop.f32.mrf.mxu0
  %v2589 = vadd.f32 0.0, %v2588
  %2590 = vdwg.mxu0
  %v2591 = vadd.f32 %v2493, %v2583
  %v2592 = vadd.f32 %v2494, %v2585
  %v2593 = vadd.f32 %v2495, %v2587
  %v2594 = vadd.f32 %v2496, %v2589
  %v2595 = vtanh.pop %v2591
  %v2596 = vtanh.pop %v2592
  %v2597 = vtanh.pop %v2593
  %v2598 = vtanh.pop %v2594
  %v2599 = vadd.f32 %v2595, 1.0
  %v2600 = vadd.f32 %v2597, 1.0
  %v2601 = vmul.f32 %v2599, 0.5
  %v2602 = vmul.f32 %v2600, 0.5
  %v2603 = vadd.f32 %v2596, 1.0
  %v2604 = vadd.f32 %v2598, 1.0
  %v2605 = vmul.f32 %v2603, 0.5
  %v2606 = vmul.f32 %v2604, 0.5
  %v2607 = vmul.f32 %v2601, %v2469
  %v2608 = vmul.f32 %v2602, %v2470
  %2611 = vrot.lane.b32.xlu0 %v2596, 64
  %v2612 = vpop.permute.xlu0 %2611
  %2613 = vrot.lane.b32.xlu0 %v2598, 64
  %v2614 = vpop.permute.xlu0 %2613
  %v2617 = vmul.f32 %v2601, %v2612
  %v2618 = vmul.f32 %v2602, %v2614
  %2621 = vrot.lane.b32.xlu0 %v2617, 64
  %v2622 = vpop.permute.xlu0 %2621
  %2623 = vrot.lane.b32.xlu0 %v2618, 64
  %v2624 = vpop.permute.xlu0 %2623
  %v2627 = vadd.f32 %v2607, %v2622
  %v2628 = vadd.f32 %v2608, %v2624
  %v2629 = vtanh.pop %v2627
  %v2630 = vtanh.pop %v2628
  %2633 = vrot.lane.b32.xlu0 %v2629, 64
  %v2634 = vpop.permute.xlu0 %2633
  %2635 = vrot.lane.b32.xlu0 %v2630, 64
  %v2636 = vpop.permute.xlu0 %2635
  %v2639 = vmul.f32 %v2605, %v2634
  %v2640 = vmul.f32 %v2606, %v2636
  %v2641 = vpack.c.bf16 %v2640, %v2639
  %v2643 = vunpack.c.l.b16 %v2641
  %v2644 = vunpack.c.h.b16 %v2641
  %v2645 = vpack.c.b16 %v2643, %v2643
  %v2646 = vpack.c.b16 %v2644, %v2644
  %2649 = vst.msk [vmem:[#allocation2 + $0x20] sm:$0xf] %vm467, %v2645
  %2650 = vst.msk [vmem:[#allocation2 + $0x24] sm:$0xf] %vm467, %v2646
  %v2651 = vld [vmem:[#allocation3 + $0xa0] sm:$0xff]
  %v2652 = vld [vmem:[#allocation3 + $0xa8] sm:$0xff]
  %v2653 = vld [vmem:[#allocation3 + $0xb0] sm:$0xff]
  %v2654 = vld [vmem:[#allocation3 + $0xb8] sm:$0xff]
  %v2655 = vld [vmem:[%s1867] sm:$0xff]
  %v2656 = vld [vmem:[%s1867 + $0x8] sm:$0xff]
  %v2657 = vld [vmem:[%s1867 + $0x10] sm:$0xff]
  %v2658 = vld [vmem:[%s1867 + $0x18] sm:$0xff]
  %v2659 = vld [vmem:[%s1867 + $0x20] sm:$0xff]
  %v2660 = vld [vmem:[%s1867 + $0x28] sm:$0xff]
  %v2661 = vld [vmem:[%s1867 + $0x30] sm:$0xff]
  %v2662 = vld [vmem:[%s1867 + $0x38] sm:$0xff]
  %v2671 = vunpack.c.l.b16 %v2655
  %v2672 = vunpack.c.h.b16 %v2655
  %v2673 = vunpack.c.l.b16 %v2656
  %v2674 = vunpack.c.h.b16 %v2656
  %v2675 = vunpack.c.l.b16 %v2657
  %v2676 = vunpack.c.h.b16 %v2657
  %v2677 = vunpack.c.l.b16 %v2658
  %v2678 = vunpack.c.h.b16 %v2658
  %v2679 = vunpack.c.l.b16 %v2659
  %v2680 = vunpack.c.h.b16 %v2659
  %v2681 = vunpack.c.l.b16 %v2660
  %v2682 = vunpack.c.h.b16 %v2660
  %v2683 = vunpack.c.l.b16 %v2661
  %v2684 = vunpack.c.h.b16 %v2661
  %v2685 = vunpack.c.l.b16 %v2662
  %v2686 = vunpack.c.h.b16 %v2662
  %v2687 = vpack.c.b16 %v2673, %v2671
  %v2688 = vpack.c.b16 %v2674, %v2672
  %v2689 = vpack.c.b16 %v2677, %v2675
  %v2690 = vpack.c.b16 %v2678, %v2676
  %v2691 = vpack.c.b16 %v2681, %v2679
  %v2692 = vpack.c.b16 %v2682, %v2680
  %v2693 = vpack.c.b16 %v2685, %v2683
  %v2694 = vpack.c.b16 %v2686, %v2684
  %v2704 = vsel %vm141, %v2641, 0
  %2706 = vmatprep.subr.bf16.mxu0 0
  %2707 = vmatpush1.bf16.msra.mxu0 0
  %2708 = vmatprep.subr.bf16.mxu0 0
  %2709 = vmatpush1.bf16.msra.mxu0 0
  %2710 = vmatprep.subr.bf16.mxu0 0
  %2711 = vmatpush1.bf16.msra.mxu0 0
  %2712 = vmatprep.subr.bf16.mxu0 0
  %2713 = vmatpush1.bf16.msra.mxu0 0
  %2714 = vmatprep.subr.bf16.mxu0 %v2694
  %2715 = vmatpush1.bf16.msra.mxu0 %v2693
  %2716 = vmatprep.subr.bf16.mxu0 %v2692
  %2717 = vmatpush1.bf16.msra.mxu0 %v2691
  %2718 = vmatprep.subr.bf16.mxu0 %v2690
  %2719 = vmatpush1.bf16.msra.mxu0 %v2689
  %2720 = vmatprep.subr.bf16.mxu0 %v2688
  %2721 = vmatpush1.bf16.msra.mxu0 %v2687
  %2722 = vmatprep.subr.bf16.mxu0 0
  %2723 = vmatpush2.bf16.msra.mxu0 0
  %2724 = vmatprep.subr.bf16.mxu0 0
  %2725 = vmatpush2.bf16.msra.mxu0 0
  %2726 = vmatprep.subr.bf16.mxu0 0
  %2727 = vmatpush2.bf16.msra.mxu0 0
  %2728 = vmatprep.subr.bf16.mxu0 0
  %2729 = vmatpush2.bf16.msra.mxu0 0
  %2730 = vmatprep.subr.bf16.mxu0 0
  %2731 = vmatpush2.bf16.msra.mxu0 0
  %2732 = vmatprep.subr.bf16.mxu0 0
  %2733 = vmatpush2.bf16.msra.mxu0 0
  %2734 = vmatprep.subr.bf16.mxu0 0
  %2735 = vmatpush2.bf16.msra.mxu0 0
  %2736 = vmatprep.subr.bf16.mxu0 0
  %2737 = vmatpush2.bf16.msra.mxu0 0
  %2738 = vmatprep.mubr.bf16.mxu0 0
  %2739 = vmatmul.mubr.bf16.gmra.mxu0 %v2704
  %v2740 = vpop.f32.mrf.mxu0
  %v2741 = vadd.f32 0.0, %v2740
  %v2742 = vpop.f32.mrf.mxu0
  %v2743 = vadd.f32 0.0, %v2742
  %v2744 = vpop.f32.mrf.mxu0
  %v2745 = vadd.f32 0.0, %v2744
  %v2746 = vpop.f32.mrf.mxu0
  %v2747 = vadd.f32 0.0, %v2746
  %2748 = vdwg.mxu0
  %v2749 = vadd.f32 %v2651, %v2741
  %v2750 = vadd.f32 %v2652, %v2743
  %v2751 = vadd.f32 %v2653, %v2745
  %v2752 = vadd.f32 %v2654, %v2747
  %v2753 = vtanh.pop %v2749
  %v2754 = vtanh.pop %v2750
  %v2755 = vtanh.pop %v2751
  %v2756 = vtanh.pop %v2752
  %v2757 = vadd.f32 %v2753, 1.0
  %v2758 = vadd.f32 %v2755, 1.0
  %v2759 = vmul.f32 %v2757, 0.5
  %v2760 = vmul.f32 %v2758, 0.5
  %v2761 = vadd.f32 %v2754, 1.0
  %v2762 = vadd.f32 %v2756, 1.0
  %v2763 = vmul.f32 %v2761, 0.5
  %v2764 = vmul.f32 %v2762, 0.5
  %v2765 = vmul.f32 %v2759, %v2627
  %v2766 = vmul.f32 %v2760, %v2628
  %2769 = vrot.lane.b32.xlu0 %v2754, 64
  %v2770 = vpop.permute.xlu0 %2769
  %2771 = vrot.lane.b32.xlu0 %v2756, 64
  %v2772 = vpop.permute.xlu0 %2771
  %v2775 = vmul.f32 %v2759, %v2770
  %v2776 = vmul.f32 %v2760, %v2772
  %2779 = vrot.lane.b32.xlu0 %v2775, 64
  %v2780 = vpop.permute.xlu0 %2779
  %2781 = vrot.lane.b32.xlu0 %v2776, 64
  %v2782 = vpop.permute.xlu0 %2781
  %v2785 = vadd.f32 %v2765, %v2780
  %v2786 = vadd.f32 %v2766, %v2782
  %v2787 = vtanh.pop %v2785
  %v2788 = vtanh.pop %v2786
  %2791 = vrot.lane.b32.xlu0 %v2787, 64
  %v2792 = vpop.permute.xlu0 %2791
  %2793 = vrot.lane.b32.xlu0 %v2788, 64
  %v2794 = vpop.permute.xlu0 %2793
  %v2797 = vmul.f32 %v2763, %v2792
  %v2798 = vmul.f32 %v2764, %v2794
  %v2799 = vpack.c.bf16 %v2798, %v2797
  %v2801 = vunpack.c.l.b16 %v2799
  %v2802 = vunpack.c.h.b16 %v2799
  %v2803 = vpack.c.b16 %v2801, %v2801
  %v2804 = vpack.c.b16 %v2802, %v2802
  %2807 = vst.msk [vmem:[#allocation2 + $0x28] sm:$0xf] %vm467, %v2803
  %2808 = vst.msk [vmem:[#allocation2 + $0x2c] sm:$0xf] %vm467, %v2804
  %v2809 = vld [vmem:[#allocation3 + $0xc0] sm:$0xff]
  %v2810 = vld [vmem:[#allocation3 + $0xc8] sm:$0xff]
  %v2811 = vld [vmem:[#allocation3 + $0xd0] sm:$0xff]
  %v2812 = vld [vmem:[#allocation3 + $0xd8] sm:$0xff]
  %v2813 = vld [vmem:[%s1867] sm:$0xff]
  %v2814 = vld [vmem:[%s1867 + $0x8] sm:$0xff]
  %v2815 = vld [vmem:[%s1867 + $0x10] sm:$0xff]
  %v2816 = vld [vmem:[%s1867 + $0x18] sm:$0xff]
  %v2817 = vld [vmem:[%s1867 + $0x20] sm:$0xff]
  %v2818 = vld [vmem:[%s1867 + $0x28] sm:$0xff]
  %v2819 = vld [vmem:[%s1867 + $0x30] sm:$0xff]
  %v2820 = vld [vmem:[%s1867 + $0x38] sm:$0xff]
  %v2829 = vunpack.c.l.b16 %v2813
  %v2830 = vunpack.c.h.b16 %v2813
  %v2831 = vunpack.c.l.b16 %v2814
  %v2832 = vunpack.c.h.b16 %v2814
  %v2833 = vunpack.c.l.b16 %v2815
  %v2834 = vunpack.c.h.b16 %v2815
  %v2835 = vunpack.c.l.b16 %v2816
  %v2836 = vunpack.c.h.b16 %v2816
  %v2837 = vunpack.c.l.b16 %v2817
  %v2838 = vunpack.c.h.b16 %v2817
  %v2839 = vunpack.c.l.b16 %v2818
  %v2840 = vunpack.c.h.b16 %v2818
  %v2841 = vunpack.c.l.b16 %v2819
  %v2842 = vunpack.c.h.b16 %v2819
  %v2843 = vunpack.c.l.b16 %v2820
  %v2844 = vunpack.c.h.b16 %v2820
  %v2845 = vpack.c.b16 %v2831, %v2829
  %v2846 = vpack.c.b16 %v2832, %v2830
  %v2847 = vpack.c.b16 %v2835, %v2833
  %v2848 = vpack.c.b16 %v2836, %v2834
  %v2849 = vpack.c.b16 %v2839, %v2837
  %v2850 = vpack.c.b16 %v2840, %v2838
  %v2851 = vpack.c.b16 %v2843, %v2841
  %v2852 = vpack.c.b16 %v2844, %v2842
  %v2862 = vsel %vm141, %v2799, 0
  %2864 = vmatprep.subr.bf16.mxu0 0
  %2865 = vmatpush1.bf16.msra.mxu0 0
  %2866 = vmatprep.subr.bf16.mxu0 0
  %2867 = vmatpush1.bf16.msra.mxu0 0
  %2868 = vmatprep.subr.bf16.mxu0 0
  %2869 = vmatpush1.bf16.msra.mxu0 0
  %2870 = vmatprep.subr.bf16.mxu0 0
  %2871 = vmatpush1.bf16.msra.mxu0 0
  %2872 = vmatprep.subr.bf16.mxu0 %v2852
  %2873 = vmatpush1.bf16.msra.mxu0 %v2851
  %2874 = vmatprep.subr.bf16.mxu0 %v2850
  %2875 = vmatpush1.bf16.msra.mxu0 %v2849
  %2876 = vmatprep.subr.bf16.mxu0 %v2848
  %2877 = vmatpush1.bf16.msra.mxu0 %v2847
  %2878 = vmatprep.subr.bf16.mxu0 %v2846
  %2879 = vmatpush1.bf16.msra.mxu0 %v2845
  %2880 = vmatprep.subr.bf16.mxu0 0
  %2881 = vmatpush2.bf16.msra.mxu0 0
  %2882 = vmatprep.subr.bf16.mxu0 0
  %2883 = vmatpush2.bf16.msra.mxu0 0
  %2884 = vmatprep.subr.bf16.mxu0 0
  %2885 = vmatpush2.bf16.msra.mxu0 0
  %2886 = vmatprep.subr.bf16.mxu0 0
  %2887 = vmatpush2.bf16.msra.mxu0 0
  %2888 = vmatprep.subr.bf16.mxu0 0
  %2889 = vmatpush2.bf16.msra.mxu0 0
  %2890 = vmatprep.subr.bf16.mxu0 0
  %2891 = vmatpush2.bf16.msra.mxu0 0
  %2892 = vmatprep.subr.bf16.mxu0 0
  %2893 = vmatpush2.bf16.msra.mxu0 0
  %2894 = vmatprep.subr.bf16.mxu0 0
  %2895 = vmatpush2.bf16.msra.mxu0 0
  %2896 = vmatprep.mubr.bf16.mxu0 0
  %2897 = vmatmul.mubr.bf16.gmra.mxu0 %v2862
  %v2898 = vpop.f32.mrf.mxu0
  %v2899 = vadd.f32 0.0, %v2898
  %v2900 = vpop.f32.mrf.mxu0
  %v2901 = vadd.f32 0.0, %v2900
  %v2902 = vpop.f32.mrf.mxu0
  %v2903 = vadd.f32 0.0, %v2902
  %v2904 = vpop.f32.mrf.mxu0
  %v2905 = vadd.f32 0.0, %v2904
  %2906 = vdwg.mxu0
  %v2907 = vadd.f32 %v2809, %v2899
  %v2908 = vadd.f32 %v2810, %v2901
  %v2909 = vadd.f32 %v2811, %v2903
  %v2910 = vadd.f32 %v2812, %v2905
  %v2911 = vtanh.pop %v2907
  %v2912 = vtanh.pop %v2908
  %v2913 = vtanh.pop %v2909
  %v2914 = vtanh.pop %v2910
  %v2915 = vadd.f32 %v2911, 1.0
  %v2916 = vadd.f32 %v2913, 1.0
  %v2917 = vmul.f32 %v2915, 0.5
  %v2918 = vmul.f32 %v2916, 0.5
  %v2919 = vadd.f32 %v2912, 1.0
  %v2920 = vadd.f32 %v2914, 1.0
  %v2921 = vmul.f32 %v2919, 0.5
  %v2922 = vmul.f32 %v2920, 0.5
  %v2923 = vmul.f32 %v2917, %v2785
  %v2924 = vmul.f32 %v2918, %v2786
  %2927 = vrot.lane.b32.xlu0 %v2912, 64
  %v2928 = vpop.permute.xlu0 %2927
  %2929 = vrot.lane.b32.xlu0 %v2914, 64
  %v2930 = vpop.permute.xlu0 %2929
  %v2933 = vmul.f32 %v2917, %v2928
  %v2934 = vmul.f32 %v2918, %v2930
  %2937 = vrot.lane.b32.xlu0 %v2933, 64
  %v2938 = vpop.permute.xlu0 %2937
  %2939 = vrot.lane.b32.xlu0 %v2934, 64
  %v2940 = vpop.permute.xlu0 %2939
  %v2943 = vadd.f32 %v2923, %v2938
  %v2944 = vadd.f32 %v2924, %v2940
  %v2945 = vtanh.pop %v2943
  %v2946 = vtanh.pop %v2944
  %2949 = vrot.lane.b32.xlu0 %v2945, 64
  %v2950 = vpop.permute.xlu0 %2949
  %2951 = vrot.lane.b32.xlu0 %v2946, 64
  %v2952 = vpop.permute.xlu0 %2951
  %v2955 = vmul.f32 %v2921, %v2950
  %v2956 = vmul.f32 %v2922, %v2952
  %v2957 = vpack.c.bf16 %v2956, %v2955
  %v2959 = vunpack.c.l.b16 %v2957
  %v2960 = vunpack.c.h.b16 %v2957
  %v2961 = vpack.c.b16 %v2959, %v2959
  %v2962 = vpack.c.b16 %v2960, %v2960
  %2965 = vst.msk [vmem:[#allocation2 + $0x30] sm:$0xf] %vm467, %v2961
  %2966 = vst.msk [vmem:[#allocation2 + $0x34] sm:$0xf] %vm467, %v2962
  %v2967 = vld [vmem:[#allocation3 + $0xe0] sm:$0xff]
  %v2968 = vld [vmem:[#allocation3 + $0xe8] sm:$0xff]
  %v2969 = vld [vmem:[#allocation3 + $0xf0] sm:$0xff]
  %v2970 = vld [vmem:[#allocation3 + $0xf8] sm:$0xff]
  %v2971 = vld [vmem:[%s1867] sm:$0xff]
  %v2972 = vld [vmem:[%s1867 + $0x8] sm:$0xff]
  %v2973 = vld [vmem:[%s1867 + $0x10] sm:$0xff]
  %v2974 = vld [vmem:[%s1867 + $0x18] sm:$0xff]
  %v2975 = vld [vmem:[%s1867 + $0x20] sm:$0xff]
  %v2976 = vld [vmem:[%s1867 + $0x28] sm:$0xff]
  %v2977 = vld [vmem:[%s1867 + $0x30] sm:$0xff]
  %v2978 = vld [vmem:[%s1867 + $0x38] sm:$0xff]
  %v2987 = vunpack.c.l.b16 %v2971
  %v2988 = vunpack.c.h.b16 %v2971
  %v2989 = vunpack.c.l.b16 %v2972
  %v2990 = vunpack.c.h.b16 %v2972
  %v2991 = vunpack.c.l.b16 %v2973
  %v2992 = vunpack.c.h.b16 %v2973
  %v2993 = vunpack.c.l.b16 %v2974
  %v2994 = vunpack.c.h.b16 %v2974
  %v2995 = vunpack.c.l.b16 %v2975
  %v2996 = vunpack.c.h.b16 %v2975
  %v2997 = vunpack.c.l.b16 %v2976
  %v2998 = vunpack.c.h.b16 %v2976
  %v2999 = vunpack.c.l.b16 %v2977
  %v3000 = vunpack.c.h.b16 %v2977
  %v3001 = vunpack.c.l.b16 %v2978
  %v3002 = vunpack.c.h.b16 %v2978
  %v3003 = vpack.c.b16 %v2989, %v2987
  %v3004 = vpack.c.b16 %v2990, %v2988
  %v3005 = vpack.c.b16 %v2993, %v2991
  %v3006 = vpack.c.b16 %v2994, %v2992
  %v3007 = vpack.c.b16 %v2997, %v2995
  %v3008 = vpack.c.b16 %v2998, %v2996
  %v3009 = vpack.c.b16 %v3001, %v2999
  %v3010 = vpack.c.b16 %v3002, %v3000
  %v3020 = vsel %vm141, %v2957, 0
  %3022 = vmatprep.subr.bf16.mxu0 0
  %3023 = vmatpush1.bf16.msra.mxu0 0
  %3024 = vmatprep.subr.bf16.mxu0 0
  %3025 = vmatpush1.bf16.msra.mxu0 0
  %3026 = vmatprep.subr.bf16.mxu0 0
  %3027 = vmatpush1.bf16.msra.mxu0 0
  %3028 = vmatprep.subr.bf16.mxu0 0
  %3029 = vmatpush1.bf16.msra.mxu0 0
  %3030 = vmatprep.subr.bf16.mxu0 %v3010
  %3031 = vmatpush1.bf16.msra.mxu0 %v3009
  %3032 = vmatprep.subr.bf16.mxu0 %v3008
  %3033 = vmatpush1.bf16.msra.mxu0 %v3007
  %3034 = vmatprep.subr.bf16.mxu0 %v3006
  %3035 = vmatpush1.bf16.msra.mxu0 %v3005
  %3036 = vmatprep.subr.bf16.mxu0 %v3004
  %3037 = vmatpush1.bf16.msra.mxu0 %v3003
  %3038 = vmatprep.subr.bf16.mxu0 0
  %3039 = vmatpush2.bf16.msra.mxu0 0
  %3040 = vmatprep.subr.bf16.mxu0 0
  %3041 = vmatpush2.bf16.msra.mxu0 0
  %3042 = vmatprep.subr.bf16.mxu0 0
  %3043 = vmatpush2.bf16.msra.mxu0 0
  %3044 = vmatprep.subr.bf16.mxu0 0
  %3045 = vmatpush2.bf16.msra.mxu0 0
  %3046 = vmatprep.subr.bf16.mxu0 0
  %3047 = vmatpush2.bf16.msra.mxu0 0
  %3048 = vmatprep.subr.bf16.mxu0 0
  %3049 = vmatpush2.bf16.msra.mxu0 0
  %3050 = vmatprep.subr.bf16.mxu0 0
  %3051 = vmatpush2.bf16.msra.mxu0 0
  %3052 = vmatprep.subr.bf16.mxu0 0
  %3053 = vmatpush2.bf16.msra.mxu0 0
  %3054 = vmatprep.mubr.bf16.mxu0 0
  %3055 = vmatmul.mubr.bf16.gmra.mxu0 %v3020
  %v3056 = vpop.f32.mrf.mxu0
  %v3057 = vadd.f32 0.0, %v3056
  %v3058 = vpop.f32.mrf.mxu0
  %v3059 = vadd.f32 0.0, %v3058
  %v3060 = vpop.f32.mrf.mxu0
  %v3061 = vadd.f32 0.0, %v3060
  %v3062 = vpop.f32.mrf.mxu0
  %v3063 = vadd.f32 0.0, %v3062
  %3064 = vdwg.mxu0
  %v3065 = vadd.f32 %v2967, %v3057
  %v3066 = vadd.f32 %v2968, %v3059
  %v3067 = vadd.f32 %v2969, %v3061
  %v3068 = vadd.f32 %v2970, %v3063
  %v3069 = vtanh.pop %v3065
  %v3070 = vtanh.pop %v3066
  %v3071 = vtanh.pop %v3067
  %v3072 = vtanh.pop %v3068
  %v3073 = vadd.f32 %v3069, 1.0
  %v3074 = vadd.f32 %v3071, 1.0
  %v3075 = vmul.f32 %v3073, 0.5
  %v3076 = vmul.f32 %v3074, 0.5
  %v3077 = vadd.f32 %v3070, 1.0
  %v3078 = vadd.f32 %v3072, 1.0
  %v3079 = vmul.f32 %v3077, 0.5
  %v3080 = vmul.f32 %v3078, 0.5
  %v3081 = vmul.f32 %v3075, %v2943
  %v3082 = vmul.f32 %v3076, %v2944
  %3085 = vrot.lane.b32.xlu0 %v3070, 64
  %v3086 = vpop.permute.xlu0 %3085
  %3087 = vrot.lane.b32.xlu0 %v3072, 64
  %v3088 = vpop.permute.xlu0 %3087
  %v3091 = vmul.f32 %v3075, %v3086
  %v3092 = vmul.f32 %v3076, %v3088
  %3095 = vrot.lane.b32.xlu0 %v3091, 64
  %v3096 = vpop.permute.xlu0 %3095
  %3097 = vrot.lane.b32.xlu0 %v3092, 64
  %v3098 = vpop.permute.xlu0 %3097
  %v3101 = vadd.f32 %v3081, %v3096
  %v3102 = vadd.f32 %v3082, %v3098
  %v3103 = vtanh.pop %v3101
  %v3104 = vtanh.pop %v3102
  %3107 = vrot.lane.b32.xlu0 %v3103, 64
  %v3108 = vpop.permute.xlu0 %3107
  %3109 = vrot.lane.b32.xlu0 %v3104, 64
  %v3110 = vpop.permute.xlu0 %3109
  %v3113 = vmul.f32 %v3079, %v3108
  %v3114 = vmul.f32 %v3080, %v3110
  %v3115 = vpack.c.bf16 %v3114, %v3113
  %v3117 = vunpack.c.l.b16 %v3115
  %v3118 = vunpack.c.h.b16 %v3115
  %v3119 = vpack.c.b16 %v3117, %v3117
  %v3120 = vpack.c.b16 %v3118, %v3118
  %3123 = vst.msk [vmem:[#allocation2 + $0x38] sm:$0xf] %vm467, %v3119
  %3124 = vst.msk [vmem:[#allocation2 + $0x3c] sm:$0xf] %vm467, %v3120
  %v3125 = vld [vmem:[#allocation2] sm:$0xf]
  %v3126 = vld [vmem:[#allocation2 + $0x4] sm:$0xf]
  %v3127 = vld [vmem:[#allocation2 + $0x8] sm:$0xf]
  %v3128 = vld [vmem:[#allocation2 + $0xc] sm:$0xf]
  %v3129 = vld [vmem:[#allocation2 + $0x10] sm:$0xf]
  %v3130 = vld [vmem:[#allocation2 + $0x14] sm:$0xf]
  %v3131 = vld [vmem:[#allocation2 + $0x18] sm:$0xf]
  %v3132 = vld [vmem:[#allocation2 + $0x1c] sm:$0xf]
  %v3133 = vld [vmem:[#allocation2 + $0x20] sm:$0xf]
  %v3134 = vld [vmem:[#allocation2 + $0x24] sm:$0xf]
  %v3135 = vld [vmem:[#allocation2 + $0x28] sm:$0xf]
  %v3136 = vld [vmem:[#allocation2 + $0x2c] sm:$0xf]
  %v3137 = vld [vmem:[#allocation2 + $0x30] sm:$0xf]
  %v3138 = vld [vmem:[#allocation2 + $0x34] sm:$0xf]
  %v3139 = vld [vmem:[#allocation2 + $0x38] sm:$0xf]
  %v3140 = vld [vmem:[#allocation2 + $0x3c] sm:$0xf]
  %s3141 = scalar_lea.vmem %s1, 128
  %v3142 = vld [vmem:[%s3141] sm:$0xff]
  %v3143 = vld [vmem:[%s3141 + $0x8] sm:$0xff]
  %v3144 = vld [vmem:[%s3141 + $0x10] sm:$0xff]
  %v3145 = vld [vmem:[%s3141 + $0x18] sm:$0xff]
  %v3146 = vld [vmem:[%s3141 + $0x20] sm:$0xff]
  %v3147 = vld [vmem:[%s3141 + $0x28] sm:$0xff]
  %v3148 = vld [vmem:[%s3141 + $0x30] sm:$0xff]
  %v3149 = vld [vmem:[%s3141 + $0x38] sm:$0xff]
  %s3150 = scalar_lea.vmem %s3, 4
  %v3151 = vld [vmem:[%s3150] sm:$0x3]
  %v3153 = vlaneseq
  %v3154 = vshrl.u32 %v3153, 7
  %v3155 = vsub.s32 0, %v3154
  %v3156 = vrot.slane %v3151, %v3155
  %v3157 = vlaneseq
  %v3158 = vshrl.u32 %v3157, 7
  %v3159 = vsub.s32 1, %v3158
  %v3160 = vrot.slane %v3151, %v3159
  %v3179 = vunpack.c.l.b16 %v3125
  %v3180 = vunpack.c.l.b16 %v3126
  %v3181 = vunpack.c.l.b16 %v3127
  %v3182 = vunpack.c.l.b16 %v3128
  %v3183 = vunpack.c.l.b16 %v3129
  %v3184 = vunpack.c.l.b16 %v3130
  %v3185 = vunpack.c.l.b16 %v3131
  %v3186 = vunpack.c.l.b16 %v3132
  %v3187 = vunpack.c.l.b16 %v3133
  %v3188 = vunpack.c.l.b16 %v3134
  %v3189 = vunpack.c.l.b16 %v3135
  %v3190 = vunpack.c.l.b16 %v3136
  %v3191 = vunpack.c.l.b16 %v3137
  %v3192 = vunpack.c.l.b16 %v3138
  %v3193 = vunpack.c.l.b16 %v3139
  %v3194 = vunpack.c.l.b16 %v3140
  %v3195 = vpack.c.b16 %v3180, %v3179
  %v3196 = vpack.c.b16 %v3182, %v3181
  %v3197 = vpack.c.b16 %v3184, %v3183
  %v3198 = vpack.c.b16 %v3186, %v3185
  %v3199 = vpack.c.b16 %v3188, %v3187
  %v3200 = vpack.c.b16 %v3190, %v3189
  %v3201 = vpack.c.b16 %v3192, %v3191
  %v3202 = vpack.c.b16 %v3194, %v3193
  %v3211 = vunpack.c.l.b16 %v3142
  %v3212 = vunpack.c.h.b16 %v3142
  %v3213 = vunpack.c.l.b16 %v3143
  %v3214 = vunpack.c.h.b16 %v3143
  %v3215 = vunpack.c.l.b16 %v3144
  %v3216 = vunpack.c.h.b16 %v3144
  %v3217 = vunpack.c.l.b16 %v3145
  %v3218 = vunpack.c.h.b16 %v3145
  %v3219 = vunpack.c.l.b16 %v3146
  %v3220 = vunpack.c.h.b16 %v3146
  %v3221 = vunpack.c.l.b16 %v3147
  %v3222 = vunpack.c.h.b16 %v3147
  %v3223 = vunpack.c.l.b16 %v3148
  %v3224 = vunpack.c.h.b16 %v3148
  %v3225 = vunpack.c.l.b16 %v3149
  %v3226 = vunpack.c.h.b16 %v3149
  %v3227 = vpack.c.b16 %v3213, %v3211
  %v3228 = vpack.c.b16 %v3214, %v3212
  %v3229 = vpack.c.b16 %v3217, %v3215
  %v3230 = vpack.c.b16 %v3218, %v3216
  %v3231 = vpack.c.b16 %v3221, %v3219
  %v3232 = vpack.c.b16 %v3222, %v3220
  %v3233 = vpack.c.b16 %v3225, %v3223
  %v3234 = vpack.c.b16 %v3226, %v3224
  %v3244 = vsel %vm141, %v3195, 0
  %v3247 = vsel %vm141, %v3196, 0
  %v3250 = vsel %vm141, %v3197, 0
  %v3253 = vsel %vm141, %v3198, 0
  %v3256 = vsel %vm141, %v3199, 0
  %v3259 = vsel %vm141, %v3200, 0
  %v3262 = vsel %vm141, %v3201, 0
  %v3265 = vsel %vm141, %v3202, 0
  %3267 = vmatprep.subr.bf16.mxu0 0
  %3268 = vmatpush1.bf16.msra.mxu0 0
  %3269 = vmatprep.subr.bf16.mxu0 0
  %3270 = vmatpush1.bf16.msra.mxu0 0
  %3271 = vmatprep.subr.bf16.mxu0 0
  %3272 = vmatpush1.bf16.msra.mxu0 0
  %3273 = vmatprep.subr.bf16.mxu0 0
  %3274 = vmatpush1.bf16.msra.mxu0 0
  %3275 = vmatprep.subr.bf16.mxu0 %v3234
  %3276 = vmatpush1.bf16.msra.mxu0 %v3233
  %3277 = vmatprep.subr.bf16.mxu0 %v3232
  %3278 = vmatpush1.bf16.msra.mxu0 %v3231
  %3279 = vmatprep.subr.bf16.mxu0 %v3230
  %3280 = vmatpush1.bf16.msra.mxu0 %v3229
  %3281 = vmatprep.subr.bf16.mxu0 %v3228
  %3282 = vmatpush1.bf16.msra.mxu0 %v3227
  %3283 = vmatprep.subr.bf16.mxu0 0
  %3284 = vmatpush2.bf16.msra.mxu0 0
  %3285 = vmatprep.subr.bf16.mxu0 0
  %3286 = vmatpush2.bf16.msra.mxu0 0
  %3287 = vmatprep.subr.bf16.mxu0 0
  %3288 = vmatpush2.bf16.msra.mxu0 0
  %3289 = vmatprep.subr.bf16.mxu0 0
  %3290 = vmatpush2.bf16.msra.mxu0 0
  %3291 = vmatprep.subr.bf16.mxu0 0
  %3292 = vmatpush2.bf16.msra.mxu0 0
  %3293 = vmatprep.subr.bf16.mxu0 0
  %3294 = vmatpush2.bf16.msra.mxu0 0
  %3295 = vmatprep.subr.bf16.mxu0 0
  %3296 = vmatpush2.bf16.msra.mxu0 0
  %3297 = vmatprep.subr.bf16.mxu0 0
  %3298 = vmatpush2.bf16.msra.mxu0 0
  %3299 = vmatprep.mubr.bf16.mxu0 0
  %3300 = vmatmul.mubr.bf16.gmra.mxu0 %v3244
  %v3301 = vpop.f32.mrf.mxu0
  %v3302 = vadd.f32 %v3156, %v3301
  %v3303 = vpop.f32.mrf.mxu0
  %v3304 = vadd.f32 %v3160, %v3303
  %v3305 = vpop.f32.mrf.mxu0
  %v3306 = vadd.f32 %v3156, %v3305
  %v3307 = vpop.f32.mrf.mxu0
  %v3308 = vadd.f32 %v3160, %v3307
  %3309 = vmatprep.mubr.bf16.mxu0 0
  %3310 = vmatmul.mubr.bf16.gmra.mxu0 %v3247
  %v3311 = vpop.f32.mrf.mxu0
  %v3312 = vadd.f32 %v3156, %v3311
  %v3313 = vpop.f32.mrf.mxu0
  %v3314 = vadd.f32 %v3160, %v3313
  %v3315 = vpop.f32.mrf.mxu0
  %v3316 = vadd.f32 %v3156, %v3315
  %v3317 = vpop.f32.mrf.mxu0
  %v3318 = vadd.f32 %v3160, %v3317
  %3319 = vmatprep.mubr.bf16.mxu0 0
  %3320 = vmatmul.mubr.bf16.gmra.mxu0 %v3250
  %v3321 = vpop.f32.mrf.mxu0
  %v3322 = vadd.f32 %v3156, %v3321
  %v3323 = vpop.f32.mrf.mxu0
  %v3324 = vadd.f32 %v3160, %v3323
  %v3325 = vpop.f32.mrf.mxu0
  %v3326 = vadd.f32 %v3156, %v3325
  %v3327 = vpop.f32.mrf.mxu0
  %v3328 = vadd.f32 %v3160, %v3327
  %3329 = vmatprep.mubr.bf16.mxu0 0
  %3330 = vmatmul.mubr.bf16.gmra.mxu0 %v3253
  %v3331 = vpop.f32.mrf.mxu0
  %v3332 = vadd.f32 %v3156, %v3331
  %v3333 = vpop.f32.mrf.mxu0
  %v3334 = vadd.f32 %v3160, %v3333
  %v3335 = vpop.f32.mrf.mxu0
  %v3336 = vadd.f32 %v3156, %v3335
  %v3337 = vpop.f32.mrf.mxu0
  %v3338 = vadd.f32 %v3160, %v3337
  %3339 = vmatprep.mubr.bf16.mxu0 0
  %3340 = vmatmul.mubr.bf16.gmra.mxu0 %v3256
  %v3341 = vpop.f32.mrf.mxu0
  %v3342 = vadd.f32 %v3156, %v3341
  %v3343 = vpop.f32.mrf.mxu0
  %v3344 = vadd.f32 %v3160, %v3343
  %v3345 = vpop.f32.mrf.mxu0
  %v3346 = vadd.f32 %v3156, %v3345
  %v3347 = vpop.f32.mrf.mxu0
  %v3348 = vadd.f32 %v3160, %v3347
  %3349 = vmatprep.mubr.bf16.mxu0 0
  %3350 = vmatmul.mubr.bf16.gmra.mxu0 %v3259
  %v3351 = vpop.f32.mrf.mxu0
  %v3352 = vadd.f32 %v3156, %v3351
  %v3353 = vpop.f32.mrf.mxu0
  %v3354 = vadd.f32 %v3160, %v3353
  %v3355 = vpop.f32.mrf.mxu0
  %v3356 = vadd.f32 %v3156, %v3355
  %v3357 = vpop.f32.mrf.mxu0
  %v3358 = vadd.f32 %v3160, %v3357
  %3359 = vmatprep.mubr.bf16.mxu0 0
  %3360 = vmatmul.mubr.bf16.gmra.mxu0 %v3262
  %v3361 = vpop.f32.mrf.mxu0
  %v3362 = vadd.f32 %v3156, %v3361
  %v3363 = vpop.f32.mrf.mxu0
  %v3364 = vadd.f32 %v3160, %v3363
  %v3365 = vpop.f32.mrf.mxu0
  %v3366 = vadd.f32 %v3156, %v3365
  %v3367 = vpop.f32.mrf.mxu0
  %v3368 = vadd.f32 %v3160, %v3367
  %3369 = vmatprep.mubr.bf16.mxu0 0
  %3370 = vmatmul.mubr.bf16.gmra.mxu0 %v3265
  %v3371 = vpop.f32.mrf.mxu0
  %v3372 = vadd.f32 %v3156, %v3371
  %v3373 = vpop.f32.mrf.mxu0
  %v3374 = vadd.f32 %v3160, %v3373
  %v3375 = vpop.f32.mrf.mxu0
  %v3376 = vadd.f32 %v3156, %v3375
  %v3377 = vpop.f32.mrf.mxu0
  %v3378 = vadd.f32 %v3160, %v3377
  %3379 = vdwg.mxu0
  %3380 = vst [vmem:[#allocation3] sm:$0xff] %v3302
  %3381 = vst [vmem:[#allocation3 + $0x8] sm:$0xff] %v3304
  %3382 = vst [vmem:[#allocation3 + $0x10] sm:$0xff] %v3306
  %3383 = vst [vmem:[#allocation3 + $0x18] sm:$0xff] %v3308
  %3384 = vst [vmem:[#allocation3 + $0x20] sm:$0xff] %v3312
  %3385 = vst [vmem:[#allocation3 + $0x28] sm:$0xff] %v3314
  %3386 = vst [vmem:[#allocation3 + $0x30] sm:$0xff] %v3316
  %3387 = vst [vmem:[#allocation3 + $0x38] sm:$0xff] %v3318
  %3388 = vst [vmem:[#allocation3 + $0x40] sm:$0xff] %v3322
  %3389 = vst [vmem:[#allocation3 + $0x48] sm:$0xff] %v3324
  %3390 = vst [vmem:[#allocation3 + $0x50] sm:$0xff] %v3326
  %3391 = vst [vmem:[#allocation3 + $0x58] sm:$0xff] %v3328
  %3392 = vst [vmem:[#allocation3 + $0x60] sm:$0xff] %v3332
  %3393 = vst [vmem:[#allocation3 + $0x68] sm:$0xff] %v3334
  %3394 = vst [vmem:[#allocation3 + $0x70] sm:$0xff] %v3336
  %3395 = vst [vmem:[#allocation3 + $0x78] sm:$0xff] %v3338
  %3396 = vst [vmem:[#allocation3 + $0x80] sm:$0xff] %v3342
  %3397 = vst [vmem:[#allocation3 + $0x88] sm:$0xff] %v3344
  %3398 = vst [vmem:[#allocation3 + $0x90] sm:$0xff] %v3346
  %3399 = vst [vmem:[#allocation3 + $0x98] sm:$0xff] %v3348
  %3400 = vst [vmem:[#allocation3 + $0xa0] sm:$0xff] %v3352
  %3401 = vst [vmem:[#allocation3 + $0xa8] sm:$0xff] %v3354
  %3402 = vst [vmem:[#allocation3 + $0xb0] sm:$0xff] %v3356
  %3403 = vst [vmem:[#allocation3 + $0xb8] sm:$0xff] %v3358
  %3404 = vst [vmem:[#allocation3 + $0xc0] sm:$0xff] %v3362
  %3405 = vst [vmem:[#allocation3 + $0xc8] sm:$0xff] %v3364
  %3406 = vst [vmem:[#allocation3 + $0xd0] sm:$0xff] %v3366
  %3407 = vst [vmem:[#allocation3 + $0xd8] sm:$0xff] %v3368
  %3408 = vst [vmem:[#allocation3 + $0xe0] sm:$0xff] %v3372
  %3409 = vst [vmem:[#allocation3 + $0xe8] sm:$0xff] %v3374
  %3410 = vst [vmem:[#allocation3 + $0xf0] sm:$0xff] %v3376
  %3411 = vst [vmem:[#allocation3 + $0xf8] sm:$0xff] %v3378
  %v3412 = vld [vmem:[#allocation3] sm:$0xff]
  %v3413 = vld [vmem:[#allocation3 + $0x8] sm:$0xff]
  %v3414 = vld [vmem:[#allocation3 + $0x10] sm:$0xff]
  %v3415 = vld [vmem:[#allocation3 + $0x18] sm:$0xff]
  %s3416 = scalar_lea.vmem %s2, 128
  %v3417 = vld [vmem:[%s3416] sm:$0xff]
  %v3418 = vld [vmem:[%s3416 + $0x8] sm:$0xff]
  %v3419 = vld [vmem:[%s3416 + $0x10] sm:$0xff]
  %v3420 = vld [vmem:[%s3416 + $0x18] sm:$0xff]
  %v3421 = vld [vmem:[%s3416 + $0x20] sm:$0xff]
  %v3422 = vld [vmem:[%s3416 + $0x28] sm:$0xff]
  %v3423 = vld [vmem:[%s3416 + $0x30] sm:$0xff]
  %v3424 = vld [vmem:[%s3416 + $0x38] sm:$0xff]
  %v3433 = vunpack.c.l.b16 %v3417
  %v3434 = vunpack.c.h.b16 %v3417
  %v3435 = vunpack.c.l.b16 %v3418
  %v3436 = vunpack.c.h.b16 %v3418
  %v3437 = vunpack.c.l.b16 %v3419
  %v3438 = vunpack.c.h.b16 %v3419
  %v3439 = vunpack.c.l.b16 %v3420
  %v3440 = vunpack.c.h.b16 %v3420
  %v3441 = vunpack.c.l.b16 %v3421
  %v3442 = vunpack.c.h.b16 %v3421
  %v3443 = vunpack.c.l.b16 %v3422
  %v3444 = vunpack.c.h.b16 %v3422
  %v3445 = vunpack.c.l.b16 %v3423
  %v3446 = vunpack.c.h.b16 %v3423
  %v3447 = vunpack.c.l.b16 %v3424
  %v3448 = vunpack.c.h.b16 %v3424
  %v3449 = vpack.c.b16 %v3435, %v3433
  %v3450 = vpack.c.b16 %v3436, %v3434
  %v3451 = vpack.c.b16 %v3439, %v3437
  %v3452 = vpack.c.b16 %v3440, %v3438
  %v3453 = vpack.c.b16 %v3443, %v3441
  %v3454 = vpack.c.b16 %v3444, %v3442
  %v3455 = vpack.c.b16 %v3447, %v3445
  %v3456 = vpack.c.b16 %v3448, %v3446
  %3465 = vmatprep.subr.bf16.mxu0 0
  %3466 = vmatpush1.bf16.msra.mxu0 0
  %3467 = vmatprep.subr.bf16.mxu0 0
  %3468 = vmatpush1.bf16.msra.mxu0 0
  %3469 = vmatprep.subr.bf16.mxu0 0
  %3470 = vmatpush1.bf16.msra.mxu0 0
  %3471 = vmatprep.subr.bf16.mxu0 0
  %3472 = vmatpush1.bf16.msra.mxu0 0
  %3473 = vmatprep.subr.bf16.mxu0 %v3456
  %3474 = vmatpush1.bf16.msra.mxu0 %v3455
  %3475 = vmatprep.subr.bf16.mxu0 %v3454
  %3476 = vmatpush1.bf16.msra.mxu0 %v3453
  %3477 = vmatprep.subr.bf16.mxu0 %v3452
  %3478 = vmatpush1.bf16.msra.mxu0 %v3451
  %3479 = vmatprep.subr.bf16.mxu0 %v3450
  %3480 = vmatpush1.bf16.msra.mxu0 %v3449
  %3481 = vmatprep.subr.bf16.mxu0 0
  %3482 = vmatpush2.bf16.msra.mxu0 0
  %3483 = vmatprep.subr.bf16.mxu0 0
  %3484 = vmatpush2.bf16.msra.mxu0 0
  %3485 = vmatprep.subr.bf16.mxu0 0
  %3486 = vmatpush2.bf16.msra.mxu0 0
  %3487 = vmatprep.subr.bf16.mxu0 0
  %3488 = vmatpush2.bf16.msra.mxu0 0
  %3489 = vmatprep.subr.bf16.mxu0 0
  %3490 = vmatpush2.bf16.msra.mxu0 0
  %3491 = vmatprep.subr.bf16.mxu0 0
  %3492 = vmatpush2.bf16.msra.mxu0 0
  %3493 = vmatprep.subr.bf16.mxu0 0
  %3494 = vmatpush2.bf16.msra.mxu0 0
  %3495 = vmatprep.subr.bf16.mxu0 0
  %3496 = vmatpush2.bf16.msra.mxu0 0
  %3497 = vmatprep.mubr.bf16.mxu0 0
  %3498 = vmatmul.mubr.bf16.gmra.mxu0 %v364
  %v3499 = vpop.f32.mrf.mxu0
  %v3500 = vadd.f32 0.0, %v3499
  %v3501 = vpop.f32.mrf.mxu0
  %v3502 = vadd.f32 0.0, %v3501
  %v3503 = vpop.f32.mrf.mxu0
  %v3504 = vadd.f32 0.0, %v3503
  %v3505 = vpop.f32.mrf.mxu0
  %v3506 = vadd.f32 0.0, %v3505
  %3507 = vdwg.mxu0
  %v3508 = vadd.f32 %v3412, %v3500
  %v3509 = vadd.f32 %v3413, %v3502
  %v3510 = vadd.f32 %v3414, %v3504
  %v3511 = vadd.f32 %v3415, %v3506
  %v3512 = vtanh.pop %v3508
  %v3513 = vtanh.pop %v3509
  %v3514 = vtanh.pop %v3510
  %v3515 = vtanh.pop %v3511
  %v3516 = vadd.f32 %v3512, 1.0
  %v3517 = vadd.f32 %v3514, 1.0
  %v3518 = vmul.f32 %v3516, 0.5
  %v3519 = vmul.f32 %v3517, 0.5
  %v3520 = vadd.f32 %v3513, 1.0
  %v3521 = vadd.f32 %v3515, 1.0
  %v3522 = vmul.f32 %v3520, 0.5
  %v3523 = vmul.f32 %v3521, 0.5
  %v3524 = vmul.f32 %v3518, 0.0
  %v3525 = vmul.f32 %v3519, 0.0
  %3528 = vrot.lane.b32.xlu0 %v3513, 64
  %v3529 = vpop.permute.xlu0 %3528
  %3530 = vrot.lane.b32.xlu0 %v3515, 64
  %v3531 = vpop.permute.xlu0 %3530
  %v3534 = vmul.f32 %v3518, %v3529
  %v3535 = vmul.f32 %v3519, %v3531
  %3538 = vrot.lane.b32.xlu0 %v3534, 64
  %v3539 = vpop.permute.xlu0 %3538
  %3540 = vrot.lane.b32.xlu0 %v3535, 64
  %v3541 = vpop.permute.xlu0 %3540
  %v3544 = vadd.f32 %v3524, %v3539
  %v3545 = vadd.f32 %v3525, %v3541
  %v3546 = vtanh.pop %v3544
  %v3547 = vtanh.pop %v3545
  %3550 = vrot.lane.b32.xlu0 %v3546, 64
  %v3551 = vpop.permute.xlu0 %3550
  %3552 = vrot.lane.b32.xlu0 %v3547, 64
  %v3553 = vpop.permute.xlu0 %3552
  %v3556 = vmul.f32 %v3522, %v3551
  %v3557 = vmul.f32 %v3523, %v3553
  %v3558 = vld [vmem:[#allocation3 + $0x20] sm:$0xff]
  %v3559 = vld [vmem:[#allocation3 + $0x28] sm:$0xff]
  %v3560 = vld [vmem:[#allocation3 + $0x30] sm:$0xff]
  %v3561 = vld [vmem:[#allocation3 + $0x38] sm:$0xff]
  %v3562 = vpack.c.bf16 %v3557, %v3556
  %v3564 = vsel %vm141, %v3562, 0
  %3566 = vmatprep.subr.bf16.mxu0 0
  %3567 = vmatpush1.bf16.msra.mxu0 0
  %3568 = vmatprep.subr.bf16.mxu0 0
  %3569 = vmatpush1.bf16.msra.mxu0 0
  %3570 = vmatprep.subr.bf16.mxu0 0
  %3571 = vmatpush1.bf16.msra.mxu0 0
  %3572 = vmatprep.subr.bf16.mxu0 0
  %3573 = vmatpush1.bf16.msra.mxu0 0
  %3574 = vmatprep.subr.bf16.mxu0 %v3456
  %3575 = vmatpush1.bf16.msra.mxu0 %v3455
  %3576 = vmatprep.subr.bf16.mxu0 %v3454
  %3577 = vmatpush1.bf16.msra.mxu0 %v3453
  %3578 = vmatprep.subr.bf16.mxu0 %v3452
  %3579 = vmatpush1.bf16.msra.mxu0 %v3451
  %3580 = vmatprep.subr.bf16.mxu0 %v3450
  %3581 = vmatpush1.bf16.msra.mxu0 %v3449
  %3582 = vmatprep.subr.bf16.mxu0 0
  %3583 = vmatpush2.bf16.msra.mxu0 0
  %3584 = vmatprep.subr.bf16.mxu0 0
  %3585 = vmatpush2.bf16.msra.mxu0 0
  %3586 = vmatprep.subr.bf16.mxu0 0
  %3587 = vmatpush2.bf16.msra.mxu0 0
  %3588 = vmatprep.subr.bf16.mxu0 0
  %3589 = vmatpush2.bf16.msra.mxu0 0
  %3590 = vmatprep.subr.bf16.mxu0 0
  %3591 = vmatpush2.bf16.msra.mxu0 0
  %3592 = vmatprep.subr.bf16.mxu0 0
  %3593 = vmatpush2.bf16.msra.mxu0 0
  %3594 = vmatprep.subr.bf16.mxu0 0
  %3595 = vmatpush2.bf16.msra.mxu0 0
  %3596 = vmatprep.subr.bf16.mxu0 0
  %3597 = vmatpush2.bf16.msra.mxu0 0
  %3598 = vmatprep.mubr.bf16.mxu0 0
  %3599 = vmatmul.mubr.bf16.gmra.mxu0 %v3564
  %v3600 = vpop.f32.mrf.mxu0
  %v3601 = vadd.f32 0.0, %v3600
  %v3602 = vpop.f32.mrf.mxu0
  %v3603 = vadd.f32 0.0, %v3602
  %v3604 = vpop.f32.mrf.mxu0
  %v3605 = vadd.f32 0.0, %v3604
  %v3606 = vpop.f32.mrf.mxu0
  %v3607 = vadd.f32 0.0, %v3606
  %3608 = vdwg.mxu0
  %v3609 = vadd.f32 %v3558, %v3601
  %v3610 = vadd.f32 %v3559, %v3603
  %v3611 = vadd.f32 %v3560, %v3605
  %v3612 = vadd.f32 %v3561, %v3607
  %v3613 = vtanh.pop %v3609
  %v3614 = vtanh.pop %v3610
  %v3615 = vtanh.pop %v3611
  %v3616 = vtanh.pop %v3612
  %v3617 = vadd.f32 %v3613, 1.0
  %v3618 = vadd.f32 %v3615, 1.0
  %v3619 = vmul.f32 %v3617, 0.5
  %v3620 = vmul.f32 %v3618, 0.5
  %v3621 = vadd.f32 %v3614, 1.0
  %v3622 = vadd.f32 %v3616, 1.0
  %v3623 = vmul.f32 %v3621, 0.5
  %v3624 = vmul.f32 %v3622, 0.5
  %v3625 = vmul.f32 %v3619, %v3544
  %v3626 = vmul.f32 %v3620, %v3545
  %3629 = vrot.lane.b32.xlu0 %v3614, 64
  %v3630 = vpop.permute.xlu0 %3629
  %3631 = vrot.lane.b32.xlu0 %v3616, 64
  %v3632 = vpop.permute.xlu0 %3631
  %v3635 = vmul.f32 %v3619, %v3630
  %v3636 = vmul.f32 %v3620, %v3632
  %3639 = vrot.lane.b32.xlu0 %v3635, 64
  %v3640 = vpop.permute.xlu0 %3639
  %3641 = vrot.lane.b32.xlu0 %v3636, 64
  %v3642 = vpop.permute.xlu0 %3641
  %v3645 = vadd.f32 %v3625, %v3640
  %v3646 = vadd.f32 %v3626, %v3642
  %v3647 = vtanh.pop %v3645
  %v3648 = vtanh.pop %v3646
  %3651 = vrot.lane.b32.xlu0 %v3647, 64
  %v3652 = vpop.permute.xlu0 %3651
  %3653 = vrot.lane.b32.xlu0 %v3648, 64
  %v3654 = vpop.permute.xlu0 %3653
  %v3657 = vmul.f32 %v3623, %v3652
  %v3658 = vmul.f32 %v3624, %v3654
  %v3659 = vld [vmem:[#allocation3 + $0x40] sm:$0xff]
  %v3660 = vld [vmem:[#allocation3 + $0x48] sm:$0xff]
  %v3661 = vld [vmem:[#allocation3 + $0x50] sm:$0xff]
  %v3662 = vld [vmem:[#allocation3 + $0x58] sm:$0xff]
  %v3663 = vpack.c.bf16 %v3658, %v3657
  %v3665 = vsel %vm141, %v3663, 0
  %3667 = vmatprep.subr.bf16.mxu0 0
  %3668 = vmatpush1.bf16.msra.mxu0 0
  %3669 = vmatprep.subr.bf16.mxu0 0
  %3670 = vmatpush1.bf16.msra.mxu0 0
  %3671 = vmatprep.subr.bf16.mxu0 0
  %3672 = vmatpush1.bf16.msra.mxu0 0
  %3673 = vmatprep.subr.bf16.mxu0 0
  %3674 = vmatpush1.bf16.msra.mxu0 0
  %3675 = vmatprep.subr.bf16.mxu0 %v3456
  %3676 = vmatpush1.bf16.msra.mxu0 %v3455
  %3677 = vmatprep.subr.bf16.mxu0 %v3454
  %3678 = vmatpush1.bf16.msra.mxu0 %v3453
  %3679 = vmatprep.subr.bf16.mxu0 %v3452
  %3680 = vmatpush1.bf16.msra.mxu0 %v3451
  %3681 = vmatprep.subr.bf16.mxu0 %v3450
  %3682 = vmatpush1.bf16.msra.mxu0 %v3449
  %3683 = vmatprep.subr.bf16.mxu0 0
  %3684 = vmatpush2.bf16.msra.mxu0 0
  %3685 = vmatprep.subr.bf16.mxu0 0
  %3686 = vmatpush2.bf16.msra.mxu0 0
  %3687 = vmatprep.subr.bf16.mxu0 0
  %3688 = vmatpush2.bf16.msra.mxu0 0
  %3689 = vmatprep.subr.bf16.mxu0 0
  %3690 = vmatpush2.bf16.msra.mxu0 0
  %3691 = vmatprep.subr.bf16.mxu0 0
  %3692 = vmatpush2.bf16.msra.mxu0 0
  %3693 = vmatprep.subr.bf16.mxu0 0
  %3694 = vmatpush2.bf16.msra.mxu0 0
  %3695 = vmatprep.subr.bf16.mxu0 0
  %3696 = vmatpush2.bf16.msra.mxu0 0
  %3697 = vmatprep.subr.bf16.mxu0 0
  %3698 = vmatpush2.bf16.msra.mxu0 0
  %3699 = vmatprep.mubr.bf16.mxu0 0
  %3700 = vmatmul.mubr.bf16.gmra.mxu0 %v3665
  %v3701 = vpop.f32.mrf.mxu0
  %v3702 = vadd.f32 0.0, %v3701
  %v3703 = vpop.f32.mrf.mxu0
  %v3704 = vadd.f32 0.0, %v3703
  %v3705 = vpop.f32.mrf.mxu0
  %v3706 = vadd.f32 0.0, %v3705
  %v3707 = vpop.f32.mrf.mxu0
  %v3708 = vadd.f32 0.0, %v3707
  %3709 = vdwg.mxu0
  %v3710 = vadd.f32 %v3659, %v3702
  %v3711 = vadd.f32 %v3660, %v3704
  %v3712 = vadd.f32 %v3661, %v3706
  %v3713 = vadd.f32 %v3662, %v3708
  %v3714 = vtanh.pop %v3710
  %v3715 = vtanh.pop %v3711
  %v3716 = vtanh.pop %v3712
  %v3717 = vtanh.pop %v3713
  %v3718 = vadd.f32 %v3714, 1.0
  %v3719 = vadd.f32 %v3716, 1.0
  %v3720 = vmul.f32 %v3718, 0.5
  %v3721 = vmul.f32 %v3719, 0.5
  %v3722 = vadd.f32 %v3715, 1.0
  %v3723 = vadd.f32 %v3717, 1.0
  %v3724 = vmul.f32 %v3722, 0.5
  %v3725 = vmul.f32 %v3723, 0.5
  %v3726 = vmul.f32 %v3720, %v3645
  %v3727 = vmul.f32 %v3721, %v3646
  %3730 = vrot.lane.b32.xlu0 %v3715, 64
  %v3731 = vpop.permute.xlu0 %3730
  %3732 = vrot.lane.b32.xlu0 %v3717, 64
  %v3733 = vpop.permute.xlu0 %3732
  %v3736 = vmul.f32 %v3720, %v3731
  %v3737 = vmul.f32 %v3721, %v3733
  %3740 = vrot.lane.b32.xlu0 %v3736, 64
  %v3741 = vpop.permute.xlu0 %3740
  %3742 = vrot.lane.b32.xlu0 %v3737, 64
  %v3743 = vpop.permute.xlu0 %3742
  %v3746 = vadd.f32 %v3726, %v3741
  %v3747 = vadd.f32 %v3727, %v3743
  %v3748 = vtanh.pop %v3746
  %v3749 = vtanh.pop %v3747
  %3752 = vrot.lane.b32.xlu0 %v3748, 64
  %v3753 = vpop.permute.xlu0 %3752
  %3754 = vrot.lane.b32.xlu0 %v3749, 64
  %v3755 = vpop.permute.xlu0 %3754
  %v3758 = vmul.f32 %v3724, %v3753
  %v3759 = vmul.f32 %v3725, %v3755
  %v3760 = vld [vmem:[#allocation3 + $0x60] sm:$0xff]
  %v3761 = vld [vmem:[#allocation3 + $0x68] sm:$0xff]
  %v3762 = vld [vmem:[#allocation3 + $0x70] sm:$0xff]
  %v3763 = vld [vmem:[#allocation3 + $0x78] sm:$0xff]
  %v3764 = vpack.c.bf16 %v3759, %v3758
  %v3766 = vsel %vm141, %v3764, 0
  %3768 = vmatprep.subr.bf16.mxu0 0
  %3769 = vmatpush1.bf16.msra.mxu0 0
  %3770 = vmatprep.subr.bf16.mxu0 0
  %3771 = vmatpush1.bf16.msra.mxu0 0
  %3772 = vmatprep.subr.bf16.mxu0 0
  %3773 = vmatpush1.bf16.msra.mxu0 0
  %3774 = vmatprep.subr.bf16.mxu0 0
  %3775 = vmatpush1.bf16.msra.mxu0 0
  %3776 = vmatprep.subr.bf16.mxu0 %v3456
  %3777 = vmatpush1.bf16.msra.mxu0 %v3455
  %3778 = vmatprep.subr.bf16.mxu0 %v3454
  %3779 = vmatpush1.bf16.msra.mxu0 %v3453
  %3780 = vmatprep.subr.bf16.mxu0 %v3452
  %3781 = vmatpush1.bf16.msra.mxu0 %v3451
  %3782 = vmatprep.subr.bf16.mxu0 %v3450
  %3783 = vmatpush1.bf16.msra.mxu0 %v3449
  %3784 = vmatprep.subr.bf16.mxu0 0
  %3785 = vmatpush2.bf16.msra.mxu0 0
  %3786 = vmatprep.subr.bf16.mxu0 0
  %3787 = vmatpush2.bf16.msra.mxu0 0
  %3788 = vmatprep.subr.bf16.mxu0 0
  %3789 = vmatpush2.bf16.msra.mxu0 0
  %3790 = vmatprep.subr.bf16.mxu0 0
  %3791 = vmatpush2.bf16.msra.mxu0 0
  %3792 = vmatprep.subr.bf16.mxu0 0
  %3793 = vmatpush2.bf16.msra.mxu0 0
  %3794 = vmatprep.subr.bf16.mxu0 0
  %3795 = vmatpush2.bf16.msra.mxu0 0
  %3796 = vmatprep.subr.bf16.mxu0 0
  %3797 = vmatpush2.bf16.msra.mxu0 0
  %3798 = vmatprep.subr.bf16.mxu0 0
  %3799 = vmatpush2.bf16.msra.mxu0 0
  %3800 = vmatprep.mubr.bf16.mxu0 0
  %3801 = vmatmul.mubr.bf16.gmra.mxu0 %v3766
  %v3802 = vpop.f32.mrf.mxu0
  %v3803 = vadd.f32 0.0, %v3802
  %v3804 = vpop.f32.mrf.mxu0
  %v3805 = vadd.f32 0.0, %v3804
  %v3806 = vpop.f32.mrf.mxu0
  %v3807 = vadd.f32 0.0, %v3806
  %v3808 = vpop.f32.mrf.mxu0
  %v3809 = vadd.f32 0.0, %v3808
  %3810 = vdwg.mxu0
  %v3811 = vadd.f32 %v3760, %v3803
  %v3812 = vadd.f32 %v3761, %v3805
  %v3813 = vadd.f32 %v3762, %v3807
  %v3814 = vadd.f32 %v3763, %v3809
  %v3815 = vtanh.pop %v3811
  %v3816 = vtanh.pop %v3812
  %v3817 = vtanh.pop %v3813
  %v3818 = vtanh.pop %v3814
  %v3819 = vadd.f32 %v3815, 1.0
  %v3820 = vadd.f32 %v3817, 1.0
  %v3821 = vmul.f32 %v3819, 0.5
  %v3822 = vmul.f32 %v3820, 0.5
  %v3823 = vadd.f32 %v3816, 1.0
  %v3824 = vadd.f32 %v3818, 1.0
  %v3825 = vmul.f32 %v3823, 0.5
  %v3826 = vmul.f32 %v3824, 0.5
  %v3827 = vmul.f32 %v3821, %v3746
  %v3828 = vmul.f32 %v3822, %v3747
  %3831 = vrot.lane.b32.xlu0 %v3816, 64
  %v3832 = vpop.permute.xlu0 %3831
  %3833 = vrot.lane.b32.xlu0 %v3818, 64
  %v3834 = vpop.permute.xlu0 %3833
  %v3837 = vmul.f32 %v3821, %v3832
  %v3838 = vmul.f32 %v3822, %v3834
  %3841 = vrot.lane.b32.xlu0 %v3837, 64
  %v3842 = vpop.permute.xlu0 %3841
  %3843 = vrot.lane.b32.xlu0 %v3838, 64
  %v3844 = vpop.permute.xlu0 %3843
  %v3847 = vadd.f32 %v3827, %v3842
  %v3848 = vadd.f32 %v3828, %v3844
  %v3849 = vtanh.pop %v3847
  %v3850 = vtanh.pop %v3848
  %3853 = vrot.lane.b32.xlu0 %v3849, 64
  %v3854 = vpop.permute.xlu0 %3853
  %3855 = vrot.lane.b32.xlu0 %v3850, 64
  %v3856 = vpop.permute.xlu0 %3855
  %v3859 = vmul.f32 %v3825, %v3854
  %v3860 = vmul.f32 %v3826, %v3856
  %v3861 = vld [vmem:[#allocation3 + $0x80] sm:$0xff]
  %v3862 = vld [vmem:[#allocation3 + $0x88] sm:$0xff]
  %v3863 = vld [vmem:[#allocation3 + $0x90] sm:$0xff]
  %v3864 = vld [vmem:[#allocation3 + $0x98] sm:$0xff]
  %v3865 = vpack.c.bf16 %v3860, %v3859
  %v3867 = vsel %vm141, %v3865, 0
  %3869 = vmatprep.subr.bf16.mxu0 0
  %3870 = vmatpush1.bf16.msra.mxu0 0
  %3871 = vmatprep.subr.bf16.mxu0 0
  %3872 = vmatpush1.bf16.msra.mxu0 0
  %3873 = vmatprep.subr.bf16.mxu0 0
  %3874 = vmatpush1.bf16.msra.mxu0 0
  %3875 = vmatprep.subr.bf16.mxu0 0
  %3876 = vmatpush1.bf16.msra.mxu0 0
  %3877 = vmatprep.subr.bf16.mxu0 %v3456
  %3878 = vmatpush1.bf16.msra.mxu0 %v3455
  %3879 = vmatprep.subr.bf16.mxu0 %v3454
  %3880 = vmatpush1.bf16.msra.mxu0 %v3453
  %3881 = vmatprep.subr.bf16.mxu0 %v3452
  %3882 = vmatpush1.bf16.msra.mxu0 %v3451
  %3883 = vmatprep.subr.bf16.mxu0 %v3450
  %3884 = vmatpush1.bf16.msra.mxu0 %v3449
  %3885 = vmatprep.subr.bf16.mxu0 0
  %3886 = vmatpush2.bf16.msra.mxu0 0
  %3887 = vmatprep.subr.bf16.mxu0 0
  %3888 = vmatpush2.bf16.msra.mxu0 0
  %3889 = vmatprep.subr.bf16.mxu0 0
  %3890 = vmatpush2.bf16.msra.mxu0 0
  %3891 = vmatprep.subr.bf16.mxu0 0
  %3892 = vmatpush2.bf16.msra.mxu0 0
  %3893 = vmatprep.subr.bf16.mxu0 0
  %3894 = vmatpush2.bf16.msra.mxu0 0
  %3895 = vmatprep.subr.bf16.mxu0 0
  %3896 = vmatpush2.bf16.msra.mxu0 0
  %3897 = vmatprep.subr.bf16.mxu0 0
  %3898 = vmatpush2.bf16.msra.mxu0 0
  %3899 = vmatprep.subr.bf16.mxu0 0
  %3900 = vmatpush2.bf16.msra.mxu0 0
  %3901 = vmatprep.mubr.bf16.mxu0 0
  %3902 = vmatmul.mubr.bf16.gmra.mxu0 %v3867
  %v3903 = vpop.f32.mrf.mxu0
  %v3904 = vadd.f32 0.0, %v3903
  %v3905 = vpop.f32.mrf.mxu0
  %v3906 = vadd.f32 0.0, %v3905
  %v3907 = vpop.f32.mrf.mxu0
  %v3908 = vadd.f32 0.0, %v3907
  %v3909 = vpop.f32.mrf.mxu0
  %v3910 = vadd.f32 0.0, %v3909
  %3911 = vdwg.mxu0
  %v3912 = vadd.f32 %v3861, %v3904
  %v3913 = vadd.f32 %v3862, %v3906
  %v3914 = vadd.f32 %v3863, %v3908
  %v3915 = vadd.f32 %v3864, %v3910
  %v3916 = vtanh.pop %v3912
  %v3917 = vtanh.pop %v3913
  %v3918 = vtanh.pop %v3914
  %v3919 = vtanh.pop %v3915
  %v3920 = vadd.f32 %v3916, 1.0
  %v3921 = vadd.f32 %v3918, 1.0
  %v3922 = vmul.f32 %v3920, 0.5
  %v3923 = vmul.f32 %v3921, 0.5
  %v3924 = vadd.f32 %v3917, 1.0
  %v3925 = vadd.f32 %v3919, 1.0
  %v3926 = vmul.f32 %v3924, 0.5
  %v3927 = vmul.f32 %v3925, 0.5
  %v3928 = vmul.f32 %v3922, %v3847
  %v3929 = vmul.f32 %v3923, %v3848
  %3932 = vrot.lane.b32.xlu0 %v3917, 64
  %v3933 = vpop.permute.xlu0 %3932
  %3934 = vrot.lane.b32.xlu0 %v3919, 64
  %v3935 = vpop.permute.xlu0 %3934
  %v3938 = vmul.f32 %v3922, %v3933
  %v3939 = vmul.f32 %v3923, %v3935
  %3942 = vrot.lane.b32.xlu0 %v3938, 64
  %v3943 = vpop.permute.xlu0 %3942
  %3944 = vrot.lane.b32.xlu0 %v3939, 64
  %v3945 = vpop.permute.xlu0 %3944
  %v3948 = vadd.f32 %v3928, %v3943
  %v3949 = vadd.f32 %v3929, %v3945
  %v3950 = vtanh.pop %v3948
  %v3951 = vtanh.pop %v3949
  %3954 = vrot.lane.b32.xlu0 %v3950, 64
  %v3955 = vpop.permute.xlu0 %3954
  %3956 = vrot.lane.b32.xlu0 %v3951, 64
  %v3957 = vpop.permute.xlu0 %3956
  %v3960 = vmul.f32 %v3926, %v3955
  %v3961 = vmul.f32 %v3927, %v3957
  %v3962 = vld [vmem:[#allocation3 + $0xa0] sm:$0xff]
  %v3963 = vld [vmem:[#allocation3 + $0xa8] sm:$0xff]
  %v3964 = vld [vmem:[#allocation3 + $0xb0] sm:$0xff]
  %v3965 = vld [vmem:[#allocation3 + $0xb8] sm:$0xff]
  %v3966 = vpack.c.bf16 %v3961, %v3960
  %v3968 = vsel %vm141, %v3966, 0
  %3970 = vmatprep.subr.bf16.mxu0 0
  %3971 = vmatpush1.bf16.msra.mxu0 0
  %3972 = vmatprep.subr.bf16.mxu0 0
  %3973 = vmatpush1.bf16.msra.mxu0 0
  %3974 = vmatprep.subr.bf16.mxu0 0
  %3975 = vmatpush1.bf16.msra.mxu0 0
  %3976 = vmatprep.subr.bf16.mxu0 0
  %3977 = vmatpush1.bf16.msra.mxu0 0
  %3978 = vmatprep.subr.bf16.mxu0 %v3456
  %3979 = vmatpush1.bf16.msra.mxu0 %v3455
  %3980 = vmatprep.subr.bf16.mxu0 %v3454
  %3981 = vmatpush1.bf16.msra.mxu0 %v3453
  %3982 = vmatprep.subr.bf16.mxu0 %v3452
  %3983 = vmatpush1.bf16.msra.mxu0 %v3451
  %3984 = vmatprep.subr.bf16.mxu0 %v3450
  %3985 = vmatpush1.bf16.msra.mxu0 %v3449
  %3986 = vmatprep.subr.bf16.mxu0 0
  %3987 = vmatpush2.bf16.msra.mxu0 0
  %3988 = vmatprep.subr.bf16.mxu0 0
  %3989 = vmatpush2.bf16.msra.mxu0 0
  %3990 = vmatprep.subr.bf16.mxu0 0
  %3991 = vmatpush2.bf16.msra.mxu0 0
  %3992 = vmatprep.subr.bf16.mxu0 0
  %3993 = vmatpush2.bf16.msra.mxu0 0
  %3994 = vmatprep.subr.bf16.mxu0 0
  %3995 = vmatpush2.bf16.msra.mxu0 0
  %3996 = vmatprep.subr.bf16.mxu0 0
  %3997 = vmatpush2.bf16.msra.mxu0 0
  %3998 = vmatprep.subr.bf16.mxu0 0
  %3999 = vmatpush2.bf16.msra.mxu0 0
  %4000 = vmatprep.subr.bf16.mxu0 0
  %4001 = vmatpush2.bf16.msra.mxu0 0
  %4002 = vmatprep.mubr.bf16.mxu0 0
  %4003 = vmatmul.mubr.bf16.gmra.mxu0 %v3968
  %v4004 = vpop.f32.mrf.mxu0
  %v4005 = vadd.f32 0.0, %v4004
  %v4006 = vpop.f32.mrf.mxu0
  %v4007 = vadd.f32 0.0, %v4006
  %v4008 = vpop.f32.mrf.mxu0
  %v4009 = vadd.f32 0.0, %v4008
  %v4010 = vpop.f32.mrf.mxu0
  %v4011 = vadd.f32 0.0, %v4010
  %4012 = vdwg.mxu0
  %v4013 = vadd.f32 %v3962, %v4005
  %v4014 = vadd.f32 %v3963, %v4007
  %v4015 = vadd.f32 %v3964, %v4009
  %v4016 = vadd.f32 %v3965, %v4011
  %v4017 = vtanh.pop %v4013
  %v4018 = vtanh.pop %v4014
  %v4019 = vtanh.pop %v4015
  %v4020 = vtanh.pop %v4016
  %v4021 = vadd.f32 %v4017, 1.0
  %v4022 = vadd.f32 %v4019, 1.0
  %v4023 = vmul.f32 %v4021, 0.5
  %v4024 = vmul.f32 %v4022, 0.5
  %v4025 = vadd.f32 %v4018, 1.0
  %v4026 = vadd.f32 %v4020, 1.0
  %v4027 = vmul.f32 %v4025, 0.5
  %v4028 = vmul.f32 %v4026, 0.5
  %v4029 = vmul.f32 %v4023, %v3948
  %v4030 = vmul.f32 %v4024, %v3949
  %4033 = vrot.lane.b32.xlu0 %v4018, 64
  %v4034 = vpop.permute.xlu0 %4033
  %4035 = vrot.lane.b32.xlu0 %v4020, 64
  %v4036 = vpop.permute.xlu0 %4035
  %v4039 = vmul.f32 %v4023, %v4034
  %v4040 = vmul.f32 %v4024, %v4036
  %4043 = vrot.lane.b32.xlu0 %v4039, 64
  %v4044 = vpop.permute.xlu0 %4043
  %4045 = vrot.lane.b32.xlu0 %v4040, 64
  %v4046 = vpop.permute.xlu0 %4045
  %v4049 = vadd.f32 %v4029, %v4044
  %v4050 = vadd.f32 %v4030, %v4046
  %v4051 = vtanh.pop %v4049
  %v4052 = vtanh.pop %v4050
  %4055 = vrot.lane.b32.xlu0 %v4051, 64
  %v4056 = vpop.permute.xlu0 %4055
  %4057 = vrot.lane.b32.xlu0 %v4052, 64
  %v4058 = vpop.permute.xlu0 %4057
  %v4061 = vmul.f32 %v4027, %v4056
  %v4062 = vmul.f32 %v4028, %v4058
  %v4063 = vld [vmem:[#allocation3 + $0xc0] sm:$0xff]
  %v4064 = vld [vmem:[#allocation3 + $0xc8] sm:$0xff]
  %v4065 = vld [vmem:[#allocation3 + $0xd0] sm:$0xff]
  %v4066 = vld [vmem:[#allocation3 + $0xd8] sm:$0xff]
  %v4067 = vpack.c.bf16 %v4062, %v4061
  %v4069 = vsel %vm141, %v4067, 0
  %4071 = vmatprep.subr.bf16.mxu0 0
  %4072 = vmatpush1.bf16.msra.mxu0 0
  %4073 = vmatprep.subr.bf16.mxu0 0
  %4074 = vmatpush1.bf16.msra.mxu0 0
  %4075 = vmatprep.subr.bf16.mxu0 0
  %4076 = vmatpush1.bf16.msra.mxu0 0
  %4077 = vmatprep.subr.bf16.mxu0 0
  %4078 = vmatpush1.bf16.msra.mxu0 0
  %4079 = vmatprep.subr.bf16.mxu0 %v3456
  %4080 = vmatpush1.bf16.msra.mxu0 %v3455
  %4081 = vmatprep.subr.bf16.mxu0 %v3454
  %4082 = vmatpush1.bf16.msra.mxu0 %v3453
  %4083 = vmatprep.subr.bf16.mxu0 %v3452
  %4084 = vmatpush1.bf16.msra.mxu0 %v3451
  %4085 = vmatprep.subr.bf16.mxu0 %v3450
  %4086 = vmatpush1.bf16.msra.mxu0 %v3449
  %4087 = vmatprep.subr.bf16.mxu0 0
  %4088 = vmatpush2.bf16.msra.mxu0 0
  %4089 = vmatprep.subr.bf16.mxu0 0
  %4090 = vmatpush2.bf16.msra.mxu0 0
  %4091 = vmatprep.subr.bf16.mxu0 0
  %4092 = vmatpush2.bf16.msra.mxu0 0
  %4093 = vmatprep.subr.bf16.mxu0 0
  %4094 = vmatpush2.bf16.msra.mxu0 0
  %4095 = vmatprep.subr.bf16.mxu0 0
  %4096 = vmatpush2.bf16.msra.mxu0 0
  %4097 = vmatprep.subr.bf16.mxu0 0
  %4098 = vmatpush2.bf16.msra.mxu0 0
  %4099 = vmatprep.subr.bf16.mxu0 0
  %4100 = vmatpush2.bf16.msra.mxu0 0
  %4101 = vmatprep.subr.bf16.mxu0 0
  %4102 = vmatpush2.bf16.msra.mxu0 0
  %4103 = vmatprep.mubr.bf16.mxu0 0
  %4104 = vmatmul.mubr.bf16.gmra.mxu0 %v4069
  %v4105 = vpop.f32.mrf.mxu0
  %v4106 = vadd.f32 0.0, %v4105
  %v4107 = vpop.f32.mrf.mxu0
  %v4108 = vadd.f32 0.0, %v4107
  %v4109 = vpop.f32.mrf.mxu0
  %v4110 = vadd.f32 0.0, %v4109
  %v4111 = vpop.f32.mrf.mxu0
  %v4112 = vadd.f32 0.0, %v4111
  %4113 = vdwg.mxu0
  %v4114 = vadd.f32 %v4063, %v4106
  %v4115 = vadd.f32 %v4064, %v4108
  %v4116 = vadd.f32 %v4065, %v4110
  %v4117 = vadd.f32 %v4066, %v4112
  %v4118 = vtanh.pop %v4114
  %v4119 = vtanh.pop %v4115
  %v4120 = vtanh.pop %v4116
  %v4121 = vtanh.pop %v4117
  %v4122 = vadd.f32 %v4118, 1.0
  %v4123 = vadd.f32 %v4120, 1.0
  %v4124 = vmul.f32 %v4122, 0.5
  %v4125 = vmul.f32 %v4123, 0.5
  %v4126 = vadd.f32 %v4119, 1.0
  %v4127 = vadd.f32 %v4121, 1.0
  %v4128 = vmul.f32 %v4126, 0.5
  %v4129 = vmul.f32 %v4127, 0.5
  %v4130 = vmul.f32 %v4124, %v4049
  %v4131 = vmul.f32 %v4125, %v4050
  %4134 = vrot.lane.b32.xlu0 %v4119, 64
  %v4135 = vpop.permute.xlu0 %4134
  %4136 = vrot.lane.b32.xlu0 %v4121, 64
  %v4137 = vpop.permute.xlu0 %4136
  %v4140 = vmul.f32 %v4124, %v4135
  %v4141 = vmul.f32 %v4125, %v4137
  %4144 = vrot.lane.b32.xlu0 %v4140, 64
  %v4145 = vpop.permute.xlu0 %4144
  %4146 = vrot.lane.b32.xlu0 %v4141, 64
  %v4147 = vpop.permute.xlu0 %4146
  %v4150 = vadd.f32 %v4130, %v4145
  %v4151 = vadd.f32 %v4131, %v4147
  %v4152 = vtanh.pop %v4150
  %v4153 = vtanh.pop %v4151
  %4156 = vrot.lane.b32.xlu0 %v4152, 64
  %v4157 = vpop.permute.xlu0 %4156
  %4158 = vrot.lane.b32.xlu0 %v4153, 64
  %v4159 = vpop.permute.xlu0 %4158
  %v4162 = vmul.f32 %v4128, %v4157
  %v4163 = vmul.f32 %v4129, %v4159
  %v4164 = vld [vmem:[#allocation3 + $0xe0] sm:$0xff]
  %v4165 = vld [vmem:[#allocation3 + $0xe8] sm:$0xff]
  %v4166 = vld [vmem:[#allocation3 + $0xf0] sm:$0xff]
  %v4167 = vld [vmem:[#allocation3 + $0xf8] sm:$0xff]
  %v4168 = vpack.c.bf16 %v4163, %v4162
  %v4170 = vsel %vm141, %v4168, 0
  %4172 = vmatprep.subr.bf16.mxu0 0
  %4173 = vmatpush1.bf16.msra.mxu0 0
  %4174 = vmatprep.subr.bf16.mxu0 0
  %4175 = vmatpush1.bf16.msra.mxu0 0
  %4176 = vmatprep.subr.bf16.mxu0 0
  %4177 = vmatpush1.bf16.msra.mxu0 0
  %4178 = vmatprep.subr.bf16.mxu0 0
  %4179 = vmatpush1.bf16.msra.mxu0 0
  %4180 = vmatprep.subr.bf16.mxu0 %v3456
  %4181 = vmatpush1.bf16.msra.mxu0 %v3455
  %4182 = vmatprep.subr.bf16.mxu0 %v3454
  %4183 = vmatpush1.bf16.msra.mxu0 %v3453
  %4184 = vmatprep.subr.bf16.mxu0 %v3452
  %4185 = vmatpush1.bf16.msra.mxu0 %v3451
  %4186 = vmatprep.subr.bf16.mxu0 %v3450
  %4187 = vmatpush1.bf16.msra.mxu0 %v3449
  %4188 = vmatprep.subr.bf16.mxu0 0
  %4189 = vmatpush2.bf16.msra.mxu0 0
  %4190 = vmatprep.subr.bf16.mxu0 0
  %4191 = vmatpush2.bf16.msra.mxu0 0
  %4192 = vmatprep.subr.bf16.mxu0 0
  %4193 = vmatpush2.bf16.msra.mxu0 0
  %4194 = vmatprep.subr.bf16.mxu0 0
  %4195 = vmatpush2.bf16.msra.mxu0 0
  %4196 = vmatprep.subr.bf16.mxu0 0
  %4197 = vmatpush2.bf16.msra.mxu0 0
  %4198 = vmatprep.subr.bf16.mxu0 0
  %4199 = vmatpush2.bf16.msra.mxu0 0
  %4200 = vmatprep.subr.bf16.mxu0 0
  %4201 = vmatpush2.bf16.msra.mxu0 0
  %4202 = vmatprep.subr.bf16.mxu0 0
  %4203 = vmatpush2.bf16.msra.mxu0 0
  %4204 = vmatprep.mubr.bf16.mxu0 0
  %4205 = vmatmul.mubr.bf16.gmra.mxu0 %v4170
  %v4206 = vpop.f32.mrf.mxu0
  %v4207 = vadd.f32 0.0, %v4206
  %v4208 = vpop.f32.mrf.mxu0
  %v4209 = vadd.f32 0.0, %v4208
  %v4210 = vpop.f32.mrf.mxu0
  %v4211 = vadd.f32 0.0, %v4210
  %v4212 = vpop.f32.mrf.mxu0
  %v4213 = vadd.f32 0.0, %v4212
  %4214 = vdwg.mxu0
  %v4215 = vadd.f32 %v4164, %v4207
  %v4216 = vadd.f32 %v4165, %v4209
  %v4217 = vadd.f32 %v4166, %v4211
  %v4218 = vadd.f32 %v4167, %v4213
  %v4219 = vtanh.pop %v4215
  %v4220 = vtanh.pop %v4216
  %v4221 = vtanh.pop %v4217
  %v4222 = vtanh.pop %v4218
  %v4223 = vadd.f32 %v4219, 1.0
  %v4224 = vadd.f32 %v4221, 1.0
  %v4225 = vmul.f32 %v4223, 0.5
  %v4226 = vmul.f32 %v4224, 0.5
  %v4227 = vadd.f32 %v4220, 1.0
  %v4228 = vadd.f32 %v4222, 1.0
  %v4229 = vmul.f32 %v4227, 0.5
  %v4230 = vmul.f32 %v4228, 0.5
  %v4231 = vmul.f32 %v4225, %v4150
  %v4232 = vmul.f32 %v4226, %v4151
  %4235 = vrot.lane.b32.xlu0 %v4220, 64
  %v4236 = vpop.permute.xlu0 %4235
  %4237 = vrot.lane.b32.xlu0 %v4222, 64
  %v4238 = vpop.permute.xlu0 %4237
  %v4241 = vmul.f32 %v4225, %v4236
  %v4242 = vmul.f32 %v4226, %v4238
  %4245 = vrot.lane.b32.xlu0 %v4241, 64
  %v4246 = vpop.permute.xlu0 %4245
  %4247 = vrot.lane.b32.xlu0 %v4242, 64
  %v4248 = vpop.permute.xlu0 %4247
  %v4251 = vadd.f32 %v4231, %v4246
  %v4252 = vadd.f32 %v4232, %v4248
  %v4253 = vtanh.pop %v4251
  %v4254 = vtanh.pop %v4252
  %4257 = vrot.lane.b32.xlu0 %v4253, 64
  %v4258 = vpop.permute.xlu0 %4257
  %4259 = vrot.lane.b32.xlu0 %v4254, 64
  %v4260 = vpop.permute.xlu0 %4259
  %v4263 = vmul.f32 %v4229, %v4258
  %v4264 = vmul.f32 %v4230, %v4260
  %v4265 = vld [vmem:[%s4] sm:$0x1]
  %v4267 = vlaneseq
  %v4268 = vshrl.u32 %v4267, 7
  %v4269 = vsub.s32 0, %v4268
  %v4270 = vrot.slane %v4265, %v4269
  %v4272 = vmul.f32 %v4263, %v4270
  %v4273 = vmul.f32 %v4264, %v4270
  %v4274 = vsel %vm141, %v4272, 0.0
  %4275 = vadd.xlane.f32.xlu0 %v4274
  %v4276 = vpop.xlane.xlu0 %4275
  %v4277 = vsel %vm141, %v4273, 0.0
  %4278 = vadd.xlane.f32.xlu0 %v4277
  %v4279 = vpop.xlane.xlu0 %4278
  %s4280 = sld [smem:[#allocation4]]
  %v4281 = vstv %s4280
  %v4282 = vadd.f32 %v4276, %v4281
  %v4283 = vadd.f32 %v4279, %v4281
  %vm4284 = vcmask 7168
  %4285 = vst.msk [vmem:[%s6] sm:$0xff] %vm4284, %v4282
  %4286 = vst.msk [vmem:[%s6 + $0x8] sm:$0xff] %vm4284, %v4283
  // Predicated region
  $region26: #{lstm_forward.1} parent=0 // pred_check
    _
  $region27: #{lstm_forward.1} parent=0 // pred_check_branch
    %4288 = sbr.rel (0) target = $region29
  $region28: #{lstm_forward.1} parent=0 // pred_region
    _
  $region29: #{lstm_forward.1} parent=0 // pred_fallthru
    _
  // Predicated region
  $region30: #{lstm_forward.1} parent=0 // pred_check
    _
  $region31: #{lstm_forward.1} parent=0 // pred_check_branch
    %4290 = sbr.rel (0) target = $region33
  $region32: #{lstm_forward.1} parent=0 // pred_region
    _
  $region33: #{lstm_forward.1} parent=0 // pred_fallthru
    _

</llo_original>
